<compile_context>
chip_gen: v6e
topology: v6e:2x2x1
jax: 0.10.0
libtpu: 0.0.40
codegen_flags: <defaults>
</compile_context>

<pallas_src>
import functools

import jax
import jax.numpy as jnp
from jax.experimental import pallas as pl
from jax.experimental.pallas import tpu as pltpu

LANE = 128


def _rup(n, m):
    return ((n + m - 1) // m) * m


def _pad2(a, rows, cols):
    return jnp.pad(a, ((0, rows - a.shape[0]), (0, cols - a.shape[1])))


def _head_block_cols(a, heads, c, cp):
    """[R, heads*c] -> [R, heads*cp], each head's c columns zero-padded to cp."""
    if heads == 1:
        return _pad2(a, a.shape[0], cp)
    parts = [jnp.pad(a[:, h * c:(h + 1) * c], ((0, 0), (0, cp - c))) for h in range(heads)]
    return jnp.concatenate(parts, axis=1)


def _head_block_rows(a, heads, c, cp):
    """[heads*c, C2] -> [heads*cp, C2], each head's c rows zero-padded to cp."""
    if heads == 1:
        return jnp.pad(a, ((0, cp - a.shape[0]), (0, 0)))
    parts = [jnp.pad(a[h * c:(h + 1) * c, :], ((0, cp - c), (0, 0))) for h in range(heads)]
    return jnp.concatenate(parts, axis=0)


def _fused_gat_net_kernel(x_ref, s_ref, st_ref, dt_ref, kr_ref, ep_ref,
                          wl1_ref, wh1_1_ref, wh2_1_ref, bh2_1_ref,
                          wp1_1_ref, wp2_1_ref, bp2_1_ref, bias1_ref,
                          wl2_ref, wh1_2_ref, wh2_2_ref, bh2_2_ref,
                          wp1_2_ref, wp2_2_ref, bp2_2_ref, bias2_ref,
                          out_ref, *, heads1, cp1, cp2, num_classes, alpha_hp):
    f32 = jnp.float32
    bf16 = jnp.bfloat16

    S = s_ref[...]        # [Ep, Np] bf16 one-hot of src
    ST = st_ref[...]      # [Np, Ep] bf16
    DT = dt_ref[...]      # [Np, Ep] bf16 one-hot of dst, transposed
    kr = kr_ref[...]      # [Ep, Kp] f32
    ep = ep_ref[...]      # [Np, Pp] f32

    def one_conv(x_in, wl_ref, wh1_ref, wh2_ref, bh2_ref,
                 wp1_ref, wp2_ref, bp2_ref, bias_ref, heads, cp, concat):
        # shared lin_src == lin_dst (no bias): bf16 operands, f32 accumulation.
        xw = jnp.dot(x_in.astype(bf16), wl_ref[...].astype(bf16),
                     preferred_element_type=f32)                            # [Np, heads*cp]

        # hmpnn edge MLP (f32): Linear(no bias) -> LeakyReLU(0.2) -> Linear(bias)
        h1 = jnp.dot(kr, wh1_ref[...], preferred_element_type=f32)
        h1 = jnp.where(h1 > 0, h1, 0.2 * h1)
        w_edge = jnp.dot(h1, wh2_ref[...], preferred_element_type=f32) + bh2_ref[...]  # [Ep, cp]

        # PyG softmax grouped by SOURCE node.  Global per-column max stabilizer
        # (shift-invariant per group); group sums/gathers are one-hot matmuls.
        gmax = jnp.max(w_edge, axis=0, keepdims=True)                       # [1, cp]
        ex = jnp.exp(w_edge - gmax)                                         # [Ep, cp]
        gsum = jnp.dot(ST, ex.astype(bf16), preferred_element_type=f32)     # [Np, cp]
        inv = pl.reciprocal(gsum + 1e-16, approx=True)                      # [Np, cp]
        inv_e = jnp.dot(S, inv.astype(bf16), preferred_element_type=f32)    # gather per edge
        alpha = ex * inv_e                                                  # [Ep, cp]

        # gather source features, weight per head (128-aligned slabs), scatter-add to dst
        xg = jnp.dot(S, xw.astype(bf16), preferred_element_type=f32)        # [Ep, heads*cp]
        agg_parts = []
        for h in range(heads):
            msg_h = alpha * xg[:, h * cp:(h + 1) * cp]                      # [Ep, cp]
            agg_parts.append(jnp.dot(DT, msg_h.astype(bf16),
                                     preferred_element_type=f32))           # [Np, cp]
        if concat:
            agg = agg_parts[0] if heads == 1 else jnp.concatenate(agg_parts, axis=1)
        else:
            agg = agg_parts[0]
            for h in range(1, heads):
                agg = agg + agg_parts[h]
            if heads > 1:
                agg = agg * (1.0 / heads)
        out = agg + bias_ref[...]

        # ham node MLP (f32): Linear(no bias) -> LeakyReLU(0.2) -> Linear(bias),
        # then outer F.leaky_relu (slope 0.01), scaled by alpha_hp.
        p1 = jnp.dot(ep, wp1_ref[...], preferred_element_type=f32)
        p1 = jnp.where(p1 > 0, p1, 0.2 * p1)
        p = jnp.dot(p1, wp2_ref[...], preferred_element_type=f32) + bp2_ref[...]
        p = jnp.where(p > 0, p, 0.01 * p)
        return out + alpha_hp * p

    # conv1 (heads, concat=True) followed by ReLU (Net)
    h = one_conv(x_ref[...], wl1_ref, wh1_1_ref, wh2_1_ref, bh2_1_ref,
                 wp1_1_ref, wp2_1_ref, bp2_1_ref, bias1_ref,
                 heads1, cp1, True)
    h = jnp.maximum(h, 0.0)

    # conv2 (heads=1, concat=False) followed by log_softmax over the real classes (Net)
    o = one_conv(h, wl2_ref, wh1_2_ref, wh2_2_ref, bh2_2_ref,
                 wp1_2_ref, wp2_2_ref, bp2_2_ref, bias2_ref,
                 1, cp2, False)
    cls = jax.lax.broadcasted_iota(jnp.int32, (1, cp2), 1)
    logits = jnp.where(cls < num_classes, o, -1e30)                         # mask padded cols
    m = jnp.max(logits, axis=1, keepdims=True)
    z = logits - m
    lse = jnp.log(jnp.sum(jnp.exp(z), axis=1, keepdims=True))
    out_ref[...] = (z - lse).astype(out_ref.dtype)


def gat_net_forward(x, S, D, k_ricci, e_poinc, conv1_p, conv2_p, *,
                    heads, num_hidden, num_classes, alpha_hp=1.0):
    """x:[N,F] f32, S/D:[E,N] 0/1 one-hot (src/dst) f32, k_ricci:[E,K], e_poinc:[N,P]."""
    N, F = x.shape
    E = S.shape[0]
    K = k_ricci.shape[1]
    P = e_poinc.shape[1]
    H1, C1, C2 = heads, num_hidden, num_classes

    Np, Ep = _rup(N, LANE), _rup(E, LANE)
    Fp, Kp, Pp = _rup(F, LANE), _rup(K, LANE), _rup(P, LANE)
    Cp1, Cp2 = _rup(C1, LANE), _rup(C2, LANE)

    # ---- graph / features: pad to lane-dense shapes; incidence matrices in bf16 ----
    x_p = _pad2(x, Np, Fp).astype(jnp.float32)
    S_p = _pad2(S, Ep, Np).astype(jnp.bfloat16)
    ST_p = _pad2(S.T, Np, Ep).astype(jnp.bfloat16)
    DT_p = _pad2(D.T, Np, Ep).astype(jnp.bfloat16)
    kr_p = _pad2(k_ricci, Ep, Kp).astype(jnp.float32)
    ep_p = _pad2(e_poinc, Np, Pp).astype(jnp.float32)

    # ---- conv1 params (head-blocked padded layout: head h -> cols [h*Cp1, h*Cp1+C1)) ----
    p1 = conv1_p
    wl1 = _pad2(_head_block_cols(p1['w_lin'], H1, C1, Cp1), Fp, H1 * Cp1).astype(jnp.bfloat16)
    wh1_1 = _pad2(p1['wh1'], Kp, Cp1)
    wh2_1 = _pad2(p1['wh2'], Cp1, Cp1)
    bh2_1 = _pad2(p1['bh2'], 1, Cp1)
    wp1_1 = _pad2(_head_block_cols(p1['wp1'], H1, C1, Cp1), Pp, H1 * Cp1)
    wp2_1 = _head_block_rows(_head_block_cols(p1['wp2'], H1, C1, Cp1), H1, C1, Cp1)
    bp2_1 = _head_block_cols(p1['bp2'], H1, C1, Cp1)
    bias1 = _head_block_cols(p1['bias'], H1, C1, Cp1)

    # ---- conv2 params (input rows follow conv1's head-blocked layout) ----
    p2 = conv2_p
    wl2 = _pad2(_head_block_rows(p2['w_lin'], H1, C1, Cp1), H1 * Cp1, Cp2).astype(jnp.bfloat16)
    wh1_2 = _pad2(p2['wh1'], Kp, Cp2)
    wh2_2 = _pad2(p2['wh2'], Cp2, Cp2)
    bh2_2 = _pad2(p2['bh2'], 1, Cp2)
    wp1_2 = _pad2(p2['wp1'], Pp, Cp2)
    wp2_2 = _pad2(p2['wp2'], Cp2, Cp2)
    bp2_2 = _pad2(p2['bp2'], 1, Cp2)
    bias2 = _pad2(p2['bias'], 1, Cp2)

    inputs = (x_p, S_p, ST_p, DT_p, kr_p, ep_p,
              wl1, wh1_1, wh2_1, bh2_1, wp1_1, wp2_1, bp2_1, bias1,
              wl2, wh1_2, wh2_2, bh2_2, wp1_2, wp2_2, bp2_2, bias2)

    kernel = functools.partial(
        _fused_gat_net_kernel, heads1=H1, cp1=Cp1, cp2=Cp2,
        num_classes=C2, alpha_hp=float(alpha_hp))

    # ---- VMEM budget + cost estimate ----
    in_bytes = sum(int(a.size) * a.dtype.itemsize for a in inputs)
    out_bytes = Np * Cp2 * 4
    scratch_est = 12 * Ep * max(H1 * Cp1, Cp2) * 4           # xw/xg/alpha/msg/... f32 slabs
    vmem_limit = int(min(96 * 1024 * 1024,
                         max(32 * 1024 * 1024, 2 * (in_bytes + out_bytes) + scratch_est)))

    def mm(m, k, n):
        return 2 * m * k * n
    flops = (mm(Np, Fp, H1 * Cp1) + mm(Ep, Kp, Cp1) + mm(Ep, Cp1, Cp1)
             + 2 * mm(Ep, Np, Cp1) + mm(Ep, Np, H1 * Cp1) + H1 * mm(Np, Ep, Cp1)
             + mm(Np, Pp, H1 * Cp1) + mm(Np, H1 * Cp1, H1 * Cp1)
             + mm(Np, H1 * Cp1, Cp2) + mm(Ep, Kp, Cp2) + mm(Ep, Cp2, Cp2)
             + 3 * mm(Ep, Np, Cp2) + mm(Np, Ep, Cp2)
             + mm(Np, Pp, Cp2) + mm(Np, Cp2, Cp2))
    transcend = 2 * Ep * (Cp1 + Cp2) + 2 * Np * Cp2

    out_p = pl.pallas_call(
        kernel,
        out_shape=jax.ShapeDtypeStruct((Np, Cp2), jnp.float32),
        in_specs=[pl.BlockSpec(memory_space=pltpu.MemorySpace.VMEM)] * len(inputs),
        out_specs=pl.BlockSpec(memory_space=pltpu.MemorySpace.VMEM),
        compiler_params=pltpu.CompilerParams(vmem_limit_bytes=vmem_limit),
        cost_estimate=pl.CostEstimate(flops=int(flops), transcendentals=int(transcend),
                                      bytes_accessed=int(in_bytes + out_bytes)),
    )(*inputs)
    return out_p[:N, :C2]


if __name__ == "__main__":
    N = 8                 # nodes
    NUM_FEATURES = 16
    NUM_HIDDEN = 8
    HEADS = 2
    NUM_CLASSES = 4
    N_COMPONENTS = 6      # k_ricci feature dim (hmpnn input)
    N_COMPONENTS_P = 5    # e_poinc feature dim (ham input)

    key = jax.random.PRNGKey(0)
    keys = iter(jax.random.split(key, 32))

    def glorot_w(k, shape):
        std = (6.0 / (shape[0] + shape[1])) ** 0.5
        return jax.random.uniform(k, shape, jnp.float32, -std, std)

    def make_conv_params(in_dim, out_c, heads, concat):
        hc = heads * out_c
        bias_dim = hc if concat else out_c
        return {
            'w_lin': glorot_w(next(keys), (in_dim, hc)),            # lin_src.weight.T (shared lin_dst)
            'wh1': glorot_w(next(keys), (N_COMPONENTS, out_c)),     # hmpnn layer 0 (no bias)
            'wh2': glorot_w(next(keys), (out_c, out_c)),            # hmpnn layer 1
            'bh2': jax.random.uniform(next(keys), (1, out_c), jnp.float32, -0.1, 0.1),
            'wp1': glorot_w(next(keys), (N_COMPONENTS_P, hc)),      # ham layer 0 (no bias)
            'wp2': glorot_w(next(keys), (hc, hc)),                  # ham layer 1
            'bp2': jax.random.uniform(next(keys), (1, hc), jnp.float32, -0.1, 0.1),
            'bias': jnp.zeros((1, bias_dim), jnp.float32),          # zeros(self.bias)
        }

    conv1_p = make_conv_params(NUM_FEATURES, NUM_HIDDEN, HEADS, concat=True)
    conv2_p = make_conv_params(NUM_HIDDEN * HEADS, NUM_CLASSES, 1, concat=False)

    # graph: bidirectional ring, then add self-loops (matches remove_self_loops+add_self_loops)
    src, dst = [], []
    for i in range(N):
        src += [i, (i + 1) % N]
        dst += [(i + 1) % N, i]
    src += list(range(N))
    dst += list(range(N))
    src = jnp.array(src, jnp.int32)
    dst = jnp.array(dst, jnp.int32)
    E = int(src.shape[0])   # 24

    x = jax.random.normal(next(keys), (N, NUM_FEATURES), jnp.float32)
    k_ricci = jax.random.normal(next(keys), (E, N_COMPONENTS), jnp.float32)
    e_poinc = jax.random.normal(next(keys), (N, N_COMPONENTS_P), jnp.float32)

    S = jax.nn.one_hot(src, N, dtype=jnp.float32)    # [E, N]
    D = jax.nn.one_hot(dst, N, dtype=jnp.float32)    # [E, N]

    out = gat_net_forward(x, S, D, k_ricci, e_poinc, conv1_p, conv2_p,
                          heads=HEADS, num_hidden=NUM_HIDDEN, num_classes=NUM_CLASSES,
                          alpha_hp=1.0)
    out = jax.block_until_ready(out)

    assert out.shape == (N, NUM_CLASSES)
    assert bool(jnp.all(jnp.isfinite(out)))
    # log_softmax rows must exponentiate-sum to 1 (also validates class-column masking)
    rowsum = jnp.sum(jnp.exp(out), axis=1)
    assert bool(jnp.all(jnp.abs(rowsum - 1.0) < 1e-3))
    print("KERNEL_OK")
</pallas_src>

<mosaic_0001>
module attributes {stable_mosaic.version = 11 : i64} {
  func.func @_fused_gat_net_kernel(%arg0: memref<128x128xf32, #tpu.memory_space<vmem>>, %arg1: memref<128x128xbf16, #tpu.memory_space<vmem>>, %arg2: memref<128x128xbf16, #tpu.memory_space<vmem>>, %arg3: memref<128x128xbf16, #tpu.memory_space<vmem>>, %arg4: memref<128x128xf32, #tpu.memory_space<vmem>>, %arg5: memref<128x128xf32, #tpu.memory_space<vmem>>, %arg6: memref<128x256xbf16, #tpu.memory_space<vmem>>, %arg7: memref<128x128xf32, #tpu.memory_space<vmem>>, %arg8: memref<128x128xf32, #tpu.memory_space<vmem>>, %arg9: memref<1x128xf32, #tpu.memory_space<vmem>>, %arg10: memref<128x256xf32, #tpu.memory_space<vmem>>, %arg11: memref<256x256xf32, #tpu.memory_space<vmem>>, %arg12: memref<1x256xf32, #tpu.memory_space<vmem>>, %arg13: memref<1x256xf32, #tpu.memory_space<vmem>>, %arg14: memref<256x128xbf16, #tpu.memory_space<vmem>>, %arg15: memref<128x128xf32, #tpu.memory_space<vmem>>, %arg16: memref<128x128xf32, #tpu.memory_space<vmem>>, %arg17: memref<1x128xf32, #tpu.memory_space<vmem>>, %arg18: memref<128x128xf32, #tpu.memory_space<vmem>>, %arg19: memref<128x128xf32, #tpu.memory_space<vmem>>, %arg20: memref<1x128xf32, #tpu.memory_space<vmem>>, %arg21: memref<1x128xf32, #tpu.memory_space<vmem>>, %arg22: memref<128x128xf32, #tpu.memory_space<vmem>>) attributes {dimension_semantics = [], scalar_prefetch = 0 : i64, scratch_operands = 0 : i64, tpu.core_type = #tpu.core_type<tc>} {
    %c0 = arith.constant 0 : index
    %c0_0 = arith.constant 0 : index
    %0 = vector.load %arg1[%c0, %c0_0] : memref<128x128xbf16, #tpu.memory_space<vmem>>, vector<128x128xbf16>
    %c0_1 = arith.constant 0 : index
    %c0_2 = arith.constant 0 : index
    %1 = vector.load %arg2[%c0_1, %c0_2] : memref<128x128xbf16, #tpu.memory_space<vmem>>, vector<128x128xbf16>
    %c0_3 = arith.constant 0 : index
    %c0_4 = arith.constant 0 : index
    %2 = vector.load %arg3[%c0_3, %c0_4] : memref<128x128xbf16, #tpu.memory_space<vmem>>, vector<128x128xbf16>
    %c0_5 = arith.constant 0 : index
    %c0_6 = arith.constant 0 : index
    %3 = vector.load %arg4[%c0_5, %c0_6] : memref<128x128xf32, #tpu.memory_space<vmem>>, vector<128x128xf32>
    %c0_7 = arith.constant 0 : index
    %c0_8 = arith.constant 0 : index
    %4 = vector.load %arg5[%c0_7, %c0_8] : memref<128x128xf32, #tpu.memory_space<vmem>>, vector<128x128xf32>
    %c0_9 = arith.constant 0 : index
    %c0_10 = arith.constant 0 : index
    %5 = vector.load %arg0[%c0_9, %c0_10] : memref<128x128xf32, #tpu.memory_space<vmem>>, vector<128x128xf32>
    %6 = arith.truncf %5 : vector<128x128xf32> to vector<128x128xbf16>
    %c0_11 = arith.constant 0 : index
    %c0_12 = arith.constant 0 : index
    %7 = vector.load %arg6[%c0_11, %c0_12] : memref<128x256xbf16, #tpu.memory_space<vmem>>, vector<128x256xbf16>
    %cst = arith.constant dense<0.000000e+00> : vector<128x256xf32>
    %8 = tpu.matmul %6, %7, %cst {dimension_numbers = #tpu.dot_dimension_numbers<[1], [0], [0], [1], [0, 0, 1, 1], [], []>} : vector<128x128xbf16>, vector<128x256xbf16>, vector<128x256xf32> -> vector<128x256xf32>
    %c0_13 = arith.constant 0 : index
    %c0_14 = arith.constant 0 : index
    %9 = vector.load %arg7[%c0_13, %c0_14] : memref<128x128xf32, #tpu.memory_space<vmem>>, vector<128x128xf32>
    %cst_15 = arith.constant dense<0.000000e+00> : vector<128x128xf32>
    %10 = tpu.matmul %3, %9, %cst_15 {dimension_numbers = #tpu.dot_dimension_numbers<[1], [0], [0], [1], [0, 0, 1, 1], [], []>} : vector<128x128xf32>, vector<128x128xf32>, vector<128x128xf32> -> vector<128x128xf32>
    %cst_16 = arith.constant 0.000000e+00 : f32
    %11 = vector.broadcast %cst_16 : f32 to vector<128x128xf32>
    %12 = arith.cmpf ogt, %10, %11 : vector<128x128xf32>
    %cst_17 = arith.constant 2.000000e-01 : f32
    %13 = vector.broadcast %cst_17 : f32 to vector<128x128xf32>
    %14 = arith.mulf %13, %10 : vector<128x128xf32>
    %15 = arith.select %12, %10, %14 : vector<128x128xi1>, vector<128x128xf32>
    %c0_18 = arith.constant 0 : index
    %c0_19 = arith.constant 0 : index
    %16 = vector.load %arg8[%c0_18, %c0_19] : memref<128x128xf32, #tpu.memory_space<vmem>>, vector<128x128xf32>
    %cst_20 = arith.constant dense<0.000000e+00> : vector<128x128xf32>
    %17 = tpu.matmul %15, %16, %cst_20 {dimension_numbers = #tpu.dot_dimension_numbers<[1], [0], [0], [1], [0, 0, 1, 1], [], []>} : vector<128x128xf32>, vector<128x128xf32>, vector<128x128xf32> -> vector<128x128xf32>
    %c0_21 = arith.constant 0 : index
    %c0_22 = arith.constant 0 : index
    %18 = vector.load %arg9[%c0_21, %c0_22] : memref<1x128xf32, #tpu.memory_space<vmem>>, vector<1x128xf32>
    %19 = vector.broadcast %18 : vector<1x128xf32> to vector<128x128xf32>
    %20 = arith.addf %17, %19 : vector<128x128xf32>
    %cst_23 = arith.constant dense<0xFF800000> : vector<128xf32>
    %21 = vector.multi_reduction <maximumf>, %20, %cst_23 [0] : vector<128x128xf32> to vector<128xf32>
    %22 = vector.shape_cast %21 : vector<128xf32> to vector<1x128xf32>
    %23 = vector.broadcast %22 : vector<1x128xf32> to vector<128x128xf32>
    %24 = arith.subf %20, %23 : vector<128x128xf32>
    %25 = math.exp %24 : vector<128x128xf32>
    %26 = arith.truncf %25 : vector<128x128xf32> to vector<128x128xbf16>
    %cst_24 = arith.constant dense<0.000000e+00> : vector<128x128xf32>
    %27 = tpu.matmul %1, %26, %cst_24 {dimension_numbers = #tpu.dot_dimension_numbers<[1], [0], [0], [1], [0, 0, 1, 1], [], []>} : vector<128x128xbf16>, vector<128x128xbf16>, vector<128x128xf32> -> vector<128x128xf32>
    %cst_25 = arith.constant 1.000000e-16 : f32
    %28 = vector.broadcast %cst_25 : f32 to vector<128x128xf32>
    %29 = arith.addf %27, %28 : vector<128x128xf32>
    %30 = tpu.reciprocal %29 {approx = true} : vector<128x128xf32> -> vector<128x128xf32>
    %31 = arith.truncf %30 : vector<128x128xf32> to vector<128x128xbf16>
    %cst_26 = arith.constant dense<0.000000e+00> : vector<128x128xf32>
    %32 = tpu.matmul %0, %31, %cst_26 {dimension_numbers = #tpu.dot_dimension_numbers<[1], [0], [0], [1], [0, 0, 1, 1], [], []>} : vector<128x128xbf16>, vector<128x128xbf16>, vector<128x128xf32> -> vector<128x128xf32>
    %33 = arith.mulf %25, %32 : vector<128x128xf32>
    %34 = arith.truncf %8 : vector<128x256xf32> to vector<128x256xbf16>
    %cst_27 = arith.constant dense<0.000000e+00> : vector<128x256xf32>
    %35 = tpu.matmul %0, %34, %cst_27 {dimension_numbers = #tpu.dot_dimension_numbers<[1], [0], [0], [1], [0, 0, 1, 1], [], []>} : vector<128x128xbf16>, vector<128x256xbf16>, vector<128x256xf32> -> vector<128x256xf32>
    %36 = vector.extract_strided_slice %35 {offsets = [0, 0], sizes = [128, 128], strides = [1, 1]} : vector<128x256xf32> to vector<128x128xf32>
    %37 = arith.mulf %33, %36 : vector<128x128xf32>
    %38 = arith.truncf %37 : vector<128x128xf32> to vector<128x128xbf16>
    %cst_28 = arith.constant dense<0.000000e+00> : vector<128x128xf32>
    %39 = tpu.matmul %2, %38, %cst_28 {dimension_numbers = #tpu.dot_dimension_numbers<[1], [0], [0], [1], [0, 0, 1, 1], [], []>} : vector<128x128xbf16>, vector<128x128xbf16>, vector<128x128xf32> -> vector<128x128xf32>
    %40 = vector.extract_strided_slice %35 {offsets = [0, 128], sizes = [128, 128], strides = [1, 1]} : vector<128x256xf32> to vector<128x128xf32>
    %41 = arith.mulf %33, %40 : vector<128x128xf32>
    %42 = arith.truncf %41 : vector<128x128xf32> to vector<128x128xbf16>
    %cst_29 = arith.constant dense<0.000000e+00> : vector<128x128xf32>
    %43 = tpu.matmul %2, %42, %cst_29 {dimension_numbers = #tpu.dot_dimension_numbers<[1], [0], [0], [1], [0, 0, 1, 1], [], []>} : vector<128x128xbf16>, vector<128x128xbf16>, vector<128x128xf32> -> vector<128x128xf32>
    %44 = tpu.concatenate %39, %43 in 1 : vector<128x128xf32>, vector<128x128xf32> -> vector<128x256xf32>
    %c0_30 = arith.constant 0 : index
    %c0_31 = arith.constant 0 : index
    %45 = vector.load %arg13[%c0_30, %c0_31] : memref<1x256xf32, #tpu.memory_space<vmem>>, vector<1x256xf32>
    %46 = vector.broadcast %45 : vector<1x256xf32> to vector<128x256xf32>
    %47 = arith.addf %44, %46 : vector<128x256xf32>
    %c0_32 = arith.constant 0 : index
    %c0_33 = arith.constant 0 : index
    %48 = vector.load %arg10[%c0_32, %c0_33] : memref<128x256xf32, #tpu.memory_space<vmem>>, vector<128x256xf32>
    %cst_34 = arith.constant dense<0.000000e+00> : vector<128x256xf32>
    %49 = tpu.matmul %4, %48, %cst_34 {dimension_numbers = #tpu.dot_dimension_numbers<[1], [0], [0], [1], [0, 0, 1, 1], [], []>} : vector<128x128xf32>, vector<128x256xf32>, vector<128x256xf32> -> vector<128x256xf32>
    %cst_35 = arith.constant 0.000000e+00 : f32
    %50 = vector.broadcast %cst_35 : f32 to vector<128x256xf32>
    %51 = arith.cmpf ogt, %49, %50 : vector<128x256xf32>
    %cst_36 = arith.constant 2.000000e-01 : f32
    %52 = vector.broadcast %cst_36 : f32 to vector<128x256xf32>
    %53 = arith.mulf %52, %49 : vector<128x256xf32>
    %54 = arith.select %51, %49, %53 : vector<128x256xi1>, vector<128x256xf32>
    %c0_37 = arith.constant 0 : index
    %c0_38 = arith.constant 0 : index
    %55 = vector.load %arg11[%c0_37, %c0_38] : memref<256x256xf32, #tpu.memory_space<vmem>>, vector<256x256xf32>
    %cst_39 = arith.constant dense<0.000000e+00> : vector<128x256xf32>
    %56 = tpu.matmul %54, %55, %cst_39 {dimension_numbers = #tpu.dot_dimension_numbers<[1], [0], [0], [1], [0, 0, 1, 1], [], []>} : vector<128x256xf32>, vector<256x256xf32>, vector<128x256xf32> -> vector<128x256xf32>
    %c0_40 = arith.constant 0 : index
    %c0_41 = arith.constant 0 : index
    %57 = vector.load %arg12[%c0_40, %c0_41] : memref<1x256xf32, #tpu.memory_space<vmem>>, vector<1x256xf32>
    %58 = vector.broadcast %57 : vector<1x256xf32> to vector<128x256xf32>
    %59 = arith.addf %56, %58 : vector<128x256xf32>
    %cst_42 = arith.constant 0.000000e+00 : f32
    %60 = vector.broadcast %cst_42 : f32 to vector<128x256xf32>
    %61 = arith.cmpf ogt, %59, %60 : vector<128x256xf32>
    %cst_43 = arith.constant 0.00999999977 : f32
    %62 = vector.broadcast %cst_43 : f32 to vector<128x256xf32>
    %63 = arith.mulf %62, %59 : vector<128x256xf32>
    %64 = arith.select %61, %59, %63 : vector<128x256xi1>, vector<128x256xf32>
    %cst_44 = arith.constant 1.000000e+00 : f32
    %65 = vector.broadcast %cst_44 : f32 to vector<128x256xf32>
    %66 = arith.mulf %65, %64 : vector<128x256xf32>
    %67 = arith.addf %47, %66 : vector<128x256xf32>
    %cst_45 = arith.constant 0.000000e+00 : f32
    %68 = vector.broadcast %cst_45 : f32 to vector<128x256xf32>
    %69 = arith.maximumf %67, %68 : vector<128x256xf32>
    %70 = arith.truncf %69 : vector<128x256xf32> to vector<128x256xbf16>
    %c0_46 = arith.constant 0 : index
    %c0_47 = arith.constant 0 : index
    %71 = vector.load %arg14[%c0_46, %c0_47] : memref<256x128xbf16, #tpu.memory_space<vmem>>, vector<256x128xbf16>
    %cst_48 = arith.constant dense<0.000000e+00> : vector<128x128xf32>
    %72 = tpu.matmul %70, %71, %cst_48 {dimension_numbers = #tpu.dot_dimension_numbers<[1], [0], [0], [1], [0, 0, 1, 1], [], []>} : vector<128x256xbf16>, vector<256x128xbf16>, vector<128x128xf32> -> vector<128x128xf32>
    %c0_49 = arith.constant 0 : index
    %c0_50 = arith.constant 0 : index
    %73 = vector.load %arg15[%c0_49, %c0_50] : memref<128x128xf32, #tpu.memory_space<vmem>>, vector<128x128xf32>
    %cst_51 = arith.constant dense<0.000000e+00> : vector<128x128xf32>
    %74 = tpu.matmul %3, %73, %cst_51 {dimension_numbers = #tpu.dot_dimension_numbers<[1], [0], [0], [1], [0, 0, 1, 1], [], []>} : vector<128x128xf32>, vector<128x128xf32>, vector<128x128xf32> -> vector<128x128xf32>
    %cst_52 = arith.constant 0.000000e+00 : f32
    %75 = vector.broadcast %cst_52 : f32 to vector<128x128xf32>
    %76 = arith.cmpf ogt, %74, %75 : vector<128x128xf32>
    %cst_53 = arith.constant 2.000000e-01 : f32
    %77 = vector.broadcast %cst_53 : f32 to vector<128x128xf32>
    %78 = arith.mulf %77, %74 : vector<128x128xf32>
    %79 = arith.select %76, %74, %78 : vector<128x128xi1>, vector<128x128xf32>
    %c0_54 = arith.constant 0 : index
    %c0_55 = arith.constant 0 : index
    %80 = vector.load %arg16[%c0_54, %c0_55] : memref<128x128xf32, #tpu.memory_space<vmem>>, vector<128x128xf32>
    %cst_56 = arith.constant dense<0.000000e+00> : vector<128x128xf32>
    %81 = tpu.matmul %79, %80, %cst_56 {dimension_numbers = #tpu.dot_dimension_numbers<[1], [0], [0], [1], [0, 0, 1, 1], [], []>} : vector<128x128xf32>, vector<128x128xf32>, vector<128x128xf32> -> vector<128x128xf32>
    %c0_57 = arith.constant 0 : index
    %c0_58 = arith.constant 0 : index
    %82 = vector.load %arg17[%c0_57, %c0_58] : memref<1x128xf32, #tpu.memory_space<vmem>>, vector<1x128xf32>
    %83 = vector.broadcast %82 : vector<1x128xf32> to vector<128x128xf32>
    %84 = arith.addf %81, %83 : vector<128x128xf32>
    %cst_59 = arith.constant dense<0xFF800000> : vector<128xf32>
    %85 = vector.multi_reduction <maximumf>, %84, %cst_59 [0] : vector<128x128xf32> to vector<128xf32>
    %86 = vector.shape_cast %85 : vector<128xf32> to vector<1x128xf32>
    %87 = vector.broadcast %86 : vector<1x128xf32> to vector<128x128xf32>
    %88 = arith.subf %84, %87 : vector<128x128xf32>
    %89 = math.exp %88 : vector<128x128xf32>
    %90 = arith.truncf %89 : vector<128x128xf32> to vector<128x128xbf16>
    %cst_60 = arith.constant dense<0.000000e+00> : vector<128x128xf32>
    %91 = tpu.matmul %1, %90, %cst_60 {dimension_numbers = #tpu.dot_dimension_numbers<[1], [0], [0], [1], [0, 0, 1, 1], [], []>} : vector<128x128xbf16>, vector<128x128xbf16>, vector<128x128xf32> -> vector<128x128xf32>
    %cst_61 = arith.constant 1.000000e-16 : f32
    %92 = vector.broadcast %cst_61 : f32 to vector<128x128xf32>
    %93 = arith.addf %91, %92 : vector<128x128xf32>
    %94 = tpu.reciprocal %93 {approx = true} : vector<128x128xf32> -> vector<128x128xf32>
    %95 = arith.truncf %94 : vector<128x128xf32> to vector<128x128xbf16>
    %cst_62 = arith.constant dense<0.000000e+00> : vector<128x128xf32>
    %96 = tpu.matmul %0, %95, %cst_62 {dimension_numbers = #tpu.dot_dimension_numbers<[1], [0], [0], [1], [0, 0, 1, 1], [], []>} : vector<128x128xbf16>, vector<128x128xbf16>, vector<128x128xf32> -> vector<128x128xf32>
    %97 = arith.mulf %89, %96 : vector<128x128xf32>
    %98 = arith.truncf %72 : vector<128x128xf32> to vector<128x128xbf16>
    %cst_63 = arith.constant dense<0.000000e+00> : vector<128x128xf32>
    %99 = tpu.matmul %0, %98, %cst_63 {dimension_numbers = #tpu.dot_dimension_numbers<[1], [0], [0], [1], [0, 0, 1, 1], [], []>} : vector<128x128xbf16>, vector<128x128xbf16>, vector<128x128xf32> -> vector<128x128xf32>
    %100 = arith.mulf %97, %99 : vector<128x128xf32>
    %101 = arith.truncf %100 : vector<128x128xf32> to vector<128x128xbf16>
    %cst_64 = arith.constant dense<0.000000e+00> : vector<128x128xf32>
    %102 = tpu.matmul %2, %101, %cst_64 {dimension_numbers = #tpu.dot_dimension_numbers<[1], [0], [0], [1], [0, 0, 1, 1], [], []>} : vector<128x128xbf16>, vector<128x128xbf16>, vector<128x128xf32> -> vector<128x128xf32>
    %c0_65 = arith.constant 0 : index
    %c0_66 = arith.constant 0 : index
    %103 = vector.load %arg21[%c0_65, %c0_66] : memref<1x128xf32, #tpu.memory_space<vmem>>, vector<1x128xf32>
    %104 = vector.broadcast %103 : vector<1x128xf32> to vector<128x128xf32>
    %105 = arith.addf %102, %104 : vector<128x128xf32>
    %c0_67 = arith.constant 0 : index
    %c0_68 = arith.constant 0 : index
    %106 = vector.load %arg18[%c0_67, %c0_68] : memref<128x128xf32, #tpu.memory_space<vmem>>, vector<128x128xf32>
    %cst_69 = arith.constant dense<0.000000e+00> : vector<128x128xf32>
    %107 = tpu.matmul %4, %106, %cst_69 {dimension_numbers = #tpu.dot_dimension_numbers<[1], [0], [0], [1], [0, 0, 1, 1], [], []>} : vector<128x128xf32>, vector<128x128xf32>, vector<128x128xf32> -> vector<128x128xf32>
    %cst_70 = arith.constant 0.000000e+00 : f32
    %108 = vector.broadcast %cst_70 : f32 to vector<128x128xf32>
    %109 = arith.cmpf ogt, %107, %108 : vector<128x128xf32>
    %cst_71 = arith.constant 2.000000e-01 : f32
    %110 = vector.broadcast %cst_71 : f32 to vector<128x128xf32>
    %111 = arith.mulf %110, %107 : vector<128x128xf32>
    %112 = arith.select %109, %107, %111 : vector<128x128xi1>, vector<128x128xf32>
    %c0_72 = arith.constant 0 : index
    %c0_73 = arith.constant 0 : index
    %113 = vector.load %arg19[%c0_72, %c0_73] : memref<128x128xf32, #tpu.memory_space<vmem>>, vector<128x128xf32>
    %cst_74 = arith.constant dense<0.000000e+00> : vector<128x128xf32>
    %114 = tpu.matmul %112, %113, %cst_74 {dimension_numbers = #tpu.dot_dimension_numbers<[1], [0], [0], [1], [0, 0, 1, 1], [], []>} : vector<128x128xf32>, vector<128x128xf32>, vector<128x128xf32> -> vector<128x128xf32>
    %c0_75 = arith.constant 0 : index
    %c0_76 = arith.constant 0 : index
    %115 = vector.load %arg20[%c0_75, %c0_76] : memref<1x128xf32, #tpu.memory_space<vmem>>, vector<1x128xf32>
    %116 = vector.broadcast %115 : vector<1x128xf32> to vector<128x128xf32>
    %117 = arith.addf %114, %116 : vector<128x128xf32>
    %cst_77 = arith.constant 0.000000e+00 : f32
    %118 = vector.broadcast %cst_77 : f32 to vector<128x128xf32>
    %119 = arith.cmpf ogt, %117, %118 : vector<128x128xf32>
    %cst_78 = arith.constant 0.00999999977 : f32
    %120 = vector.broadcast %cst_78 : f32 to vector<128x128xf32>
    %121 = arith.mulf %120, %117 : vector<128x128xf32>
    %122 = arith.select %119, %117, %121 : vector<128x128xi1>, vector<128x128xf32>
    %cst_79 = arith.constant 1.000000e+00 : f32
    %123 = vector.broadcast %cst_79 : f32 to vector<128x128xf32>
    %124 = arith.mulf %123, %122 : vector<128x128xf32>
    %125 = arith.addf %105, %124 : vector<128x128xf32>
    %126 = tpu.iota {dimensions = array<i32: 1>} : vector<1x128xi32>
    %c4_i32 = arith.constant 4 : i32
    %127 = vector.broadcast %c4_i32 : i32 to vector<1x128xi32>
    %128 = arith.cmpi slt, %126, %127 : vector<1x128xi32>
    %cst_80 = arith.constant -1.000000e+30 : f32
    %129 = vector.shape_cast %128 : vector<1x128xi1> to vector<1x128xi1>
    %130 = vector.broadcast %129 : vector<1x128xi1> to vector<128x128xi1>
    %131 = vector.broadcast %cst_80 : f32 to vector<128x128xf32>
    %132 = arith.select %130, %125, %131 : vector<128x128xi1>, vector<128x128xf32>
    %cst_81 = arith.constant dense<0xFF800000> : vector<128xf32>
    %133 = vector.multi_reduction <maximumf>, %132, %cst_81 [1] : vector<128x128xf32> to vector<128xf32>
    %134 = vector.shape_cast %133 : vector<128xf32> to vector<128x1xf32>
    %135 = vector.broadcast %134 : vector<128x1xf32> to vector<128x128xf32>
    %136 = arith.subf %132, %135 : vector<128x128xf32>
    %137 = math.exp %136 : vector<128x128xf32>
    %cst_82 = arith.constant dense<0.000000e+00> : vector<128xf32>
    %138 = vector.multi_reduction <add>, %137, %cst_82 [1] : vector<128x128xf32> to vector<128xf32>
    %139 = vector.shape_cast %138 : vector<128xf32> to vector<128x1xf32>
    %140 = math.log %139 : vector<128x1xf32>
    %141 = vector.broadcast %140 : vector<128x1xf32> to vector<128x128xf32>
    %142 = arith.subf %136, %141 : vector<128x128xf32>
    %c0_83 = arith.constant 0 : index
    %c0_84 = arith.constant 0 : index
    %143 = vector.load %arg22[%c0_83, %c0_84] : memref<128x128xf32, #tpu.memory_space<vmem>>, vector<128x128xf32>
    tpu.vector_store %arg22[%c0_83, %c0_84], %142 {strides = array<i32>} : memref<128x128xf32, #tpu.memory_space<vmem>>, vector<128x128xf32>,
    return
  }
}

</mosaic_0001>

<llo_original>
// kernel: tpu_custom_call.1
$region0: #{tpu_custom_call.1}
  #allocation0 [shape = 'u32[]', space=smem, size = 0x4, offset = 0x4, fixed_abs, tag = 'smem constant byte address 0x4 - core index']
  #allocation1 [shape = 'u32[144,128]{1,0:T(1,128)}', space=vmem, size = 0x12000, scoped, tag = 'internal scratch']
  %s0 = inlined_call_operand.hbm [shape: f32[128,128], index: 0, kind: input, shape index: {}]
  %s1 = inlined_call_operand.hbm [shape: bf16[128,128], index: 1, kind: input, shape index: {}]
  %s2 = inlined_call_operand.hbm [shape: bf16[128,128], index: 2, kind: input, shape index: {}]
  %s3 = inlined_call_operand.hbm [shape: bf16[128,128], index: 3, kind: input, shape index: {}]
  %s4 = inlined_call_operand.hbm [shape: f32[128,128], index: 4, kind: input, shape index: {}]
  %s5 = inlined_call_operand.hbm [shape: f32[128,128], index: 5, kind: input, shape index: {}]
  %s6 = inlined_call_operand.hbm [shape: bf16[128,256], index: 6, kind: input, shape index: {}]
  %s7 = inlined_call_operand.hbm [shape: f32[128,128], index: 7, kind: input, shape index: {}]
  %s8 = inlined_call_operand.hbm [shape: f32[128,128], index: 8, kind: input, shape index: {}]
  %s9 = inlined_call_operand.vmem [shape: f32[1,128], index: 9, kind: input, shape index: {}]
  %s10 = inlined_call_operand.hbm [shape: f32[128,256], index: 10, kind: input, shape index: {}]
  %s11 = inlined_call_operand.hbm [shape: f32[256,256], index: 11, kind: input, shape index: {}]
  %s12 = inlined_call_operand.vmem [shape: f32[1,256], index: 12, kind: input, shape index: {}]
  %s13 = inlined_call_operand.vmem [shape: f32[1,256], index: 13, kind: input, shape index: {}]
  %s14 = inlined_call_operand.hbm [shape: bf16[256,128], index: 14, kind: input, shape index: {}]
  %s15 = inlined_call_operand.hbm [shape: f32[128,128], index: 15, kind: input, shape index: {}]
  %s16 = inlined_call_operand.hbm [shape: f32[128,128], index: 16, kind: input, shape index: {}]
  %s17 = inlined_call_operand.vmem [shape: f32[1,128], index: 17, kind: input, shape index: {}]
  %s18 = inlined_call_operand.hbm [shape: f32[128,128], index: 18, kind: input, shape index: {}]
  %s19 = inlined_call_operand.hbm [shape: f32[128,128], index: 19, kind: input, shape index: {}]
  %s20 = inlined_call_operand.vmem [shape: f32[1,128], index: 20, kind: input, shape index: {}]
  %s21 = inlined_call_operand.vmem [shape: f32[1,128], index: 21, kind: input, shape index: {}]
  %s22 = inlined_call_operand.hbm [shape: f32[128,128], index: 22, kind: output, shape index: {}]
  %s23 = sld [smem:[#allocation0]]
  $region162: #{tpu_custom_call.1} parent=0
    _
  %s25 = ssub.s32 1, %s23
  %s26 = scalar_select 0, %s25, %s23
  $region1: #{tpu_custom_call.1} parent=0
    #allocation2 [shape = 'u8[65536]{0}', space=vmem, size = 0x10000, scoped, tag = 'input window, operand 0, single buffered']
    #allocation3 [shape = 's32[1]{0}', space=sflag, size = 0x4, scoped, tag = 'scoped memory for tpu_custom_call.1']
    #allocation4 [shape = 's32[1]{0}', space=sflag, size = 0x4, scoped, tag = 'scoped memory for tpu_custom_call.1']
    #allocation5 [shape = 'u8[32768]{0}', space=vmem, size = 0x8000, scoped, tag = 'input window, operand 1, single buffered']
    #allocation6 [shape = 's32[1]{0}', space=sflag, size = 0x4, scoped, tag = 'scoped memory for tpu_custom_call.1']
    #allocation7 [shape = 'u8[32768]{0}', space=vmem, size = 0x8000, scoped, tag = 'input window, operand 2, single buffered']
    #allocation8 [shape = 'u8[32768]{0}', space=vmem, size = 0x8000, scoped, tag = 'input window, operand 3, single buffered']
    #allocation9 [shape = 's32[1]{0}', space=sflag, size = 0x4, scoped, tag = 'scoped memory for tpu_custom_call.1']
    #allocation10 [shape = 'u8[65536]{0}', space=vmem, size = 0x10000, scoped, tag = 'input window, operand 4, single buffered']
    #allocation11 [shape = 'u8[65536]{0}', space=vmem, size = 0x10000, scoped, tag = 'input window, operand 5, single buffered']
    #allocation12 [shape = 's32[1]{0}', space=sflag, size = 0x4, scoped, tag = 'scoped memory for tpu_custom_call.1']
    #allocation13 [shape = 'u8[65536]{0}', space=vmem, size = 0x10000, scoped, tag = 'input window, operand 6, single buffered']
    #allocation14 [shape = 'u8[65536]{0}', space=vmem, size = 0x10000, scoped, tag = 'input window, operand 7, single buffered']
    #allocation15 [shape = 's32[1]{0}', space=sflag, size = 0x4, scoped, tag = 'scoped memory for tpu_custom_call.1']
    #allocation16 [shape = 'u8[65536]{0}', space=vmem, size = 0x10000, scoped, tag = 'input window, operand 8, single buffered']
    #allocation17 [shape = 'u8[131072]{0}', space=vmem, size = 0x20000, scoped, tag = 'input window, operand 10, single buffered']
    #allocation18 [shape = 's32[1]{0}', space=sflag, size = 0x4, scoped, tag = 'scoped memory for tpu_custom_call.1']
    #allocation19 [shape = 'u8[262144]{0}', space=vmem, size = 0x40000, scoped, tag = 'input window, operand 11, single buffered']
    #allocation20 [shape = 'u8[65536]{0}', space=vmem, size = 0x10000, scoped, tag = 'input window, operand 14, single buffered']
    #allocation21 [shape = 's32[1]{0}', space=sflag, size = 0x4, scoped, tag = 'scoped memory for tpu_custom_call.1']
    #allocation22 [shape = 'u8[65536]{0}', space=vmem, size = 0x10000, scoped, tag = 'input window, operand 15, single buffered']
    #allocation23 [shape = 'u8[65536]{0}', space=vmem, size = 0x10000, scoped, tag = 'input window, operand 16, single buffered']
    #allocation24 [shape = 's32[1]{0}', space=sflag, size = 0x4, scoped, tag = 'scoped memory for tpu_custom_call.1']
    #allocation25 [shape = 'u8[65536]{0}', space=vmem, size = 0x10000, scoped, tag = 'input window, operand 18, single buffered']
    #allocation26 [shape = 'u8[65536]{0}', space=vmem, size = 0x10000, scoped, tag = 'input window, operand 19, single buffered']
    #allocation27 [shape = 's32[1]{0}', space=sflag, size = 0x4, scoped, tag = 'scoped memory for tpu_custom_call.1']
    #allocation28 [shape = 'u8[65536]{0}', space=vmem, size = 0x10000, scoped, tag = 'output window, operand 0, single buffered']
    %27 = vsyncpa [#allocation3], 0
    %28 = vsyncpa [#allocation6], 0
    %29 = vsyncpa [#allocation9], 0
    %30 = vsyncpa [#allocation12], 0
    %31 = vsyncpa [#allocation15], 0
    %32 = vsyncpa [#allocation18], 0
    %33 = vsyncpa [#allocation21], 0
    %34 = vsyncpa [#allocation24], 0
    %35 = vsyncpa [#allocation27], 0
    %36 = vsyncpa [#allocation4], 0
    // Predicated region
    $region2: #{tpu_custom_call.1} parent=1 // pred_check
      _
    $region3: #{tpu_custom_call.1} parent=1 // pred_check_branch
      %38 = sbr.rel (0) target = $region5
    $region4: #{tpu_custom_call.1} parent=1 // pred_region
      %s40 = ssub.s32 2048, 2048
      %41 = vsyncadd [#allocation3], %s40
      %s42 = sshll.u32 [#allocation2], 4
      %s43 = int_to_ptr.vmem [resolvable:$true] %s42
      %48 = dma.hbm_to_vmem [thread:$0]  %s0, 2048, %s43, [#allocation3], 128, 128, 8
    $region5: #{tpu_custom_call.1} parent=1 // pred_fallthru
      _
    // Predicated region
    $region6: #{tpu_custom_call.1} parent=1 // pred_check
      _
    $region7: #{tpu_custom_call.1} parent=1 // pred_check_branch
      %50 = sbr.rel (0) target = $region9
    $region8: #{tpu_custom_call.1} parent=1 // pred_region
      %s52 = ssub.s32 1024, 1024
      %53 = vsyncadd [#allocation6], %s52
      %s54 = sshll.u32 [#allocation5], 4
      %s55 = int_to_ptr.vmem [resolvable:$true] %s54
      %60 = dma.hbm_to_vmem [thread:$0]  %s1, 1024, %s55, [#allocation6], 64, 64, 4
    $region9: #{tpu_custom_call.1} parent=1 // pred_fallthru
      _
    // Predicated region
    $region10: #{tpu_custom_call.1} parent=1 // pred_check
      _
    $region11: #{tpu_custom_call.1} parent=1 // pred_check_branch
      %62 = sbr.rel (0) target = $region13
    $region12: #{tpu_custom_call.1} parent=1 // pred_region
      %s64 = ssub.s32 1024, 1024
      %65 = vsyncadd [#allocation6], %s64
      %s66 = sshll.u32 [#allocation7], 4
      %s67 = int_to_ptr.vmem [resolvable:$true] %s66
      %72 = dma.hbm_to_vmem [thread:$0]  %s2, 1024, %s67, [#allocation6], 64, 64, 4
    $region13: #{tpu_custom_call.1} parent=1 // pred_fallthru
      _
    // Predicated region
    $region14: #{tpu_custom_call.1} parent=1 // pred_check
      _
    $region15: #{tpu_custom_call.1} parent=1 // pred_check_branch
      %74 = sbr.rel (0) target = $region17
    $region16: #{tpu_custom_call.1} parent=1 // pred_region
      %s76 = ssub.s32 1024, 1024
      %77 = vsyncadd [#allocation9], %s76
      %s78 = sshll.u32 [#allocation8], 4
      %s79 = int_to_ptr.vmem [resolvable:$true] %s78
      %84 = dma.hbm_to_vmem [thread:$0]  %s3, 1024, %s79, [#allocation9], 64, 64, 4
    $region17: #{tpu_custom_call.1} parent=1 // pred_fallthru
      _
    // Predicated region
    $region18: #{tpu_custom_call.1} parent=1 // pred_check
      _
    $region19: #{tpu_custom_call.1} parent=1 // pred_check_branch
      %86 = sbr.rel (0) target = $region21
    $region20: #{tpu_custom_call.1} parent=1 // pred_region
      %s88 = ssub.s32 2048, 2048
      %89 = vsyncadd [#allocation9], %s88
      %s90 = sshll.u32 [#allocation10], 4
      %s91 = int_to_ptr.vmem [resolvable:$true] %s90
      %96 = dma.hbm_to_vmem [thread:$0]  %s4, 2048, %s91, [#allocation9], 128, 128, 8
    $region21: #{tpu_custom_call.1} parent=1 // pred_fallthru
      _
    // Predicated region
    $region22: #{tpu_custom_call.1} parent=1 // pred_check
      _
    $region23: #{tpu_custom_call.1} parent=1 // pred_check_branch
      %98 = sbr.rel (0) target = $region25
    $region24: #{tpu_custom_call.1} parent=1 // pred_region
      %s100 = ssub.s32 2048, 2048
      %101 = vsyncadd [#allocation12], %s100
      %s102 = sshll.u32 [#allocation11], 4
      %s103 = int_to_ptr.vmem [resolvable:$true] %s102
      %108 = dma.hbm_to_vmem [thread:$0]  %s5, 2048, %s103, [#allocation12], 128, 128, 8
    $region25: #{tpu_custom_call.1} parent=1 // pred_fallthru
      _
    // Predicated region
    $region26: #{tpu_custom_call.1} parent=1 // pred_check
      _
    $region27: #{tpu_custom_call.1} parent=1 // pred_check_branch
      %110 = sbr.rel (0) target = $region29
    $region28: #{tpu_custom_call.1} parent=1 // pred_region
      %s112 = ssub.s32 2048, 2048
      %113 = vsyncadd [#allocation12], %s112
      %s114 = sshll.u32 [#allocation13], 4
      %s115 = int_to_ptr.vmem [resolvable:$true] %s114
      %120 = dma.hbm_to_vmem [thread:$0]  %s6, 2048, %s115, [#allocation12], 128, 128, 8
    $region29: #{tpu_custom_call.1} parent=1 // pred_fallthru
      _
    // Predicated region
    $region30: #{tpu_custom_call.1} parent=1 // pred_check
      _
    $region31: #{tpu_custom_call.1} parent=1 // pred_check_branch
      %122 = sbr.rel (0) target = $region33
    $region32: #{tpu_custom_call.1} parent=1 // pred_region
      %s124 = ssub.s32 2048, 2048
      %125 = vsyncadd [#allocation15], %s124
      %s126 = sshll.u32 [#allocation14], 4
      %s127 = int_to_ptr.vmem [resolvable:$true] %s126
      %132 = dma.hbm_to_vmem [thread:$0]  %s7, 2048, %s127, [#allocation15], 128, 128, 8
    $region33: #{tpu_custom_call.1} parent=1 // pred_fallthru
      _
    // Predicated region
    $region34: #{tpu_custom_call.1} parent=1 // pred_check
      _
    $region35: #{tpu_custom_call.1} parent=1 // pred_check_branch
      %134 = sbr.rel (0) target = $region37
    $region36: #{tpu_custom_call.1} parent=1 // pred_region
      %s136 = ssub.s32 2048, 2048
      %137 = vsyncadd [#allocation15], %s136
      %s138 = sshll.u32 [#allocation16], 4
      %s139 = int_to_ptr.vmem [resolvable:$true] %s138
      %144 = dma.hbm_to_vmem [thread:$0]  %s8, 2048, %s139, [#allocation15], 128, 128, 8
    $region37: #{tpu_custom_call.1} parent=1 // pred_fallthru
      _
    // Predicated region
    $region38: #{tpu_custom_call.1} parent=1 // pred_check
      _
    $region39: #{tpu_custom_call.1} parent=1 // pred_check_branch
      %146 = sbr.rel (0) target = $region41
    $region40: #{tpu_custom_call.1} parent=1 // pred_region
      _
    $region41: #{tpu_custom_call.1} parent=1 // pred_fallthru
      _
    // Predicated region
    $region42: #{tpu_custom_call.1} parent=1 // pred_check
      _
    $region43: #{tpu_custom_call.1} parent=1 // pred_check_branch
      %148 = sbr.rel (0) target = $region45
    $region44: #{tpu_custom_call.1} parent=1 // pred_region
      %s150 = ssub.s32 4096, 4096
      %151 = vsyncadd [#allocation18], %s150
      %s152 = sshll.u32 [#allocation17], 4
      %s153 = int_to_ptr.vmem [resolvable:$true] %s152
      %158 = dma.hbm_to_vmem [thread:$0]  %s10, 4096, %s153, [#allocation18], 256, 256, 16
    $region45: #{tpu_custom_call.1} parent=1 // pred_fallthru
      _
    // Predicated region
    $region46: #{tpu_custom_call.1} parent=1 // pred_check
      _
    $region47: #{tpu_custom_call.1} parent=1 // pred_check_branch
      %160 = sbr.rel (0) target = $region49
    $region48: #{tpu_custom_call.1} parent=1 // pred_region
      %s162 = ssub.s32 8192, 8192
      %163 = vsyncadd [#allocation18], %s162
      %s164 = sshll.u32 [#allocation19], 4
      %s165 = int_to_ptr.vmem [resolvable:$true] %s164
      %170 = dma.hbm_to_vmem [thread:$0]  %s11, 8192, %s165, [#allocation18], 256, 256, 16
    $region49: #{tpu_custom_call.1} parent=1 // pred_fallthru
      _
    // Predicated region
    $region50: #{tpu_custom_call.1} parent=1 // pred_check
      _
    $region51: #{tpu_custom_call.1} parent=1 // pred_check_branch
      %172 = sbr.rel (0) target = $region53
    $region52: #{tpu_custom_call.1} parent=1 // pred_region
      _
    $region53: #{tpu_custom_call.1} parent=1 // pred_fallthru
      _
    // Predicated region
    $region54: #{tpu_custom_call.1} parent=1 // pred_check
      _
    $region55: #{tpu_custom_call.1} parent=1 // pred_check_branch
      %174 = sbr.rel (0) target = $region57
    $region56: #{tpu_custom_call.1} parent=1 // pred_region
      _
    $region57: #{tpu_custom_call.1} parent=1 // pred_fallthru
      _
    // Predicated region
    $region58: #{tpu_custom_call.1} parent=1 // pred_check
      _
    $region59: #{tpu_custom_call.1} parent=1 // pred_check_branch
      %176 = sbr.rel (0) target = $region61
    $region60: #{tpu_custom_call.1} parent=1 // pred_region
      %s178 = ssub.s32 2048, 2048
      %179 = vsyncadd [#allocation21], %s178
      %s180 = sshll.u32 [#allocation20], 4
      %s181 = int_to_ptr.vmem [resolvable:$true] %s180
      %186 = dma.hbm_to_vmem [thread:$0]  %s14, 2048, %s181, [#allocation21], 64, 64, 4
    $region61: #{tpu_custom_call.1} parent=1 // pred_fallthru
      _
    // Predicated region
    $region62: #{tpu_custom_call.1} parent=1 // pred_check
      _
    $region63: #{tpu_custom_call.1} parent=1 // pred_check_branch
      %188 = sbr.rel (0) target = $region65
    $region64: #{tpu_custom_call.1} parent=1 // pred_region
      %s190 = ssub.s32 2048, 2048
      %191 = vsyncadd [#allocation21], %s190
      %s192 = sshll.u32 [#allocation22], 4
      %s193 = int_to_ptr.vmem [resolvable:$true] %s192
      %198 = dma.hbm_to_vmem [thread:$0]  %s15, 2048, %s193, [#allocation21], 128, 128, 8
    $region65: #{tpu_custom_call.1} parent=1 // pred_fallthru
      _
    // Predicated region
    $region66: #{tpu_custom_call.1} parent=1 // pred_check
      _
    $region67: #{tpu_custom_call.1} parent=1 // pred_check_branch
      %200 = sbr.rel (0) target = $region69
    $region68: #{tpu_custom_call.1} parent=1 // pred_region
      %s202 = ssub.s32 2048, 2048
      %203 = vsyncadd [#allocation24], %s202
      %s204 = sshll.u32 [#allocation23], 4
      %s205 = int_to_ptr.vmem [resolvable:$true] %s204
      %210 = dma.hbm_to_vmem [thread:$0]  %s16, 2048, %s205, [#allocation24], 128, 128, 8
    $region69: #{tpu_custom_call.1} parent=1 // pred_fallthru
      _
    // Predicated region
    $region70: #{tpu_custom_call.1} parent=1 // pred_check
      _
    $region71: #{tpu_custom_call.1} parent=1 // pred_check_branch
      %212 = sbr.rel (0) target = $region73
    $region72: #{tpu_custom_call.1} parent=1 // pred_region
      _
    $region73: #{tpu_custom_call.1} parent=1 // pred_fallthru
      _
    // Predicated region
    $region74: #{tpu_custom_call.1} parent=1 // pred_check
      _
    $region75: #{tpu_custom_call.1} parent=1 // pred_check_branch
      %214 = sbr.rel (0) target = $region77
    $region76: #{tpu_custom_call.1} parent=1 // pred_region
      %s216 = ssub.s32 2048, 2048
      %217 = vsyncadd [#allocation24], %s216
      %s218 = sshll.u32 [#allocation25], 4
      %s219 = int_to_ptr.vmem [resolvable:$true] %s218
      %224 = dma.hbm_to_vmem [thread:$0]  %s18, 2048, %s219, [#allocation24], 128, 128, 8
    $region77: #{tpu_custom_call.1} parent=1 // pred_fallthru
      _
    // Predicated region
    $region78: #{tpu_custom_call.1} parent=1 // pred_check
      _
    $region79: #{tpu_custom_call.1} parent=1 // pred_check_branch
      %226 = sbr.rel (0) target = $region81
    $region80: #{tpu_custom_call.1} parent=1 // pred_region
      %s228 = ssub.s32 2048, 2048
      %229 = vsyncadd [#allocation27], %s228
      %s230 = sshll.u32 [#allocation26], 4
      %s231 = int_to_ptr.vmem [resolvable:$true] %s230
      %236 = dma.hbm_to_vmem [thread:$0]  %s19, 2048, %s231, [#allocation27], 128, 128, 8
    $region81: #{tpu_custom_call.1} parent=1 // pred_fallthru
      _
    // Predicated region
    $region82: #{tpu_custom_call.1} parent=1 // pred_check
      _
    $region83: #{tpu_custom_call.1} parent=1 // pred_check_branch
      %238 = sbr.rel (0) target = $region85
    $region84: #{tpu_custom_call.1} parent=1 // pred_region
      _
    $region85: #{tpu_custom_call.1} parent=1 // pred_fallthru
      _
    // Predicated region
    $region86: #{tpu_custom_call.1} parent=1 // pred_check
      _
    $region87: #{tpu_custom_call.1} parent=1 // pred_check_branch
      %240 = sbr.rel (0) target = $region89
    $region88: #{tpu_custom_call.1} parent=1 // pred_region
      _
    $region89: #{tpu_custom_call.1} parent=1 // pred_fallthru
      _
    // Predicated region
    $region90: #{tpu_custom_call.1} parent=1 // pred_check
      _
    $region91: #{tpu_custom_call.1} parent=1 // pred_check_branch
      %242 = sbr.rel (0) target = $region93
    $region92: #{tpu_custom_call.1} parent=1 // pred_region
      %243 = dma.done [#allocation3], 2048
    $region93: #{tpu_custom_call.1} parent=1 // pred_fallthru
      _
    // Predicated region
    $region94: #{tpu_custom_call.1} parent=1 // pred_check
      _
    $region95: #{tpu_custom_call.1} parent=1 // pred_check_branch
      %245 = sbr.rel (0) target = $region97
    $region96: #{tpu_custom_call.1} parent=1 // pred_region
      %246 = dma.done [#allocation6], 1024
    $region97: #{tpu_custom_call.1} parent=1 // pred_fallthru
      _
    // Predicated region
    $region98: #{tpu_custom_call.1} parent=1 // pred_check
      _
    $region99: #{tpu_custom_call.1} parent=1 // pred_check_branch
      %248 = sbr.rel (0) target = $region101
    $region100: #{tpu_custom_call.1} parent=1 // pred_region
      %249 = dma.done [#allocation6], 1024
    $region101: #{tpu_custom_call.1} parent=1 // pred_fallthru
      _
    // Predicated region
    $region102: #{tpu_custom_call.1} parent=1 // pred_check
      _
    $region103: #{tpu_custom_call.1} parent=1 // pred_check_branch
      %251 = sbr.rel (0) target = $region105
    $region104: #{tpu_custom_call.1} parent=1 // pred_region
      %252 = dma.done [#allocation9], 1024
    $region105: #{tpu_custom_call.1} parent=1 // pred_fallthru
      _
    // Predicated region
    $region106: #{tpu_custom_call.1} parent=1 // pred_check
      _
    $region107: #{tpu_custom_call.1} parent=1 // pred_check_branch
      %254 = sbr.rel (0) target = $region109
    $region108: #{tpu_custom_call.1} parent=1 // pred_region
      %255 = dma.done [#allocation9], 2048
    $region109: #{tpu_custom_call.1} parent=1 // pred_fallthru
      _
    // Predicated region
    $region110: #{tpu_custom_call.1} parent=1 // pred_check
      _
    $region111: #{tpu_custom_call.1} parent=1 // pred_check_branch
      %257 = sbr.rel (0) target = $region113
    $region112: #{tpu_custom_call.1} parent=1 // pred_region
      %258 = dma.done [#allocation12], 2048
    $region113: #{tpu_custom_call.1} parent=1 // pred_fallthru
      _
    // Predicated region
    $region114: #{tpu_custom_call.1} parent=1 // pred_check
      _
    $region115: #{tpu_custom_call.1} parent=1 // pred_check_branch
      %260 = sbr.rel (0) target = $region117
    $region116: #{tpu_custom_call.1} parent=1 // pred_region
      %261 = dma.done [#allocation12], 2048
    $region117: #{tpu_custom_call.1} parent=1 // pred_fallthru
      _
    // Predicated region
    $region118: #{tpu_custom_call.1} parent=1 // pred_check
      _
    $region119: #{tpu_custom_call.1} parent=1 // pred_check_branch
      %263 = sbr.rel (0) target = $region121
    $region120: #{tpu_custom_call.1} parent=1 // pred_region
      %264 = dma.done [#allocation15], 2048
    $region121: #{tpu_custom_call.1} parent=1 // pred_fallthru
      _
    // Predicated region
    $region122: #{tpu_custom_call.1} parent=1 // pred_check
      _
    $region123: #{tpu_custom_call.1} parent=1 // pred_check_branch
      %266 = sbr.rel (0) target = $region125
    $region124: #{tpu_custom_call.1} parent=1 // pred_region
      %267 = dma.done [#allocation15], 2048
    $region125: #{tpu_custom_call.1} parent=1 // pred_fallthru
      _
    // Predicated region
    $region126: #{tpu_custom_call.1} parent=1 // pred_check
      _
    $region127: #{tpu_custom_call.1} parent=1 // pred_check_branch
      %269 = sbr.rel (0) target = $region129
    $region128: #{tpu_custom_call.1} parent=1 // pred_region
      %270 = dma.done [#allocation18], 4096
    $region129: #{tpu_custom_call.1} parent=1 // pred_fallthru
      _
    // Predicated region
    $region130: #{tpu_custom_call.1} parent=1 // pred_check
      _
    $region131: #{tpu_custom_call.1} parent=1 // pred_check_branch
      %272 = sbr.rel (0) target = $region133
    $region132: #{tpu_custom_call.1} parent=1 // pred_region
      %273 = dma.done [#allocation18], 8192
    $region133: #{tpu_custom_call.1} parent=1 // pred_fallthru
      _
    // Predicated region
    $region134: #{tpu_custom_call.1} parent=1 // pred_check
      _
    $region135: #{tpu_custom_call.1} parent=1 // pred_check_branch
      %275 = sbr.rel (0) target = $region137
    $region136: #{tpu_custom_call.1} parent=1 // pred_region
      %276 = dma.done [#allocation21], 2048
    $region137: #{tpu_custom_call.1} parent=1 // pred_fallthru
      _
    // Predicated region
    $region138: #{tpu_custom_call.1} parent=1 // pred_check
      _
    $region139: #{tpu_custom_call.1} parent=1 // pred_check_branch
      %278 = sbr.rel (0) target = $region141
    $region140: #{tpu_custom_call.1} parent=1 // pred_region
      %279 = dma.done [#allocation21], 2048
    $region141: #{tpu_custom_call.1} parent=1 // pred_fallthru
      _
    // Predicated region
    $region142: #{tpu_custom_call.1} parent=1 // pred_check
      _
    $region143: #{tpu_custom_call.1} parent=1 // pred_check_branch
      %281 = sbr.rel (0) target = $region145
    $region144: #{tpu_custom_call.1} parent=1 // pred_region
      %282 = dma.done [#allocation24], 2048
    $region145: #{tpu_custom_call.1} parent=1 // pred_fallthru
      _
    // Predicated region
    $region146: #{tpu_custom_call.1} parent=1 // pred_check
      _
    $region147: #{tpu_custom_call.1} parent=1 // pred_check_branch
      %284 = sbr.rel (0) target = $region149
    $region148: #{tpu_custom_call.1} parent=1 // pred_region
      %285 = dma.done [#allocation24], 2048
    $region149: #{tpu_custom_call.1} parent=1 // pred_fallthru
      _
    // Predicated region
    $region150: #{tpu_custom_call.1} parent=1 // pred_check
      _
    $region151: #{tpu_custom_call.1} parent=1 // pred_check_branch
      %287 = sbr.rel (0) target = $region153
    $region152: #{tpu_custom_call.1} parent=1 // pred_region
      %288 = dma.done [#allocation27], 2048
    $region153: #{tpu_custom_call.1} parent=1 // pred_fallthru
      _
    %v290 = vld [vmem:[#allocation5] sm:$0xf]
    %v291 = vld [vmem:[#allocation5 + $0x4] sm:$0xf]
    %v292 = vld [vmem:[#allocation5 + $0x8] sm:$0xf]
    %v293 = vld [vmem:[#allocation5 + $0xc] sm:$0xf]
    %v294 = vld [vmem:[#allocation5 + $0x10] sm:$0xf]
    %v295 = vld [vmem:[#allocation5 + $0x14] sm:$0xf]
    %v296 = vld [vmem:[#allocation5 + $0x18] sm:$0xf]
    %v297 = vld [vmem:[#allocation5 + $0x1c] sm:$0xf]
    %v298 = vld [vmem:[#allocation5 + $0x20] sm:$0xf]
    %v299 = vld [vmem:[#allocation5 + $0x24] sm:$0xf]
    %v300 = vld [vmem:[#allocation5 + $0x28] sm:$0xf]
    %v301 = vld [vmem:[#allocation5 + $0x2c] sm:$0xf]
    %v302 = vld [vmem:[#allocation5 + $0x30] sm:$0xf]
    %v303 = vld [vmem:[#allocation5 + $0x34] sm:$0xf]
    %v304 = vld [vmem:[#allocation5 + $0x38] sm:$0xf]
    %v305 = vld [vmem:[#allocation5 + $0x3c] sm:$0xf]
    %v306 = vld [vmem:[#allocation7] sm:$0xf]
    %v307 = vld [vmem:[#allocation7 + $0x4] sm:$0xf]
    %v308 = vld [vmem:[#allocation7 + $0x8] sm:$0xf]
    %v309 = vld [vmem:[#allocation7 + $0xc] sm:$0xf]
    %v310 = vld [vmem:[#allocation7 + $0x10] sm:$0xf]
    %v311 = vld [vmem:[#allocation7 + $0x14] sm:$0xf]
    %v312 = vld [vmem:[#allocation7 + $0x18] sm:$0xf]
    %v313 = vld [vmem:[#allocation7 + $0x1c] sm:$0xf]
    %v314 = vld [vmem:[#allocation7 + $0x20] sm:$0xf]
    %v315 = vld [vmem:[#allocation7 + $0x24] sm:$0xf]
    %v316 = vld [vmem:[#allocation7 + $0x28] sm:$0xf]
    %v317 = vld [vmem:[#allocation7 + $0x2c] sm:$0xf]
    %v318 = vld [vmem:[#allocation7 + $0x30] sm:$0xf]
    %v319 = vld [vmem:[#allocation7 + $0x34] sm:$0xf]
    %v320 = vld [vmem:[#allocation7 + $0x38] sm:$0xf]
    %v321 = vld [vmem:[#allocation7 + $0x3c] sm:$0xf]
    %v322 = vld [vmem:[#allocation8] sm:$0xf]
    %v323 = vld [vmem:[#allocation8 + $0x4] sm:$0xf]
    %v324 = vld [vmem:[#allocation8 + $0x8] sm:$0xf]
    %v325 = vld [vmem:[#allocation8 + $0xc] sm:$0xf]
    %v326 = vld [vmem:[#allocation8 + $0x10] sm:$0xf]
    %v327 = vld [vmem:[#allocation8 + $0x14] sm:$0xf]
    %v328 = vld [vmem:[#allocation8 + $0x18] sm:$0xf]
    %v329 = vld [vmem:[#allocation8 + $0x1c] sm:$0xf]
    %v330 = vld [vmem:[#allocation8 + $0x20] sm:$0xf]
    %v331 = vld [vmem:[#allocation8 + $0x24] sm:$0xf]
    %v332 = vld [vmem:[#allocation8 + $0x28] sm:$0xf]
    %v333 = vld [vmem:[#allocation8 + $0x2c] sm:$0xf]
    %v334 = vld [vmem:[#allocation8 + $0x30] sm:$0xf]
    %v335 = vld [vmem:[#allocation8 + $0x34] sm:$0xf]
    %v336 = vld [vmem:[#allocation8 + $0x38] sm:$0xf]
    %v337 = vld [vmem:[#allocation8 + $0x3c] sm:$0xf]
    %v338 = vld [vmem:[#allocation10] sm:$0xff]
    %v339 = vld [vmem:[#allocation10 + $0x8] sm:$0xff]
    %v340 = vld [vmem:[#allocation10 + $0x10] sm:$0xff]
    %v341 = vld [vmem:[#allocation10 + $0x18] sm:$0xff]
    %v342 = vld [vmem:[#allocation10 + $0x20] sm:$0xff]
    %v343 = vld [vmem:[#allocation10 + $0x28] sm:$0xff]
    %v344 = vld [vmem:[#allocation10 + $0x30] sm:$0xff]
    %v345 = vld [vmem:[#allocation10 + $0x38] sm:$0xff]
    %v346 = vld [vmem:[#allocation10 + $0x40] sm:$0xff]
    %v347 = vld [vmem:[#allocation10 + $0x48] sm:$0xff]
    %v348 = vld [vmem:[#allocation10 + $0x50] sm:$0xff]
    %v349 = vld [vmem:[#allocation10 + $0x58] sm:$0xff]
    %v350 = vld [vmem:[#allocation10 + $0x60] sm:$0xff]
    %v351 = vld [vmem:[#allocation10 + $0x68] sm:$0xff]
    %v352 = vld [vmem:[#allocation10 + $0x70] sm:$0xff]
    %v353 = vld [vmem:[#allocation10 + $0x78] sm:$0xff]
    %v354 = vld [vmem:[#allocation11] sm:$0xff]
    %v355 = vld [vmem:[#allocation11 + $0x8] sm:$0xff]
    %v356 = vld [vmem:[#allocation11 + $0x10] sm:$0xff]
    %v357 = vld [vmem:[#allocation11 + $0x18] sm:$0xff]
    %v358 = vld [vmem:[#allocation11 + $0x20] sm:$0xff]
    %v359 = vld [vmem:[#allocation11 + $0x28] sm:$0xff]
    %v360 = vld [vmem:[#allocation11 + $0x30] sm:$0xff]
    %v361 = vld [vmem:[#allocation11 + $0x38] sm:$0xff]
    %v362 = vld [vmem:[#allocation11 + $0x40] sm:$0xff]
    %v363 = vld [vmem:[#allocation11 + $0x48] sm:$0xff]
    %v364 = vld [vmem:[#allocation11 + $0x50] sm:$0xff]
    %v365 = vld [vmem:[#allocation11 + $0x58] sm:$0xff]
    %v366 = vld [vmem:[#allocation11 + $0x60] sm:$0xff]
    %v367 = vld [vmem:[#allocation11 + $0x68] sm:$0xff]
    %v368 = vld [vmem:[#allocation11 + $0x70] sm:$0xff]
    %v369 = vld [vmem:[#allocation11 + $0x78] sm:$0xff]
    %v370 = vld [vmem:[#allocation2] sm:$0xff]
    %v371 = vld [vmem:[#allocation2 + $0x8] sm:$0xff]
    %v372 = vld [vmem:[#allocation2 + $0x10] sm:$0xff]
    %v373 = vld [vmem:[#allocation2 + $0x18] sm:$0xff]
    %v374 = vld [vmem:[#allocation2 + $0x20] sm:$0xff]
    %v375 = vld [vmem:[#allocation2 + $0x28] sm:$0xff]
    %v376 = vld [vmem:[#allocation2 + $0x30] sm:$0xff]
    %v377 = vld [vmem:[#allocation2 + $0x38] sm:$0xff]
    %v378 = vld [vmem:[#allocation2 + $0x40] sm:$0xff]
    %v379 = vld [vmem:[#allocation2 + $0x48] sm:$0xff]
    %v380 = vld [vmem:[#allocation2 + $0x50] sm:$0xff]
    %v381 = vld [vmem:[#allocation2 + $0x58] sm:$0xff]
    %v382 = vld [vmem:[#allocation2 + $0x60] sm:$0xff]
    %v383 = vld [vmem:[#allocation2 + $0x68] sm:$0xff]
    %v384 = vld [vmem:[#allocation2 + $0x70] sm:$0xff]
    %v385 = vld [vmem:[#allocation2 + $0x78] sm:$0xff]
    %v386 = vpack.c.bf16 %v371, %v370
    %v387 = vpack.c.bf16 %v373, %v372
    %v388 = vpack.c.bf16 %v375, %v374
    %v389 = vpack.c.bf16 %v377, %v376
    %v390 = vpack.c.bf16 %v379, %v378
    %v391 = vpack.c.bf16 %v381, %v380
    %v392 = vpack.c.bf16 %v383, %v382
    %v393 = vpack.c.bf16 %v385, %v384
    %v394 = vld [vmem:[#allocation13] sm:$0xff]
    %v395 = vld [vmem:[#allocation13 + $0x8] sm:$0xff]
    %v396 = vld [vmem:[#allocation13 + $0x10] sm:$0xff]
    %v397 = vld [vmem:[#allocation13 + $0x18] sm:$0xff]
    %v398 = vld [vmem:[#allocation13 + $0x20] sm:$0xff]
    %v399 = vld [vmem:[#allocation13 + $0x28] sm:$0xff]
    %v400 = vld [vmem:[#allocation13 + $0x30] sm:$0xff]
    %v401 = vld [vmem:[#allocation13 + $0x38] sm:$0xff]
    %v402 = vld [vmem:[#allocation13 + $0x40] sm:$0xff]
    %v403 = vld [vmem:[#allocation13 + $0x48] sm:$0xff]
    %v404 = vld [vmem:[#allocation13 + $0x50] sm:$0xff]
    %v405 = vld [vmem:[#allocation13 + $0x58] sm:$0xff]
    %v406 = vld [vmem:[#allocation13 + $0x60] sm:$0xff]
    %v407 = vld [vmem:[#allocation13 + $0x68] sm:$0xff]
    %v408 = vld [vmem:[#allocation13 + $0x70] sm:$0xff]
    %v409 = vld [vmem:[#allocation13 + $0x78] sm:$0xff]
    %v426 = vunpack.c.l.b16 %v394
    %v427 = vunpack.c.h.b16 %v394
    %v428 = vunpack.c.l.b16 %v395
    %v429 = vunpack.c.h.b16 %v395
    %v430 = vunpack.c.l.b16 %v396
    %v431 = vunpack.c.h.b16 %v396
    %v432 = vunpack.c.l.b16 %v397
    %v433 = vunpack.c.h.b16 %v397
    %v434 = vunpack.c.l.b16 %v398
    %v435 = vunpack.c.h.b16 %v398
    %v436 = vunpack.c.l.b16 %v399
    %v437 = vunpack.c.h.b16 %v399
    %v438 = vunpack.c.l.b16 %v400
    %v439 = vunpack.c.h.b16 %v400
    %v440 = vunpack.c.l.b16 %v401
    %v441 = vunpack.c.h.b16 %v401
    %v442 = vunpack.c.l.b16 %v402
    %v443 = vunpack.c.h.b16 %v402
    %v444 = vunpack.c.l.b16 %v403
    %v445 = vunpack.c.h.b16 %v403
    %v446 = vunpack.c.l.b16 %v404
    %v447 = vunpack.c.h.b16 %v404
    %v448 = vunpack.c.l.b16 %v405
    %v449 = vunpack.c.h.b16 %v405
    %v450 = vunpack.c.l.b16 %v406
    %v451 = vunpack.c.h.b16 %v406
    %v452 = vunpack.c.l.b16 %v407
    %v453 = vunpack.c.h.b16 %v407
    %v454 = vunpack.c.l.b16 %v408
    %v455 = vunpack.c.h.b16 %v408
    %v456 = vunpack.c.l.b16 %v409
    %v457 = vunpack.c.h.b16 %v409
    %v458 = vpack.c.b16 %v428, %v426
    %v459 = vpack.c.b16 %v429, %v427
    %v460 = vpack.c.b16 %v432, %v430
    %v461 = vpack.c.b16 %v433, %v431
    %v462 = vpack.c.b16 %v436, %v434
    %v463 = vpack.c.b16 %v437, %v435
    %v464 = vpack.c.b16 %v440, %v438
    %v465 = vpack.c.b16 %v441, %v439
    %v466 = vpack.c.b16 %v444, %v442
    %v467 = vpack.c.b16 %v445, %v443
    %v468 = vpack.c.b16 %v448, %v446
    %v469 = vpack.c.b16 %v449, %v447
    %v470 = vpack.c.b16 %v452, %v450
    %v471 = vpack.c.b16 %v453, %v451
    %v472 = vpack.c.b16 %v456, %v454
    %v473 = vpack.c.b16 %v457, %v455
    %490 = vmatprep.subr.bf16.mxu0 %v473
    %491 = vmatpush1.bf16.msra.mxu0 %v472
    %492 = vmatprep.subr.bf16.mxu0 %v471
    %493 = vmatpush1.bf16.msra.mxu0 %v470
    %494 = vmatprep.subr.bf16.mxu0 %v469
    %495 = vmatpush1.bf16.msra.mxu0 %v468
    %496 = vmatprep.subr.bf16.mxu0 %v467
    %497 = vmatpush1.bf16.msra.mxu0 %v466
    %498 = vmatprep.subr.bf16.mxu0 %v465
    %499 = vmatpush1.bf16.msra.mxu0 %v464
    %500 = vmatprep.subr.bf16.mxu0 %v463
    %501 = vmatpush1.bf16.msra.mxu0 %v462
    %502 = vmatprep.subr.bf16.mxu0 %v461
    %503 = vmatpush1.bf16.msra.mxu0 %v460
    %504 = vmatprep.subr.bf16.mxu0 %v459
    %505 = vmatpush1.bf16.msra.mxu0 %v458
    %506 = vmatprep.subr.bf16.mxu0 0
    %507 = vmatpush2.bf16.msra.mxu0 0
    %508 = vmatprep.subr.bf16.mxu0 0
    %509 = vmatpush2.bf16.msra.mxu0 0
    %510 = vmatprep.subr.bf16.mxu0 0
    %511 = vmatpush2.bf16.msra.mxu0 0
    %512 = vmatprep.subr.bf16.mxu0 0
    %513 = vmatpush2.bf16.msra.mxu0 0
    %514 = vmatprep.subr.bf16.mxu0 0
    %515 = vmatpush2.bf16.msra.mxu0 0
    %516 = vmatprep.subr.bf16.mxu0 0
    %517 = vmatpush2.bf16.msra.mxu0 0
    %518 = vmatprep.subr.bf16.mxu0 0
    %519 = vmatpush2.bf16.msra.mxu0 0
    %520 = vmatprep.subr.bf16.mxu0 0
    %521 = vmatpush2.bf16.msra.mxu0 0
    %522 = vmatprep.mubr.bf16.mxu0 0
    %523 = vmatmul.mubr.bf16.gmra.mxu0 %v386
    %v524 = vpop.f32.mrf.mxu0
    %v525 = vadd.f32 0.0, %v524
    %v526 = vpop.f32.mrf.mxu0
    %v527 = vadd.f32 0.0, %v526
    %v528 = vpop.f32.mrf.mxu0
    %v529 = vadd.f32 0.0, %v528
    %v530 = vpop.f32.mrf.mxu0
    %v531 = vadd.f32 0.0, %v530
    %532 = vmatprep.mubr.bf16.mxu0 0
    %533 = vmatmul.mubr.bf16.gmra.mxu0 %v387
    %v534 = vpop.f32.mrf.mxu0
    %v535 = vadd.f32 0.0, %v534
    %v536 = vpop.f32.mrf.mxu0
    %v537 = vadd.f32 0.0, %v536
    %v538 = vpop.f32.mrf.mxu0
    %v539 = vadd.f32 0.0, %v538
    %v540 = vpop.f32.mrf.mxu0
    %v541 = vadd.f32 0.0, %v540
    %542 = vmatprep.mubr.bf16.mxu0 0
    %543 = vmatmul.mubr.bf16.gmra.mxu0 %v388
    %v544 = vpop.f32.mrf.mxu0
    %v545 = vadd.f32 0.0, %v544
    %v546 = vpop.f32.mrf.mxu0
    %v547 = vadd.f32 0.0, %v546
    %v548 = vpop.f32.mrf.mxu0
    %v549 = vadd.f32 0.0, %v548
    %v550 = vpop.f32.mrf.mxu0
    %v551 = vadd.f32 0.0, %v550
    %552 = vmatprep.mubr.bf16.mxu0 0
    %553 = vmatmul.mubr.bf16.gmra.mxu0 %v389
    %v554 = vpop.f32.mrf.mxu0
    %v555 = vadd.f32 0.0, %v554
    %v556 = vpop.f32.mrf.mxu0
    %v557 = vadd.f32 0.0, %v556
    %v558 = vpop.f32.mrf.mxu0
    %v559 = vadd.f32 0.0, %v558
    %v560 = vpop.f32.mrf.mxu0
    %v561 = vadd.f32 0.0, %v560
    %562 = vmatprep.mubr.bf16.mxu0 0
    %563 = vmatmul.mubr.bf16.gmra.mxu0 %v390
    %v564 = vpop.f32.mrf.mxu0
    %v565 = vadd.f32 0.0, %v564
    %v566 = vpop.f32.mrf.mxu0
    %v567 = vadd.f32 0.0, %v566
    %v568 = vpop.f32.mrf.mxu0
    %v569 = vadd.f32 0.0, %v568
    %v570 = vpop.f32.mrf.mxu0
    %v571 = vadd.f32 0.0, %v570
    %572 = vmatprep.mubr.bf16.mxu0 0
    %573 = vmatmul.mubr.bf16.gmra.mxu0 %v391
    %v574 = vpop.f32.mrf.mxu0
    %v575 = vadd.f32 0.0, %v574
    %v576 = vpop.f32.mrf.mxu0
    %v577 = vadd.f32 0.0, %v576
    %v578 = vpop.f32.mrf.mxu0
    %v579 = vadd.f32 0.0, %v578
    %v580 = vpop.f32.mrf.mxu0
    %v581 = vadd.f32 0.0, %v580
    %582 = vmatprep.mubr.bf16.mxu0 0
    %583 = vmatmul.mubr.bf16.gmra.mxu0 %v392
    %v584 = vpop.f32.mrf.mxu0
    %v585 = vadd.f32 0.0, %v584
    %v586 = vpop.f32.mrf.mxu0
    %v587 = vadd.f32 0.0, %v586
    %v588 = vpop.f32.mrf.mxu0
    %v589 = vadd.f32 0.0, %v588
    %v590 = vpop.f32.mrf.mxu0
    %v591 = vadd.f32 0.0, %v590
    %592 = vmatprep.mubr.bf16.mxu0 0
    %593 = vmatmul.mubr.bf16.gmra.mxu0 %v393
    %v594 = vpop.f32.mrf.mxu0
    %v595 = vadd.f32 0.0, %v594
    %v596 = vpop.f32.mrf.mxu0
    %v597 = vadd.f32 0.0, %v596
    %v598 = vpop.f32.mrf.mxu0
    %v599 = vadd.f32 0.0, %v598
    %v600 = vpop.f32.mrf.mxu0
    %v601 = vadd.f32 0.0, %v600
    %602 = vdwg.mxu0
    %v603 = vld [vmem:[#allocation14] sm:$0xff]
    %v604 = vld [vmem:[#allocation14 + $0x8] sm:$0xff]
    %v605 = vld [vmem:[#allocation14 + $0x10] sm:$0xff]
    %v606 = vld [vmem:[#allocation14 + $0x18] sm:$0xff]
    %v607 = vld [vmem:[#allocation14 + $0x20] sm:$0xff]
    %v608 = vld [vmem:[#allocation14 + $0x28] sm:$0xff]
    %v609 = vld [vmem:[#allocation14 + $0x30] sm:$0xff]
    %v610 = vld [vmem:[#allocation14 + $0x38] sm:$0xff]
    %v611 = vld [vmem:[#allocation14 + $0x40] sm:$0xff]
    %v612 = vld [vmem:[#allocation14 + $0x48] sm:$0xff]
    %v613 = vld [vmem:[#allocation14 + $0x50] sm:$0xff]
    %v614 = vld [vmem:[#allocation14 + $0x58] sm:$0xff]
    %v615 = vld [vmem:[#allocation14 + $0x60] sm:$0xff]
    %v616 = vld [vmem:[#allocation14 + $0x68] sm:$0xff]
    %v617 = vld [vmem:[#allocation14 + $0x70] sm:$0xff]
    %v618 = vld [vmem:[#allocation14 + $0x78] sm:$0xff]
    %619 = vmatprep.subr.mxu0 0.0
    %620 = vmatpush1.msra.mxu0 %v618
    %621 = vmatprep.subr.mxu0 0.0
    %622 = vmatpush1.msra.mxu0 %v617
    %623 = vmatprep.subr.mxu0 0.0
    %624 = vmatpush1.msra.mxu0 %v616
    %625 = vmatprep.subr.mxu0 0.0
    %626 = vmatpush1.msra.mxu0 %v615
    %627 = vmatprep.subr.mxu0 0.0
    %628 = vmatpush1.msra.mxu0 %v614
    %629 = vmatprep.subr.mxu0 0.0
    %630 = vmatpush1.msra.mxu0 %v613
    %631 = vmatprep.subr.mxu0 0.0
    %632 = vmatpush1.msra.mxu0 %v612
    %633 = vmatprep.subr.mxu0 0.0
    %634 = vmatpush1.msra.mxu0 %v611
    %635 = vmatprep.subr.mxu0 0.0
    %636 = vmatpush1.msra.mxu0 %v610
    %637 = vmatprep.subr.mxu0 0.0
    %638 = vmatpush1.msra.mxu0 %v609
    %639 = vmatprep.subr.mxu0 0.0
    %640 = vmatpush1.msra.mxu0 %v608
    %641 = vmatprep.subr.mxu0 0.0
    %642 = vmatpush1.msra.mxu0 %v607
    %643 = vmatprep.subr.mxu0 0.0
    %644 = vmatpush1.msra.mxu0 %v606
    %645 = vmatprep.subr.mxu0 0.0
    %646 = vmatpush1.msra.mxu0 %v605
    %647 = vmatprep.subr.mxu0 0.0
    %648 = vmatpush1.msra.mxu0 %v604
    %649 = vmatprep.subr.mxu0 0.0
    %650 = vmatpush1.msra.mxu0 %v603
    %651 = vmatprep.subr.mxu0 0.0
    %652 = vmatpush2.msra.mxu0 0.0
    %653 = vmatprep.subr.mxu0 0.0
    %654 = vmatpush2.msra.mxu0 0.0
    %655 = vmatprep.subr.mxu0 0.0
    %656 = vmatpush2.msra.mxu0 0.0
    %657 = vmatprep.subr.mxu0 0.0
    %658 = vmatpush2.msra.mxu0 0.0
    %659 = vmatprep.subr.mxu0 0.0
    %660 = vmatpush2.msra.mxu0 0.0
    %661 = vmatprep.subr.mxu0 0.0
    %662 = vmatpush2.msra.mxu0 0.0
    %663 = vmatprep.subr.mxu0 0.0
    %664 = vmatpush2.msra.mxu0 0.0
    %665 = vmatprep.subr.mxu0 0.0
    %666 = vmatpush2.msra.mxu0 0.0
    %667 = vmatprep.subr.mxu0 0.0
    %668 = vmatpush2.msra.mxu0 0.0
    %669 = vmatprep.subr.mxu0 0.0
    %670 = vmatpush2.msra.mxu0 0.0
    %671 = vmatprep.subr.mxu0 0.0
    %672 = vmatpush2.msra.mxu0 0.0
    %673 = vmatprep.subr.mxu0 0.0
    %674 = vmatpush2.msra.mxu0 0.0
    %675 = vmatprep.subr.mxu0 0.0
    %676 = vmatpush2.msra.mxu0 0.0
    %677 = vmatprep.subr.mxu0 0.0
    %678 = vmatpush2.msra.mxu0 0.0
    %679 = vmatprep.subr.mxu0 0.0
    %680 = vmatpush2.msra.mxu0 0.0
    %681 = vmatprep.subr.mxu0 0.0
    %682 = vmatpush2.msra.mxu0 0.0
    %683 = vmatprep.mubr.f32.mxu0 0.0
    %684 = vmatmul.mubr.f32.gmra.mxu0 %v338
    %v685 = vpop.f32.mrf.mxu0
    %v686 = vadd.f32 0.0, %v685
    %v687 = vpop.f32.mrf.mxu0
    %688 = vmatprep.mubr.f32.mxu0 0.0
    %689 = vmatmul.mubr.f32.gmra.mxu0 %v339
    %v690 = vpop.f32.mrf.mxu0
    %v691 = vadd.f32 0.0, %v690
    %v692 = vpop.f32.mrf.mxu0
    %693 = vmatprep.mubr.f32.mxu0 0.0
    %694 = vmatmul.mubr.f32.gmra.mxu0 %v340
    %v695 = vpop.f32.mrf.mxu0
    %v696 = vadd.f32 0.0, %v695
    %v697 = vpop.f32.mrf.mxu0
    %698 = vmatprep.mubr.f32.mxu0 0.0
    %699 = vmatmul.mubr.f32.gmra.mxu0 %v341
    %v700 = vpop.f32.mrf.mxu0
    %v701 = vadd.f32 0.0, %v700
    %v702 = vpop.f32.mrf.mxu0
    %703 = vmatprep.mubr.f32.mxu0 0.0
    %704 = vmatmul.mubr.f32.gmra.mxu0 %v342
    %v705 = vpop.f32.mrf.mxu0
    %v706 = vadd.f32 0.0, %v705
    %v707 = vpop.f32.mrf.mxu0
    %708 = vmatprep.mubr.f32.mxu0 0.0
    %709 = vmatmul.mubr.f32.gmra.mxu0 %v343
    %v710 = vpop.f32.mrf.mxu0
    %v711 = vadd.f32 0.0, %v710
    %v712 = vpop.f32.mrf.mxu0
    %713 = vmatprep.mubr.f32.mxu0 0.0
    %714 = vmatmul.mubr.f32.gmra.mxu0 %v344
    %v715 = vpop.f32.mrf.mxu0
    %v716 = vadd.f32 0.0, %v715
    %v717 = vpop.f32.mrf.mxu0
    %718 = vmatprep.mubr.f32.mxu0 0.0
    %719 = vmatmul.mubr.f32.gmra.mxu0 %v345
    %v720 = vpop.f32.mrf.mxu0
    %v721 = vadd.f32 0.0, %v720
    %v722 = vpop.f32.mrf.mxu0
    %723 = vmatprep.mubr.f32.mxu0 0.0
    %724 = vmatmul.mubr.f32.gmra.mxu0 %v346
    %v725 = vpop.f32.mrf.mxu0
    %v726 = vadd.f32 0.0, %v725
    %v727 = vpop.f32.mrf.mxu0
    %728 = vmatprep.mubr.f32.mxu0 0.0
    %729 = vmatmul.mubr.f32.gmra.mxu0 %v347
    %v730 = vpop.f32.mrf.mxu0
    %v731 = vadd.f32 0.0, %v730
    %v732 = vpop.f32.mrf.mxu0
    %733 = vmatprep.mubr.f32.mxu0 0.0
    %734 = vmatmul.mubr.f32.gmra.mxu0 %v348
    %v735 = vpop.f32.mrf.mxu0
    %v736 = vadd.f32 0.0, %v735
    %v737 = vpop.f32.mrf.mxu0
    %738 = vmatprep.mubr.f32.mxu0 0.0
    %739 = vmatmul.mubr.f32.gmra.mxu0 %v349
    %v740 = vpop.f32.mrf.mxu0
    %v741 = vadd.f32 0.0, %v740
    %v742 = vpop.f32.mrf.mxu0
    %743 = vmatprep.mubr.f32.mxu0 0.0
    %744 = vmatmul.mubr.f32.gmra.mxu0 %v350
    %v745 = vpop.f32.mrf.mxu0
    %v746 = vadd.f32 0.0, %v745
    %v747 = vpop.f32.mrf.mxu0
    %748 = vmatprep.mubr.f32.mxu0 0.0
    %749 = vmatmul.mubr.f32.gmra.mxu0 %v351
    %v750 = vpop.f32.mrf.mxu0
    %v751 = vadd.f32 0.0, %v750
    %v752 = vpop.f32.mrf.mxu0
    %753 = vmatprep.mubr.f32.mxu0 0.0
    %754 = vmatmul.mubr.f32.gmra.mxu0 %v352
    %v755 = vpop.f32.mrf.mxu0
    %v756 = vadd.f32 0.0, %v755
    %v757 = vpop.f32.mrf.mxu0
    %758 = vmatprep.mubr.f32.mxu0 0.0
    %759 = vmatmul.mubr.f32.gmra.mxu0 %v353
    %v760 = vpop.f32.mrf.mxu0
    %v761 = vadd.f32 0.0, %v760
    %v762 = vpop.f32.mrf.mxu0
    %763 = vdwg.mxu0
    %vm764 = vcmp.gt.f32.partialorder %v686, 0.0
    %vm765 = vcmp.gt.f32.partialorder %v691, 0.0
    %vm766 = vcmp.gt.f32.partialorder %v696, 0.0
    %vm767 = vcmp.gt.f32.partialorder %v701, 0.0
    %vm768 = vcmp.gt.f32.partialorder %v706, 0.0
    %vm769 = vcmp.gt.f32.partialorder %v711, 0.0
    %vm770 = vcmp.gt.f32.partialorder %v716, 0.0
    %vm771 = vcmp.gt.f32.partialorder %v721, 0.0
    %vm772 = vcmp.gt.f32.partialorder %v726, 0.0
    %vm773 = vcmp.gt.f32.partialorder %v731, 0.0
    %vm774 = vcmp.gt.f32.partialorder %v736, 0.0
    %vm775 = vcmp.gt.f32.partialorder %v741, 0.0
    %vm776 = vcmp.gt.f32.partialorder %v746, 0.0
    %vm777 = vcmp.gt.f32.partialorder %v751, 0.0
    %vm778 = vcmp.gt.f32.partialorder %v756, 0.0
    %vm779 = vcmp.gt.f32.partialorder %v761, 0.0
    %v780 = vmul.f32 %v686, 0.2
    %v781 = vmul.f32 %v691, 0.2
    %v782 = vmul.f32 %v696, 0.2
    %v783 = vmul.f32 %v701, 0.2
    %v784 = vmul.f32 %v706, 0.2
    %v785 = vmul.f32 %v711, 0.2
    %v786 = vmul.f32 %v716, 0.2
    %v787 = vmul.f32 %v721, 0.2
    %v788 = vmul.f32 %v726, 0.2
    %v789 = vmul.f32 %v731, 0.2
    %v790 = vmul.f32 %v736, 0.2
    %v791 = vmul.f32 %v741, 0.2
    %v792 = vmul.f32 %v746, 0.2
    %v793 = vmul.f32 %v751, 0.2
    %v794 = vmul.f32 %v756, 0.2
    %v795 = vmul.f32 %v761, 0.2
    %v796 = vsel %vm764, %v686, %v780
    %v797 = vsel %vm765, %v691, %v781
    %v798 = vsel %vm766, %v696, %v782
    %v799 = vsel %vm767, %v701, %v783
    %v800 = vsel %vm768, %v706, %v784
    %v801 = vsel %vm769, %v711, %v785
    %v802 = vsel %vm770, %v716, %v786
    %v803 = vsel %vm771, %v721, %v787
    %v804 = vsel %vm772, %v726, %v788
    %v805 = vsel %vm773, %v731, %v789
    %v806 = vsel %vm774, %v736, %v790
    %v807 = vsel %vm775, %v741, %v791
    %v808 = vsel %vm776, %v746, %v792
    %v809 = vsel %vm777, %v751, %v793
    %v810 = vsel %vm778, %v756, %v794
    %v811 = vsel %vm779, %v761, %v795
    %v812 = vld [vmem:[#allocation16] sm:$0xff]
    %v813 = vld [vmem:[#allocation16 + $0x8] sm:$0xff]
    %v814 = vld [vmem:[#allocation16 + $0x10] sm:$0xff]
    %v815 = vld [vmem:[#allocation16 + $0x18] sm:$0xff]
    %v816 = vld [vmem:[#allocation16 + $0x20] sm:$0xff]
    %v817 = vld [vmem:[#allocation16 + $0x28] sm:$0xff]
    %v818 = vld [vmem:[#allocation16 + $0x30] sm:$0xff]
    %v819 = vld [vmem:[#allocation16 + $0x38] sm:$0xff]
    %v820 = vld [vmem:[#allocation16 + $0x40] sm:$0xff]
    %v821 = vld [vmem:[#allocation16 + $0x48] sm:$0xff]
    %v822 = vld [vmem:[#allocation16 + $0x50] sm:$0xff]
    %v823 = vld [vmem:[#allocation16 + $0x58] sm:$0xff]
    %v824 = vld [vmem:[#allocation16 + $0x60] sm:$0xff]
    %v825 = vld [vmem:[#allocation16 + $0x68] sm:$0xff]
    %v826 = vld [vmem:[#allocation16 + $0x70] sm:$0xff]
    %v827 = vld [vmem:[#allocation16 + $0x78] sm:$0xff]
    %v828 = vld [vmem:[%s9] sm:$0x1]
    %v830 = vlaneseq
    %v831 = vshrl.u32 %v830, 7
    %v832 = vsub.s32 0, %v831
    %v833 = vrot.slane %v828, %v832
    %835 = vmatprep.subr.mxu0 0.0
    %836 = vmatpush1.msra.mxu0 %v827
    %837 = vmatprep.subr.mxu0 0.0
    %838 = vmatpush1.msra.mxu0 %v826
    %839 = vmatprep.subr.mxu0 0.0
    %840 = vmatpush1.msra.mxu0 %v825
    %841 = vmatprep.subr.mxu0 0.0
    %842 = vmatpush1.msra.mxu0 %v824
    %843 = vmatprep.subr.mxu0 0.0
    %844 = vmatpush1.msra.mxu0 %v823
    %845 = vmatprep.subr.mxu0 0.0
    %846 = vmatpush1.msra.mxu0 %v822
    %847 = vmatprep.subr.mxu0 0.0
    %848 = vmatpush1.msra.mxu0 %v821
    %849 = vmatprep.subr.mxu0 0.0
    %850 = vmatpush1.msra.mxu0 %v820
    %851 = vmatprep.subr.mxu0 0.0
    %852 = vmatpush1.msra.mxu0 %v819
    %853 = vmatprep.subr.mxu0 0.0
    %854 = vmatpush1.msra.mxu0 %v818
    %855 = vmatprep.subr.mxu0 0.0
    %856 = vmatpush1.msra.mxu0 %v817
    %857 = vmatprep.subr.mxu0 0.0
    %858 = vmatpush1.msra.mxu0 %v816
    %859 = vmatprep.subr.mxu0 0.0
    %860 = vmatpush1.msra.mxu0 %v815
    %861 = vmatprep.subr.mxu0 0.0
    %862 = vmatpush1.msra.mxu0 %v814
    %863 = vmatprep.subr.mxu0 0.0
    %864 = vmatpush1.msra.mxu0 %v813
    %865 = vmatprep.subr.mxu0 0.0
    %866 = vmatpush1.msra.mxu0 %v812
    %867 = vmatprep.subr.mxu0 0.0
    %868 = vmatpush2.msra.mxu0 0.0
    %869 = vmatprep.subr.mxu0 0.0
    %870 = vmatpush2.msra.mxu0 0.0
    %871 = vmatprep.subr.mxu0 0.0
    %872 = vmatpush2.msra.mxu0 0.0
    %873 = vmatprep.subr.mxu0 0.0
    %874 = vmatpush2.msra.mxu0 0.0
    %875 = vmatprep.subr.mxu0 0.0
    %876 = vmatpush2.msra.mxu0 0.0
    %877 = vmatprep.subr.mxu0 0.0
    %878 = vmatpush2.msra.mxu0 0.0
    %879 = vmatprep.subr.mxu0 0.0
    %880 = vmatpush2.msra.mxu0 0.0
    %881 = vmatprep.subr.mxu0 0.0
    %882 = vmatpush2.msra.mxu0 0.0
    %883 = vmatprep.subr.mxu0 0.0
    %884 = vmatpush2.msra.mxu0 0.0
    %885 = vmatprep.subr.mxu0 0.0
    %886 = vmatpush2.msra.mxu0 0.0
    %887 = vmatprep.subr.mxu0 0.0
    %888 = vmatpush2.msra.mxu0 0.0
    %889 = vmatprep.subr.mxu0 0.0
    %890 = vmatpush2.msra.mxu0 0.0
    %891 = vmatprep.subr.mxu0 0.0
    %892 = vmatpush2.msra.mxu0 0.0
    %893 = vmatprep.subr.mxu0 0.0
    %894 = vmatpush2.msra.mxu0 0.0
    %895 = vmatprep.subr.mxu0 0.0
    %896 = vmatpush2.msra.mxu0 0.0
    %897 = vmatprep.subr.mxu0 0.0
    %898 = vmatpush2.msra.mxu0 0.0
    %899 = vmatprep.mubr.f32.mxu0 0.0
    %900 = vmatmul.mubr.f32.gmra.mxu0 %v796
    %v901 = vpop.f32.mrf.mxu0
    %v902 = vadd.f32 %v833, %v901
    %v903 = vpop.f32.mrf.mxu0
    %904 = vmatprep.mubr.f32.mxu0 0.0
    %905 = vmatmul.mubr.f32.gmra.mxu0 %v797
    %v906 = vpop.f32.mrf.mxu0
    %v907 = vadd.f32 %v833, %v906
    %v908 = vpop.f32.mrf.mxu0
    %909 = vmatprep.mubr.f32.mxu0 0.0
    %910 = vmatmul.mubr.f32.gmra.mxu0 %v798
    %v911 = vpop.f32.mrf.mxu0
    %v912 = vadd.f32 %v833, %v911
    %v913 = vpop.f32.mrf.mxu0
    %914 = vmatprep.mubr.f32.mxu0 0.0
    %915 = vmatmul.mubr.f32.gmra.mxu0 %v799
    %v916 = vpop.f32.mrf.mxu0
    %v917 = vadd.f32 %v833, %v916
    %v918 = vpop.f32.mrf.mxu0
    %919 = vmatprep.mubr.f32.mxu0 0.0
    %920 = vmatmul.mubr.f32.gmra.mxu0 %v800
    %v921 = vpop.f32.mrf.mxu0
    %v922 = vadd.f32 %v833, %v921
    %v923 = vpop.f32.mrf.mxu0
    %924 = vmatprep.mubr.f32.mxu0 0.0
    %925 = vmatmul.mubr.f32.gmra.mxu0 %v801
    %v926 = vpop.f32.mrf.mxu0
    %v927 = vadd.f32 %v833, %v926
    %v928 = vpop.f32.mrf.mxu0
    %929 = vmatprep.mubr.f32.mxu0 0.0
    %930 = vmatmul.mubr.f32.gmra.mxu0 %v802
    %v931 = vpop.f32.mrf.mxu0
    %v932 = vadd.f32 %v833, %v931
    %v933 = vpop.f32.mrf.mxu0
    %934 = vmatprep.mubr.f32.mxu0 0.0
    %935 = vmatmul.mubr.f32.gmra.mxu0 %v803
    %v936 = vpop.f32.mrf.mxu0
    %v937 = vadd.f32 %v833, %v936
    %v938 = vpop.f32.mrf.mxu0
    %939 = vmatprep.mubr.f32.mxu0 0.0
    %940 = vmatmul.mubr.f32.gmra.mxu0 %v804
    %v941 = vpop.f32.mrf.mxu0
    %v942 = vadd.f32 %v833, %v941
    %v943 = vpop.f32.mrf.mxu0
    %944 = vmatprep.mubr.f32.mxu0 0.0
    %945 = vmatmul.mubr.f32.gmra.mxu0 %v805
    %v946 = vpop.f32.mrf.mxu0
    %v947 = vadd.f32 %v833, %v946
    %v948 = vpop.f32.mrf.mxu0
    %949 = vmatprep.mubr.f32.mxu0 0.0
    %950 = vmatmul.mubr.f32.gmra.mxu0 %v806
    %v951 = vpop.f32.mrf.mxu0
    %v952 = vadd.f32 %v833, %v951
    %v953 = vpop.f32.mrf.mxu0
    %954 = vmatprep.mubr.f32.mxu0 0.0
    %955 = vmatmul.mubr.f32.gmra.mxu0 %v807
    %v956 = vpop.f32.mrf.mxu0
    %v957 = vadd.f32 %v833, %v956
    %v958 = vpop.f32.mrf.mxu0
    %959 = vmatprep.mubr.f32.mxu0 0.0
    %960 = vmatmul.mubr.f32.gmra.mxu0 %v808
    %v961 = vpop.f32.mrf.mxu0
    %v962 = vadd.f32 %v833, %v961
    %v963 = vpop.f32.mrf.mxu0
    %964 = vmatprep.mubr.f32.mxu0 0.0
    %965 = vmatmul.mubr.f32.gmra.mxu0 %v809
    %v966 = vpop.f32.mrf.mxu0
    %v967 = vadd.f32 %v833, %v966
    %v968 = vpop.f32.mrf.mxu0
    %969 = vmatprep.mubr.f32.mxu0 0.0
    %970 = vmatmul.mubr.f32.gmra.mxu0 %v810
    %v971 = vpop.f32.mrf.mxu0
    %v972 = vadd.f32 %v833, %v971
    %v973 = vpop.f32.mrf.mxu0
    %974 = vmatprep.mubr.f32.mxu0 0.0
    %975 = vmatmul.mubr.f32.gmra.mxu0 %v811
    %v976 = vpop.f32.mrf.mxu0
    %v977 = vadd.f32 %v833, %v976
    %v978 = vpop.f32.mrf.mxu0
    %979 = vdwg.mxu0
    %v980 = vmax.f32 %v902, %v922
    %v981 = vmax.f32 %v907, %v927
    %v982 = vmax.f32 %v912, %v932
    %v983 = vmax.f32 %v917, %v937
    %v984 = vmax.f32 %v980, %v942
    %v985 = vmax.f32 %v981, %v947
    %v986 = vmax.f32 %v982, %v952
    %v987 = vmax.f32 %v983, %v957
    %v988 = vmax.f32 %v984, %v962
    %v989 = vmax.f32 %v985, %v967
    %v990 = vmax.f32 %v986, %v972
    %v991 = vmax.f32 %v987, %v977
    %v992 = vmax.f32 %v988, %v989
    %v993 = vmax.f32 %v990, %v991
    %v994 = vmax.f32 %v992, %v993
    %v995 = vrot.slane %v994, 4
    %v996 = vmax.f32 %v994, %v995
    %v997 = vrot.slane %v996, 2
    %v998 = vmax.f32 %v996, %v997
    %v999 = vrot.slane %v998, 1
    %v1000 = vmax.f32 %v998, %v999
    %v1001 = vsub.f32 %v902, %v1000
    %v1002 = vsub.f32 %v907, %v1000
    %v1003 = vsub.f32 %v912, %v1000
    %v1004 = vsub.f32 %v917, %v1000
    %v1005 = vsub.f32 %v922, %v1000
    %v1006 = vsub.f32 %v927, %v1000
    %v1007 = vsub.f32 %v932, %v1000
    %v1008 = vsub.f32 %v937, %v1000
    %v1009 = vsub.f32 %v942, %v1000
    %v1010 = vsub.f32 %v947, %v1000
    %v1011 = vsub.f32 %v952, %v1000
    %v1012 = vsub.f32 %v957, %v1000
    %v1013 = vsub.f32 %v962, %v1000
    %v1014 = vsub.f32 %v967, %v1000
    %v1015 = vsub.f32 %v972, %v1000
    %v1016 = vsub.f32 %v977, %v1000
    %v1017 = vmul.f32 %v1001, 1.442695
    %v1018 = vpow.pop %v1017
    %v1019 = vmul.f32 %v1002, 1.442695
    %v1020 = vpow.pop %v1019
    %v1021 = vmul.f32 %v1003, 1.442695
    %v1022 = vpow.pop %v1021
    %v1023 = vmul.f32 %v1004, 1.442695
    %v1024 = vpow.pop %v1023
    %v1025 = vmul.f32 %v1005, 1.442695
    %v1026 = vpow.pop %v1025
    %v1027 = vmul.f32 %v1006, 1.442695
    %v1028 = vpow.pop %v1027
    %v1029 = vmul.f32 %v1007, 1.442695
    %v1030 = vpow.pop %v1029
    %v1031 = vmul.f32 %v1008, 1.442695
    %v1032 = vpow.pop %v1031
    %v1033 = vmul.f32 %v1009, 1.442695
    %v1034 = vpow.pop %v1033
    %v1035 = vmul.f32 %v1010, 1.442695
    %v1036 = vpow.pop %v1035
    %v1037 = vmul.f32 %v1011, 1.442695
    %v1038 = vpow.pop %v1037
    %v1039 = vmul.f32 %v1012, 1.442695
    %v1040 = vpow.pop %v1039
    %v1041 = vmul.f32 %v1013, 1.442695
    %v1042 = vpow.pop %v1041
    %v1043 = vmul.f32 %v1014, 1.442695
    %v1044 = vpow.pop %v1043
    %v1045 = vmul.f32 %v1015, 1.442695
    %v1046 = vpow.pop %v1045
    %v1047 = vmul.f32 %v1016, 1.442695
    %v1048 = vpow.pop %v1047
    %v1049 = vpack.c.bf16 %v1020, %v1018
    %v1050 = vpack.c.bf16 %v1024, %v1022
    %v1051 = vpack.c.bf16 %v1028, %v1026
    %v1052 = vpack.c.bf16 %v1032, %v1030
    %v1053 = vpack.c.bf16 %v1036, %v1034
    %v1054 = vpack.c.bf16 %v1040, %v1038
    %v1055 = vpack.c.bf16 %v1044, %v1042
    %v1056 = vpack.c.bf16 %v1048, %v1046
    %v1073 = vunpack.c.l.b16 %v306
    %v1074 = vunpack.c.l.b16 %v307
    %v1075 = vunpack.c.l.b16 %v308
    %v1076 = vunpack.c.l.b16 %v309
    %v1077 = vunpack.c.l.b16 %v310
    %v1078 = vunpack.c.l.b16 %v311
    %v1079 = vunpack.c.l.b16 %v312
    %v1080 = vunpack.c.l.b16 %v313
    %v1081 = vunpack.c.l.b16 %v314
    %v1082 = vunpack.c.l.b16 %v315
    %v1083 = vunpack.c.l.b16 %v316
    %v1084 = vunpack.c.l.b16 %v317
    %v1085 = vunpack.c.l.b16 %v318
    %v1086 = vunpack.c.l.b16 %v319
    %v1087 = vunpack.c.l.b16 %v320
    %v1088 = vunpack.c.l.b16 %v321
    %v1089 = vpack.c.b16 %v1074, %v1073
    %v1090 = vpack.c.b16 %v1076, %v1075
    %v1091 = vpack.c.b16 %v1078, %v1077
    %v1092 = vpack.c.b16 %v1080, %v1079
    %v1093 = vpack.c.b16 %v1082, %v1081
    %v1094 = vpack.c.b16 %v1084, %v1083
    %v1095 = vpack.c.b16 %v1086, %v1085
    %v1096 = vpack.c.b16 %v1088, %v1087
    %1105 = vmatprep.subr.bf16.mxu0 0
    %1106 = vmatpush1.bf16.msra.mxu0 %v1056
    %1107 = vmatprep.subr.bf16.mxu0 0
    %1108 = vmatpush1.bf16.msra.mxu0 %v1055
    %1109 = vmatprep.subr.bf16.mxu0 0
    %1110 = vmatpush1.bf16.msra.mxu0 %v1054
    %1111 = vmatprep.subr.bf16.mxu0 0
    %1112 = vmatpush1.bf16.msra.mxu0 %v1053
    %1113 = vmatprep.subr.bf16.mxu0 0
    %1114 = vmatpush1.bf16.msra.mxu0 %v1052
    %1115 = vmatprep.subr.bf16.mxu0 0
    %1116 = vmatpush1.bf16.msra.mxu0 %v1051
    %1117 = vmatprep.subr.bf16.mxu0 0
    %1118 = vmatpush1.bf16.msra.mxu0 %v1050
    %1119 = vmatprep.subr.bf16.mxu0 0
    %1120 = vmatpush1.bf16.msra.mxu0 %v1049
    %1121 = vmatprep.subr.bf16.mxu0 0
    %1122 = vmatpush2.bf16.msra.mxu0 0
    %1123 = vmatprep.subr.bf16.mxu0 0
    %1124 = vmatpush2.bf16.msra.mxu0 0
    %1125 = vmatprep.subr.bf16.mxu0 0
    %1126 = vmatpush2.bf16.msra.mxu0 0
    %1127 = vmatprep.subr.bf16.mxu0 0
    %1128 = vmatpush2.bf16.msra.mxu0 0
    %1129 = vmatprep.subr.bf16.mxu0 0
    %1130 = vmatpush2.bf16.msra.mxu0 0
    %1131 = vmatprep.subr.bf16.mxu0 0
    %1132 = vmatpush2.bf16.msra.mxu0 0
    %1133 = vmatprep.subr.bf16.mxu0 0
    %1134 = vmatpush2.bf16.msra.mxu0 0
    %1135 = vmatprep.subr.bf16.mxu0 0
    %1136 = vmatpush2.bf16.msra.mxu0 0
    %1137 = vmatprep.mubr.bf16.mxu0 0
    %1138 = vmatmul.mubr.bf16.gmra.mxu0 %v1089
    %v1139 = vpop.f32.mrf.mxu0
    %v1140 = vadd.f32 1e-16, %v1139
    %v1141 = vpop.f32.mrf.mxu0
    %v1142 = vpop.f32.mrf.mxu0
    %v1143 = vadd.f32 1e-16, %v1142
    %v1144 = vpop.f32.mrf.mxu0
    %1145 = vmatprep.mubr.bf16.mxu0 0
    %1146 = vmatmul.mubr.bf16.gmra.mxu0 %v1090
    %v1147 = vpop.f32.mrf.mxu0
    %v1148 = vadd.f32 1e-16, %v1147
    %v1149 = vpop.f32.mrf.mxu0
    %v1150 = vpop.f32.mrf.mxu0
    %v1151 = vadd.f32 1e-16, %v1150
    %v1152 = vpop.f32.mrf.mxu0
    %1153 = vmatprep.mubr.bf16.mxu0 0
    %1154 = vmatmul.mubr.bf16.gmra.mxu0 %v1091
    %v1155 = vpop.f32.mrf.mxu0
    %v1156 = vadd.f32 1e-16, %v1155
    %v1157 = vpop.f32.mrf.mxu0
    %v1158 = vpop.f32.mrf.mxu0
    %v1159 = vadd.f32 1e-16, %v1158
    %v1160 = vpop.f32.mrf.mxu0
    %1161 = vmatprep.mubr.bf16.mxu0 0
    %1162 = vmatmul.mubr.bf16.gmra.mxu0 %v1092
    %v1163 = vpop.f32.mrf.mxu0
    %v1164 = vadd.f32 1e-16, %v1163
    %v1165 = vpop.f32.mrf.mxu0
    %v1166 = vpop.f32.mrf.mxu0
    %v1167 = vadd.f32 1e-16, %v1166
    %v1168 = vpop.f32.mrf.mxu0
    %1169 = vmatprep.mubr.bf16.mxu0 0
    %1170 = vmatmul.mubr.bf16.gmra.mxu0 %v1093
    %v1171 = vpop.f32.mrf.mxu0
    %v1172 = vadd.f32 1e-16, %v1171
    %v1173 = vpop.f32.mrf.mxu0
    %v1174 = vpop.f32.mrf.mxu0
    %v1175 = vadd.f32 1e-16, %v1174
    %v1176 = vpop.f32.mrf.mxu0
    %1177 = vmatprep.mubr.bf16.mxu0 0
    %1178 = vmatmul.mubr.bf16.gmra.mxu0 %v1094
    %v1179 = vpop.f32.mrf.mxu0
    %v1180 = vadd.f32 1e-16, %v1179
    %v1181 = vpop.f32.mrf.mxu0
    %v1182 = vpop.f32.mrf.mxu0
    %v1183 = vadd.f32 1e-16, %v1182
    %v1184 = vpop.f32.mrf.mxu0
    %1185 = vmatprep.mubr.bf16.mxu0 0
    %1186 = vmatmul.mubr.bf16.gmra.mxu0 %v1095
    %v1187 = vpop.f32.mrf.mxu0
    %v1188 = vadd.f32 1e-16, %v1187
    %v1189 = vpop.f32.mrf.mxu0
    %v1190 = vpop.f32.mrf.mxu0
    %v1191 = vadd.f32 1e-16, %v1190
    %v1192 = vpop.f32.mrf.mxu0
    %1193 = vmatprep.mubr.bf16.mxu0 0
    %1194 = vmatmul.mubr.bf16.gmra.mxu0 %v1096
    %v1195 = vpop.f32.mrf.mxu0
    %v1196 = vadd.f32 1e-16, %v1195
    %v1197 = vpop.f32.mrf.mxu0
    %v1198 = vpop.f32.mrf.mxu0
    %v1199 = vadd.f32 1e-16, %v1198
    %v1200 = vpop.f32.mrf.mxu0
    %1201 = vdwg.mxu0
    %v1202 = vrcp.pop %v1140
    %v1203 = vrcp.pop %v1143
    %v1204 = vrcp.pop %v1148
    %v1205 = vrcp.pop %v1151
    %v1206 = vrcp.pop %v1156
    %v1207 = vrcp.pop %v1159
    %v1208 = vrcp.pop %v1164
    %v1209 = vrcp.pop %v1167
    %v1210 = vrcp.pop %v1172
    %v1211 = vrcp.pop %v1175
    %v1212 = vrcp.pop %v1180
    %v1213 = vrcp.pop %v1183
    %v1214 = vrcp.pop %v1188
    %v1215 = vrcp.pop %v1191
    %v1216 = vrcp.pop %v1196
    %v1217 = vrcp.pop %v1199
    %v1218 = vpack.c.bf16 %v1203, %v1202
    %v1219 = vpack.c.bf16 %v1205, %v1204
    %v1220 = vpack.c.bf16 %v1207, %v1206
    %v1221 = vpack.c.bf16 %v1209, %v1208
    %v1222 = vpack.c.bf16 %v1211, %v1210
    %v1223 = vpack.c.bf16 %v1213, %v1212
    %v1224 = vpack.c.bf16 %v1215, %v1214
    %v1225 = vpack.c.bf16 %v1217, %v1216
    %v1242 = vunpack.c.l.b16 %v290
    %v1243 = vunpack.c.l.b16 %v291
    %v1244 = vunpack.c.l.b16 %v292
    %v1245 = vunpack.c.l.b16 %v293
    %v1246 = vunpack.c.l.b16 %v294
    %v1247 = vunpack.c.l.b16 %v295
    %v1248 = vunpack.c.l.b16 %v296
    %v1249 = vunpack.c.l.b16 %v297
    %v1250 = vunpack.c.l.b16 %v298
    %v1251 = vunpack.c.l.b16 %v299
    %v1252 = vunpack.c.l.b16 %v300
    %v1253 = vunpack.c.l.b16 %v301
    %v1254 = vunpack.c.l.b16 %v302
    %v1255 = vunpack.c.l.b16 %v303
    %v1256 = vunpack.c.l.b16 %v304
    %v1257 = vunpack.c.l.b16 %v305
    %v1258 = vpack.c.b16 %v1243, %v1242
    %v1259 = vpack.c.b16 %v1245, %v1244
    %v1260 = vpack.c.b16 %v1247, %v1246
    %v1261 = vpack.c.b16 %v1249, %v1248
    %v1262 = vpack.c.b16 %v1251, %v1250
    %v1263 = vpack.c.b16 %v1253, %v1252
    %v1264 = vpack.c.b16 %v1255, %v1254
    %v1265 = vpack.c.b16 %v1257, %v1256
    %1274 = vmatprep.subr.bf16.mxu0 0
    %1275 = vmatpush1.bf16.msra.mxu0 %v1225
    %1276 = vmatprep.subr.bf16.mxu0 0
    %1277 = vmatpush1.bf16.msra.mxu0 %v1224
    %1278 = vmatprep.subr.bf16.mxu0 0
    %1279 = vmatpush1.bf16.msra.mxu0 %v1223
    %1280 = vmatprep.subr.bf16.mxu0 0
    %1281 = vmatpush1.bf16.msra.mxu0 %v1222
    %1282 = vmatprep.subr.bf16.mxu0 0
    %1283 = vmatpush1.bf16.msra.mxu0 %v1221
    %1284 = vmatprep.subr.bf16.mxu0 0
    %1285 = vmatpush1.bf16.msra.mxu0 %v1220
    %1286 = vmatprep.subr.bf16.mxu0 0
    %1287 = vmatpush1.bf16.msra.mxu0 %v1219
    %1288 = vmatprep.subr.bf16.mxu0 0
    %1289 = vmatpush1.bf16.msra.mxu0 %v1218
    %1290 = vmatprep.subr.bf16.mxu0 0
    %1291 = vmatpush2.bf16.msra.mxu0 0
    %1292 = vmatprep.subr.bf16.mxu0 0
    %1293 = vmatpush2.bf16.msra.mxu0 0
    %1294 = vmatprep.subr.bf16.mxu0 0
    %1295 = vmatpush2.bf16.msra.mxu0 0
    %1296 = vmatprep.subr.bf16.mxu0 0
    %1297 = vmatpush2.bf16.msra.mxu0 0
    %1298 = vmatprep.subr.bf16.mxu0 0
    %1299 = vmatpush2.bf16.msra.mxu0 0
    %1300 = vmatprep.subr.bf16.mxu0 0
    %1301 = vmatpush2.bf16.msra.mxu0 0
    %1302 = vmatprep.subr.bf16.mxu0 0
    %1303 = vmatpush2.bf16.msra.mxu0 0
    %1304 = vmatprep.subr.bf16.mxu0 0
    %1305 = vmatpush2.bf16.msra.mxu0 0
    %1306 = vmatprep.mubr.bf16.mxu0 0
    %1307 = vmatmul.mubr.bf16.gmra.mxu0 %v1258
    %v1308 = vpop.f32.mrf.mxu0
    %v1309 = vadd.f32 0.0, %v1308
    %v1310 = vpop.f32.mrf.mxu0
    %v1311 = vpop.f32.mrf.mxu0
    %v1312 = vadd.f32 0.0, %v1311
    %v1313 = vpop.f32.mrf.mxu0
    %1314 = vmatprep.mubr.bf16.mxu0 0
    %1315 = vmatmul.mubr.bf16.gmra.mxu0 %v1259
    %v1316 = vpop.f32.mrf.mxu0
    %v1317 = vadd.f32 0.0, %v1316
    %v1318 = vpop.f32.mrf.mxu0
    %v1319 = vpop.f32.mrf.mxu0
    %v1320 = vadd.f32 0.0, %v1319
    %v1321 = vpop.f32.mrf.mxu0
    %1322 = vmatprep.mubr.bf16.mxu0 0
    %1323 = vmatmul.mubr.bf16.gmra.mxu0 %v1260
    %v1324 = vpop.f32.mrf.mxu0
    %v1325 = vadd.f32 0.0, %v1324
    %v1326 = vpop.f32.mrf.mxu0
    %v1327 = vpop.f32.mrf.mxu0
    %v1328 = vadd.f32 0.0, %v1327
    %v1329 = vpop.f32.mrf.mxu0
    %1330 = vmatprep.mubr.bf16.mxu0 0
    %1331 = vmatmul.mubr.bf16.gmra.mxu0 %v1261
    %v1332 = vpop.f32.mrf.mxu0
    %v1333 = vadd.f32 0.0, %v1332
    %v1334 = vpop.f32.mrf.mxu0
    %v1335 = vpop.f32.mrf.mxu0
    %v1336 = vadd.f32 0.0, %v1335
    %v1337 = vpop.f32.mrf.mxu0
    %1338 = vmatprep.mubr.bf16.mxu0 0
    %1339 = vmatmul.mubr.bf16.gmra.mxu0 %v1262
    %v1340 = vpop.f32.mrf.mxu0
    %v1341 = vadd.f32 0.0, %v1340
    %v1342 = vpop.f32.mrf.mxu0
    %v1343 = vpop.f32.mrf.mxu0
    %v1344 = vadd.f32 0.0, %v1343
    %v1345 = vpop.f32.mrf.mxu0
    %1346 = vmatprep.mubr.bf16.mxu0 0
    %1347 = vmatmul.mubr.bf16.gmra.mxu0 %v1263
    %v1348 = vpop.f32.mrf.mxu0
    %v1349 = vadd.f32 0.0, %v1348
    %v1350 = vpop.f32.mrf.mxu0
    %v1351 = vpop.f32.mrf.mxu0
    %v1352 = vadd.f32 0.0, %v1351
    %v1353 = vpop.f32.mrf.mxu0
    %1354 = vmatprep.mubr.bf16.mxu0 0
    %1355 = vmatmul.mubr.bf16.gmra.mxu0 %v1264
    %v1356 = vpop.f32.mrf.mxu0
    %v1357 = vadd.f32 0.0, %v1356
    %v1358 = vpop.f32.mrf.mxu0
    %v1359 = vpop.f32.mrf.mxu0
    %v1360 = vadd.f32 0.0, %v1359
    %v1361 = vpop.f32.mrf.mxu0
    %1362 = vmatprep.mubr.bf16.mxu0 0
    %1363 = vmatmul.mubr.bf16.gmra.mxu0 %v1265
    %v1364 = vpop.f32.mrf.mxu0
    %v1365 = vadd.f32 0.0, %v1364
    %v1366 = vpop.f32.mrf.mxu0
    %v1367 = vpop.f32.mrf.mxu0
    %v1368 = vadd.f32 0.0, %v1367
    %v1369 = vpop.f32.mrf.mxu0
    %1370 = vdwg.mxu0
    %v1371 = vmul.f32 %v1018, %v1309
    %v1372 = vmul.f32 %v1020, %v1312
    %v1373 = vmul.f32 %v1022, %v1317
    %v1374 = vmul.f32 %v1024, %v1320
    %v1375 = vmul.f32 %v1026, %v1325
    %v1376 = vmul.f32 %v1028, %v1328
    %v1377 = vmul.f32 %v1030, %v1333
    %v1378 = vmul.f32 %v1032, %v1336
    %v1379 = vmul.f32 %v1034, %v1341
    %v1380 = vmul.f32 %v1036, %v1344
    %v1381 = vmul.f32 %v1038, %v1349
    %v1382 = vmul.f32 %v1040, %v1352
    %v1383 = vmul.f32 %v1042, %v1357
    %v1384 = vmul.f32 %v1044, %v1360
    %v1385 = vmul.f32 %v1046, %v1365
    %v1386 = vmul.f32 %v1048, %v1368
    %v1387 = vpack.c.bf16 %v529, %v525
    %v1388 = vpack.c.bf16 %v531, %v527
    %v1389 = vpack.c.bf16 %v539, %v535
    %v1390 = vpack.c.bf16 %v541, %v537
    %v1391 = vpack.c.bf16 %v549, %v545
    %v1392 = vpack.c.bf16 %v551, %v547
    %v1393 = vpack.c.bf16 %v559, %v555
    %v1394 = vpack.c.bf16 %v561, %v557
    %v1395 = vpack.c.bf16 %v569, %v565
    %v1396 = vpack.c.bf16 %v571, %v567
    %v1397 = vpack.c.bf16 %v579, %v575
    %v1398 = vpack.c.bf16 %v581, %v577
    %v1399 = vpack.c.bf16 %v589, %v585
    %v1400 = vpack.c.bf16 %v591, %v587
    %v1401 = vpack.c.bf16 %v599, %v595
    %v1402 = vpack.c.bf16 %v601, %v597
    %1403 = vmatprep.subr.bf16.mxu0 %v1402
    %1404 = vmatpush1.bf16.msra.mxu0 %v1401
    %1405 = vmatprep.subr.bf16.mxu0 %v1400
    %1406 = vmatpush1.bf16.msra.mxu0 %v1399
    %1407 = vmatprep.subr.bf16.mxu0 %v1398
    %1408 = vmatpush1.bf16.msra.mxu0 %v1397
    %1409 = vmatprep.subr.bf16.mxu0 %v1396
    %1410 = vmatpush1.bf16.msra.mxu0 %v1395
    %1411 = vmatprep.subr.bf16.mxu0 %v1394
    %1412 = vmatpush1.bf16.msra.mxu0 %v1393
    %1413 = vmatprep.subr.bf16.mxu0 %v1392
    %1414 = vmatpush1.bf16.msra.mxu0 %v1391
    %1415 = vmatprep.subr.bf16.mxu0 %v1390
    %1416 = vmatpush1.bf16.msra.mxu0 %v1389
    %1417 = vmatprep.subr.bf16.mxu0 %v1388
    %1418 = vmatpush1.bf16.msra.mxu0 %v1387
    %1419 = vmatprep.subr.bf16.mxu0 0
    %1420 = vmatpush2.bf16.msra.mxu0 0
    %1421 = vmatprep.subr.bf16.mxu0 0
    %1422 = vmatpush2.bf16.msra.mxu0 0
    %1423 = vmatprep.subr.bf16.mxu0 0
    %1424 = vmatpush2.bf16.msra.mxu0 0
    %1425 = vmatprep.subr.bf16.mxu0 0
    %1426 = vmatpush2.bf16.msra.mxu0 0
    %1427 = vmatprep.subr.bf16.mxu0 0
    %1428 = vmatpush2.bf16.msra.mxu0 0
    %1429 = vmatprep.subr.bf16.mxu0 0
    %1430 = vmatpush2.bf16.msra.mxu0 0
    %1431 = vmatprep.subr.bf16.mxu0 0
    %1432 = vmatpush2.bf16.msra.mxu0 0
    %1433 = vmatprep.subr.bf16.mxu0 0
    %1434 = vmatpush2.bf16.msra.mxu0 0
    %1435 = vmatprep.mubr.bf16.mxu0 0
    %1436 = vmatmul.mubr.bf16.gmra.mxu0 %v1258
    %v1437 = vpop.f32.mrf.mxu0
    %v1438 = vadd.f32 0.0, %v1437
    %v1439 = vpop.f32.mrf.mxu0
    %v1440 = vadd.f32 0.0, %v1439
    %v1441 = vpop.f32.mrf.mxu0
    %v1442 = vadd.f32 0.0, %v1441
    %v1443 = vpop.f32.mrf.mxu0
    %v1444 = vadd.f32 0.0, %v1443
    %1445 = vmatprep.mubr.bf16.mxu0 0
    %1446 = vmatmul.mubr.bf16.gmra.mxu0 %v1259
    %v1447 = vpop.f32.mrf.mxu0
    %v1448 = vadd.f32 0.0, %v1447
    %v1449 = vpop.f32.mrf.mxu0
    %v1450 = vadd.f32 0.0, %v1449
    %v1451 = vpop.f32.mrf.mxu0
    %v1452 = vadd.f32 0.0, %v1451
    %v1453 = vpop.f32.mrf.mxu0
    %v1454 = vadd.f32 0.0, %v1453
    %1455 = vmatprep.mubr.bf16.mxu0 0
    %1456 = vmatmul.mubr.bf16.gmra.mxu0 %v1260
    %v1457 = vpop.f32.mrf.mxu0
    %v1458 = vadd.f32 0.0, %v1457
    %v1459 = vpop.f32.mrf.mxu0
    %v1460 = vadd.f32 0.0, %v1459
    %v1461 = vpop.f32.mrf.mxu0
    %v1462 = vadd.f32 0.0, %v1461
    %v1463 = vpop.f32.mrf.mxu0
    %v1464 = vadd.f32 0.0, %v1463
    %1465 = vmatprep.mubr.bf16.mxu0 0
    %1466 = vmatmul.mubr.bf16.gmra.mxu0 %v1261
    %v1467 = vpop.f32.mrf.mxu0
    %v1468 = vadd.f32 0.0, %v1467
    %v1469 = vpop.f32.mrf.mxu0
    %v1470 = vadd.f32 0.0, %v1469
    %v1471 = vpop.f32.mrf.mxu0
    %v1472 = vadd.f32 0.0, %v1471
    %v1473 = vpop.f32.mrf.mxu0
    %v1474 = vadd.f32 0.0, %v1473
    %1475 = vmatprep.mubr.bf16.mxu0 0
    %1476 = vmatmul.mubr.bf16.gmra.mxu0 %v1262
    %v1477 = vpop.f32.mrf.mxu0
    %v1478 = vadd.f32 0.0, %v1477
    %v1479 = vpop.f32.mrf.mxu0
    %v1480 = vadd.f32 0.0, %v1479
    %v1481 = vpop.f32.mrf.mxu0
    %v1482 = vadd.f32 0.0, %v1481
    %v1483 = vpop.f32.mrf.mxu0
    %v1484 = vadd.f32 0.0, %v1483
    %1485 = vmatprep.mubr.bf16.mxu0 0
    %1486 = vmatmul.mubr.bf16.gmra.mxu0 %v1263
    %v1487 = vpop.f32.mrf.mxu0
    %v1488 = vadd.f32 0.0, %v1487
    %v1489 = vpop.f32.mrf.mxu0
    %v1490 = vadd.f32 0.0, %v1489
    %v1491 = vpop.f32.mrf.mxu0
    %v1492 = vadd.f32 0.0, %v1491
    %v1493 = vpop.f32.mrf.mxu0
    %v1494 = vadd.f32 0.0, %v1493
    %1495 = vmatprep.mubr.bf16.mxu0 0
    %1496 = vmatmul.mubr.bf16.gmra.mxu0 %v1264
    %v1497 = vpop.f32.mrf.mxu0
    %v1498 = vadd.f32 0.0, %v1497
    %v1499 = vpop.f32.mrf.mxu0
    %v1500 = vadd.f32 0.0, %v1499
    %v1501 = vpop.f32.mrf.mxu0
    %v1502 = vadd.f32 0.0, %v1501
    %v1503 = vpop.f32.mrf.mxu0
    %v1504 = vadd.f32 0.0, %v1503
    %1505 = vmatprep.mubr.bf16.mxu0 0
    %1506 = vmatmul.mubr.bf16.gmra.mxu0 %v1265
    %v1507 = vpop.f32.mrf.mxu0
    %v1508 = vadd.f32 0.0, %v1507
    %v1509 = vpop.f32.mrf.mxu0
    %v1510 = vadd.f32 0.0, %v1509
    %v1511 = vpop.f32.mrf.mxu0
    %v1512 = vadd.f32 0.0, %v1511
    %v1513 = vpop.f32.mrf.mxu0
    %v1514 = vadd.f32 0.0, %v1513
    %1515 = vdwg.mxu0
    %v1516 = vmul.f32 %v1371, %v1438
    %v1517 = vmul.f32 %v1372, %v1442
    %v1518 = vmul.f32 %v1373, %v1448
    %v1519 = vmul.f32 %v1374, %v1452
    %v1520 = vmul.f32 %v1375, %v1458
    %v1521 = vmul.f32 %v1376, %v1462
    %v1522 = vmul.f32 %v1377, %v1468
    %v1523 = vmul.f32 %v1378, %v1472
    %v1524 = vmul.f32 %v1379, %v1478
    %v1525 = vmul.f32 %v1380, %v1482
    %v1526 = vmul.f32 %v1381, %v1488
    %v1527 = vmul.f32 %v1382, %v1492
    %v1528 = vmul.f32 %v1383, %v1498
    %v1529 = vmul.f32 %v1384, %v1502
    %v1530 = vmul.f32 %v1385, %v1508
    %v1531 = vmul.f32 %v1386, %v1512
    %v1532 = vpack.c.bf16 %v1517, %v1516
    %v1533 = vpack.c.bf16 %v1519, %v1518
    %v1534 = vpack.c.bf16 %v1521, %v1520
    %v1535 = vpack.c.bf16 %v1523, %v1522
    %v1536 = vpack.c.bf16 %v1525, %v1524
    %v1537 = vpack.c.bf16 %v1527, %v1526
    %v1538 = vpack.c.bf16 %v1529, %v1528
    %v1539 = vpack.c.bf16 %v1531, %v1530
    %v1556 = vunpack.c.l.b16 %v322
    %v1557 = vunpack.c.l.b16 %v323
    %v1558 = vunpack.c.l.b16 %v324
    %v1559 = vunpack.c.l.b16 %v325
    %v1560 = vunpack.c.l.b16 %v326
    %v1561 = vunpack.c.l.b16 %v327
    %v1562 = vunpack.c.l.b16 %v328
    %v1563 = vunpack.c.l.b16 %v329
    %v1564 = vunpack.c.l.b16 %v330
    %v1565 = vunpack.c.l.b16 %v331
    %v1566 = vunpack.c.l.b16 %v332
    %v1567 = vunpack.c.l.b16 %v333
    %v1568 = vunpack.c.l.b16 %v334
    %v1569 = vunpack.c.l.b16 %v335
    %v1570 = vunpack.c.l.b16 %v336
    %v1571 = vunpack.c.l.b16 %v337
    %v1572 = vpack.c.b16 %v1557, %v1556
    %v1573 = vpack.c.b16 %v1559, %v1558
    %v1574 = vpack.c.b16 %v1561, %v1560
    %v1575 = vpack.c.b16 %v1563, %v1562
    %v1576 = vpack.c.b16 %v1565, %v1564
    %v1577 = vpack.c.b16 %v1567, %v1566
    %v1578 = vpack.c.b16 %v1569, %v1568
    %v1579 = vpack.c.b16 %v1571, %v1570
    %1588 = vmatprep.subr.bf16.mxu0 0
    %1589 = vmatpush1.bf16.msra.mxu0 %v1539
    %1590 = vmatprep.subr.bf16.mxu0 0
    %1591 = vmatpush1.bf16.msra.mxu0 %v1538
    %1592 = vmatprep.subr.bf16.mxu0 0
    %1593 = vmatpush1.bf16.msra.mxu0 %v1537
    %1594 = vmatprep.subr.bf16.mxu0 0
    %1595 = vmatpush1.bf16.msra.mxu0 %v1536
    %1596 = vmatprep.subr.bf16.mxu0 0
    %1597 = vmatpush1.bf16.msra.mxu0 %v1535
    %1598 = vmatprep.subr.bf16.mxu0 0
    %1599 = vmatpush1.bf16.msra.mxu0 %v1534
    %1600 = vmatprep.subr.bf16.mxu0 0
    %1601 = vmatpush1.bf16.msra.mxu0 %v1533
    %1602 = vmatprep.subr.bf16.mxu0 0
    %1603 = vmatpush1.bf16.msra.mxu0 %v1532
    %1604 = vmatprep.subr.bf16.mxu0 0
    %1605 = vmatpush2.bf16.msra.mxu0 0
    %1606 = vmatprep.subr.bf16.mxu0 0
    %1607 = vmatpush2.bf16.msra.mxu0 0
    %1608 = vmatprep.subr.bf16.mxu0 0
    %1609 = vmatpush2.bf16.msra.mxu0 0
    %1610 = vmatprep.subr.bf16.mxu0 0
    %1611 = vmatpush2.bf16.msra.mxu0 0
    %1612 = vmatprep.subr.bf16.mxu0 0
    %1613 = vmatpush2.bf16.msra.mxu0 0
    %1614 = vmatprep.subr.bf16.mxu0 0
    %1615 = vmatpush2.bf16.msra.mxu0 0
    %1616 = vmatprep.subr.bf16.mxu0 0
    %1617 = vmatpush2.bf16.msra.mxu0 0
    %1618 = vmatprep.subr.bf16.mxu0 0
    %1619 = vmatpush2.bf16.msra.mxu0 0
    %1620 = vmatprep.mubr.bf16.mxu0 0
    %1621 = vmatmul.mubr.bf16.gmra.mxu0 %v1572
    %v1622 = vpop.f32.mrf.mxu0
    %v1623 = vadd.f32 0.0, %v1622
    %v1624 = vpop.f32.mrf.mxu0
    %v1625 = vpop.f32.mrf.mxu0
    %v1626 = vadd.f32 0.0, %v1625
    %v1627 = vpop.f32.mrf.mxu0
    %1628 = vmatprep.mubr.bf16.mxu0 0
    %1629 = vmatmul.mubr.bf16.gmra.mxu0 %v1573
    %v1630 = vpop.f32.mrf.mxu0
    %v1631 = vadd.f32 0.0, %v1630
    %v1632 = vpop.f32.mrf.mxu0
    %v1633 = vpop.f32.mrf.mxu0
    %v1634 = vadd.f32 0.0, %v1633
    %v1635 = vpop.f32.mrf.mxu0
    %1636 = vmatprep.mubr.bf16.mxu0 0
    %1637 = vmatmul.mubr.bf16.gmra.mxu0 %v1574
    %v1638 = vpop.f32.mrf.mxu0
    %v1639 = vadd.f32 0.0, %v1638
    %v1640 = vpop.f32.mrf.mxu0
    %v1641 = vpop.f32.mrf.mxu0
    %v1642 = vadd.f32 0.0, %v1641
    %v1643 = vpop.f32.mrf.mxu0
    %1644 = vmatprep.mubr.bf16.mxu0 0
    %1645 = vmatmul.mubr.bf16.gmra.mxu0 %v1575
    %v1646 = vpop.f32.mrf.mxu0
    %v1647 = vadd.f32 0.0, %v1646
    %v1648 = vpop.f32.mrf.mxu0
    %v1649 = vpop.f32.mrf.mxu0
    %v1650 = vadd.f32 0.0, %v1649
    %v1651 = vpop.f32.mrf.mxu0
    %1652 = vmatprep.mubr.bf16.mxu0 0
    %1653 = vmatmul.mubr.bf16.gmra.mxu0 %v1576
    %v1654 = vpop.f32.mrf.mxu0
    %v1655 = vadd.f32 0.0, %v1654
    %v1656 = vpop.f32.mrf.mxu0
    %v1657 = vpop.f32.mrf.mxu0
    %v1658 = vadd.f32 0.0, %v1657
    %v1659 = vpop.f32.mrf.mxu0
    %1660 = vmatprep.mubr.bf16.mxu0 0
    %1661 = vmatmul.mubr.bf16.gmra.mxu0 %v1577
    %v1662 = vpop.f32.mrf.mxu0
    %v1663 = vadd.f32 0.0, %v1662
    %v1664 = vpop.f32.mrf.mxu0
    %v1665 = vpop.f32.mrf.mxu0
    %v1666 = vadd.f32 0.0, %v1665
    %v1667 = vpop.f32.mrf.mxu0
    %1668 = vmatprep.mubr.bf16.mxu0 0
    %1669 = vmatmul.mubr.bf16.gmra.mxu0 %v1578
    %v1670 = vpop.f32.mrf.mxu0
    %v1671 = vadd.f32 0.0, %v1670
    %v1672 = vpop.f32.mrf.mxu0
    %v1673 = vpop.f32.mrf.mxu0
    %v1674 = vadd.f32 0.0, %v1673
    %v1675 = vpop.f32.mrf.mxu0
    %1676 = vmatprep.mubr.bf16.mxu0 0
    %1677 = vmatmul.mubr.bf16.gmra.mxu0 %v1579
    %v1678 = vpop.f32.mrf.mxu0
    %v1679 = vadd.f32 0.0, %v1678
    %v1680 = vpop.f32.mrf.mxu0
    %v1681 = vpop.f32.mrf.mxu0
    %v1682 = vadd.f32 0.0, %v1681
    %v1683 = vpop.f32.mrf.mxu0
    %1684 = vdwg.mxu0
    %v1685 = vmul.f32 %v1371, %v1440
    %v1686 = vmul.f32 %v1372, %v1444
    %v1687 = vmul.f32 %v1373, %v1450
    %v1688 = vmul.f32 %v1374, %v1454
    %v1689 = vmul.f32 %v1375, %v1460
    %v1690 = vmul.f32 %v1376, %v1464
    %v1691 = vmul.f32 %v1377, %v1470
    %v1692 = vmul.f32 %v1378, %v1474
    %v1693 = vmul.f32 %v1379, %v1480
    %v1694 = vmul.f32 %v1380, %v1484
    %v1695 = vmul.f32 %v1381, %v1490
    %v1696 = vmul.f32 %v1382, %v1494
    %v1697 = vmul.f32 %v1383, %v1500
    %v1698 = vmul.f32 %v1384, %v1504
    %v1699 = vmul.f32 %v1385, %v1510
    %v1700 = vmul.f32 %v1386, %v1514
    %v1701 = vpack.c.bf16 %v1686, %v1685
    %v1702 = vpack.c.bf16 %v1688, %v1687
    %v1703 = vpack.c.bf16 %v1690, %v1689
    %v1704 = vpack.c.bf16 %v1692, %v1691
    %v1705 = vpack.c.bf16 %v1694, %v1693
    %v1706 = vpack.c.bf16 %v1696, %v1695
    %v1707 = vpack.c.bf16 %v1698, %v1697
    %v1708 = vpack.c.bf16 %v1700, %v1699
    %1709 = vmatprep.subr.bf16.mxu0 0
    %1710 = vmatpush1.bf16.msra.mxu0 %v1708
    %1711 = vmatprep.subr.bf16.mxu0 0
    %1712 = vmatpush1.bf16.msra.mxu0 %v1707
    %1713 = vmatprep.subr.bf16.mxu0 0
    %1714 = vmatpush1.bf16.msra.mxu0 %v1706
    %1715 = vmatprep.subr.bf16.mxu0 0
    %1716 = vmatpush1.bf16.msra.mxu0 %v1705
    %1717 = vmatprep.subr.bf16.mxu0 0
    %1718 = vmatpush1.bf16.msra.mxu0 %v1704
    %1719 = vmatprep.subr.bf16.mxu0 0
    %1720 = vmatpush1.bf16.msra.mxu0 %v1703
    %1721 = vmatprep.subr.bf16.mxu0 0
    %1722 = vmatpush1.bf16.msra.mxu0 %v1702
    %1723 = vmatprep.subr.bf16.mxu0 0
    %1724 = vmatpush1.bf16.msra.mxu0 %v1701
    %1725 = vmatprep.subr.bf16.mxu0 0
    %1726 = vmatpush2.bf16.msra.mxu0 0
    %1727 = vmatprep.subr.bf16.mxu0 0
    %1728 = vmatpush2.bf16.msra.mxu0 0
    %1729 = vmatprep.subr.bf16.mxu0 0
    %1730 = vmatpush2.bf16.msra.mxu0 0
    %1731 = vmatprep.subr.bf16.mxu0 0
    %1732 = vmatpush2.bf16.msra.mxu0 0
    %1733 = vmatprep.subr.bf16.mxu0 0
    %1734 = vmatpush2.bf16.msra.mxu0 0
    %1735 = vmatprep.subr.bf16.mxu0 0
    %1736 = vmatpush2.bf16.msra.mxu0 0
    %1737 = vmatprep.subr.bf16.mxu0 0
    %1738 = vmatpush2.bf16.msra.mxu0 0
    %1739 = vmatprep.subr.bf16.mxu0 0
    %1740 = vmatpush2.bf16.msra.mxu0 0
    %1741 = vmatprep.mubr.bf16.mxu0 0
    %1742 = vmatmul.mubr.bf16.gmra.mxu0 %v1572
    %v1743 = vpop.f32.mrf.mxu0
    %v1744 = vadd.f32 0.0, %v1743
    %v1745 = vpop.f32.mrf.mxu0
    %v1746 = vpop.f32.mrf.mxu0
    %v1747 = vadd.f32 0.0, %v1746
    %v1748 = vpop.f32.mrf.mxu0
    %1749 = vmatprep.mubr.bf16.mxu0 0
    %1750 = vmatmul.mubr.bf16.gmra.mxu0 %v1573
    %v1751 = vpop.f32.mrf.mxu0
    %v1752 = vadd.f32 0.0, %v1751
    %v1753 = vpop.f32.mrf.mxu0
    %v1754 = vpop.f32.mrf.mxu0
    %v1755 = vadd.f32 0.0, %v1754
    %v1756 = vpop.f32.mrf.mxu0
    %1757 = vmatprep.mubr.bf16.mxu0 0
    %1758 = vmatmul.mubr.bf16.gmra.mxu0 %v1574
    %v1759 = vpop.f32.mrf.mxu0
    %v1760 = vadd.f32 0.0, %v1759
    %v1761 = vpop.f32.mrf.mxu0
    %v1762 = vpop.f32.mrf.mxu0
    %v1763 = vadd.f32 0.0, %v1762
    %v1764 = vpop.f32.mrf.mxu0
    %1765 = vmatprep.mubr.bf16.mxu0 0
    %1766 = vmatmul.mubr.bf16.gmra.mxu0 %v1575
    %v1767 = vpop.f32.mrf.mxu0
    %v1768 = vadd.f32 0.0, %v1767
    %v1769 = vpop.f32.mrf.mxu0
    %v1770 = vpop.f32.mrf.mxu0
    %v1771 = vadd.f32 0.0, %v1770
    %v1772 = vpop.f32.mrf.mxu0
    %1773 = vmatprep.mubr.bf16.mxu0 0
    %1774 = vmatmul.mubr.bf16.gmra.mxu0 %v1576
    %v1775 = vpop.f32.mrf.mxu0
    %v1776 = vadd.f32 0.0, %v1775
    %v1777 = vpop.f32.mrf.mxu0
    %v1778 = vpop.f32.mrf.mxu0
    %v1779 = vadd.f32 0.0, %v1778
    %v1780 = vpop.f32.mrf.mxu0
    %1781 = vmatprep.mubr.bf16.mxu0 0
    %1782 = vmatmul.mubr.bf16.gmra.mxu0 %v1577
    %v1783 = vpop.f32.mrf.mxu0
    %v1784 = vadd.f32 0.0, %v1783
    %v1785 = vpop.f32.mrf.mxu0
    %v1786 = vpop.f32.mrf.mxu0
    %v1787 = vadd.f32 0.0, %v1786
    %v1788 = vpop.f32.mrf.mxu0
    %1789 = vmatprep.mubr.bf16.mxu0 0
    %1790 = vmatmul.mubr.bf16.gmra.mxu0 %v1578
    %v1791 = vpop.f32.mrf.mxu0
    %v1792 = vadd.f32 0.0, %v1791
    %v1793 = vpop.f32.mrf.mxu0
    %v1794 = vpop.f32.mrf.mxu0
    %v1795 = vadd.f32 0.0, %v1794
    %v1796 = vpop.f32.mrf.mxu0
    %1797 = vmatprep.mubr.bf16.mxu0 0
    %1798 = vmatmul.mubr.bf16.gmra.mxu0 %v1579
    %v1799 = vpop.f32.mrf.mxu0
    %v1800 = vadd.f32 0.0, %v1799
    %v1801 = vpop.f32.mrf.mxu0
    %v1802 = vpop.f32.mrf.mxu0
    %v1803 = vadd.f32 0.0, %v1802
    %v1804 = vpop.f32.mrf.mxu0
    %1805 = vdwg.mxu0
    %v1806 = vld [vmem:[%s13] sm:$0x3]
    %v1808 = vlaneseq
    %v1809 = vshrl.u32 %v1808, 7
    %v1810 = vsub.s32 0, %v1809
    %v1811 = vrot.slane %v1806, %v1810
    %v1812 = vlaneseq
    %v1813 = vshrl.u32 %v1812, 7
    %v1814 = vsub.s32 1, %v1813
    %v1815 = vrot.slane %v1806, %v1814
    %v1818 = vadd.f32 %v1623, %v1811
    %v1819 = vadd.f32 %v1744, %v1815
    %v1820 = vadd.f32 %v1626, %v1811
    %v1821 = vadd.f32 %v1747, %v1815
    %v1822 = vadd.f32 %v1631, %v1811
    %v1823 = vadd.f32 %v1752, %v1815
    %v1824 = vadd.f32 %v1634, %v1811
    %v1825 = vadd.f32 %v1755, %v1815
    %v1826 = vadd.f32 %v1639, %v1811
    %v1827 = vadd.f32 %v1760, %v1815
    %v1828 = vadd.f32 %v1642, %v1811
    %v1829 = vadd.f32 %v1763, %v1815
    %v1830 = vadd.f32 %v1647, %v1811
    %v1831 = vadd.f32 %v1768, %v1815
    %v1832 = vadd.f32 %v1650, %v1811
    %v1833 = vadd.f32 %v1771, %v1815
    %v1834 = vadd.f32 %v1655, %v1811
    %v1835 = vadd.f32 %v1776, %v1815
    %v1836 = vadd.f32 %v1658, %v1811
    %v1837 = vadd.f32 %v1779, %v1815
    %v1838 = vadd.f32 %v1663, %v1811
    %v1839 = vadd.f32 %v1784, %v1815
    %v1840 = vadd.f32 %v1666, %v1811
    %v1841 = vadd.f32 %v1787, %v1815
    %v1842 = vadd.f32 %v1671, %v1811
    %v1843 = vadd.f32 %v1792, %v1815
    %v1844 = vadd.f32 %v1674, %v1811
    %v1845 = vadd.f32 %v1795, %v1815
    %v1846 = vadd.f32 %v1679, %v1811
    %v1847 = vadd.f32 %v1800, %v1815
    %v1848 = vadd.f32 %v1682, %v1811
    %v1849 = vadd.f32 %v1803, %v1815
    %v1850 = vld [vmem:[#allocation17] sm:$0xff]
    %v1851 = vld [vmem:[#allocation17 + $0x8] sm:$0xff]
    %v1852 = vld [vmem:[#allocation17 + $0x10] sm:$0xff]
    %v1853 = vld [vmem:[#allocation17 + $0x18] sm:$0xff]
    %v1854 = vld [vmem:[#allocation17 + $0x20] sm:$0xff]
    %v1855 = vld [vmem:[#allocation17 + $0x28] sm:$0xff]
    %v1856 = vld [vmem:[#allocation17 + $0x30] sm:$0xff]
    %v1857 = vld [vmem:[#allocation17 + $0x38] sm:$0xff]
    %v1858 = vld [vmem:[#allocation17 + $0x40] sm:$0xff]
    %v1859 = vld [vmem:[#allocation17 + $0x48] sm:$0xff]
    %v1860 = vld [vmem:[#allocation17 + $0x50] sm:$0xff]
    %v1861 = vld [vmem:[#allocation17 + $0x58] sm:$0xff]
    %v1862 = vld [vmem:[#allocation17 + $0x60] sm:$0xff]
    %v1863 = vld [vmem:[#allocation17 + $0x68] sm:$0xff]
    %v1864 = vld [vmem:[#allocation17 + $0x70] sm:$0xff]
    %v1865 = vld [vmem:[#allocation17 + $0x78] sm:$0xff]
    %v1866 = vld [vmem:[#allocation17 + $0x80] sm:$0xff]
    %v1867 = vld [vmem:[#allocation17 + $0x88] sm:$0xff]
    %v1868 = vld [vmem:[#allocation17 + $0x90] sm:$0xff]
    %v1869 = vld [vmem:[#allocation17 + $0x98] sm:$0xff]
    %v1870 = vld [vmem:[#allocation17 + $0xa0] sm:$0xff]
    %v1871 = vld [vmem:[#allocation17 + $0xa8] sm:$0xff]
    %v1872 = vld [vmem:[#allocation17 + $0xb0] sm:$0xff]
    %v1873 = vld [vmem:[#allocation17 + $0xb8] sm:$0xff]
    %v1874 = vld [vmem:[#allocation17 + $0xc0] sm:$0xff]
    %v1875 = vld [vmem:[#allocation17 + $0xc8] sm:$0xff]
    %v1876 = vld [vmem:[#allocation17 + $0xd0] sm:$0xff]
    %v1877 = vld [vmem:[#allocation17 + $0xd8] sm:$0xff]
    %v1878 = vld [vmem:[#allocation17 + $0xe0] sm:$0xff]
    %v1879 = vld [vmem:[#allocation17 + $0xe8] sm:$0xff]
    %v1880 = vld [vmem:[#allocation17 + $0xf0] sm:$0xff]
    %v1881 = vld [vmem:[#allocation17 + $0xf8] sm:$0xff]
    %1882 = vmatprep.subr.mxu0 %v1881
    %1883 = vmatpush1.msra.mxu0 %v1880
    %1884 = vmatprep.subr.mxu0 %v1879
    %1885 = vmatpush1.msra.mxu0 %v1878
    %1886 = vmatprep.subr.mxu0 %v1877
    %1887 = vmatpush1.msra.mxu0 %v1876
    %1888 = vmatprep.subr.mxu0 %v1875
    %1889 = vmatpush1.msra.mxu0 %v1874
    %1890 = vmatprep.subr.mxu0 %v1873
    %1891 = vmatpush1.msra.mxu0 %v1872
    %1892 = vmatprep.subr.mxu0 %v1871
    %1893 = vmatpush1.msra.mxu0 %v1870
    %1894 = vmatprep.subr.mxu0 %v1869
    %1895 = vmatpush1.msra.mxu0 %v1868
    %1896 = vmatprep.subr.mxu0 %v1867
    %1897 = vmatpush1.msra.mxu0 %v1866
    %1898 = vmatprep.subr.mxu0 %v1865
    %1899 = vmatpush1.msra.mxu0 %v1864
    %1900 = vmatprep.subr.mxu0 %v1863
    %1901 = vmatpush1.msra.mxu0 %v1862
    %1902 = vmatprep.subr.mxu0 %v1861
    %1903 = vmatpush1.msra.mxu0 %v1860
    %1904 = vmatprep.subr.mxu0 %v1859
    %1905 = vmatpush1.msra.mxu0 %v1858
    %1906 = vmatprep.subr.mxu0 %v1857
    %1907 = vmatpush1.msra.mxu0 %v1856
    %1908 = vmatprep.subr.mxu0 %v1855
    %1909 = vmatpush1.msra.mxu0 %v1854
    %1910 = vmatprep.subr.mxu0 %v1853
    %1911 = vmatpush1.msra.mxu0 %v1852
    %1912 = vmatprep.subr.mxu0 %v1851
    %1913 = vmatpush1.msra.mxu0 %v1850
    %1914 = vmatprep.subr.mxu0 0.0
    %1915 = vmatpush2.msra.mxu0 0.0
    %1916 = vmatprep.subr.mxu0 0.0
    %1917 = vmatpush2.msra.mxu0 0.0
    %1918 = vmatprep.subr.mxu0 0.0
    %1919 = vmatpush2.msra.mxu0 0.0
    %1920 = vmatprep.subr.mxu0 0.0
    %1921 = vmatpush2.msra.mxu0 0.0
    %1922 = vmatprep.subr.mxu0 0.0
    %1923 = vmatpush2.msra.mxu0 0.0
    %1924 = vmatprep.subr.mxu0 0.0
    %1925 = vmatpush2.msra.mxu0 0.0
    %1926 = vmatprep.subr.mxu0 0.0
    %1927 = vmatpush2.msra.mxu0 0.0
    %1928 = vmatprep.subr.mxu0 0.0
    %1929 = vmatpush2.msra.mxu0 0.0
    %1930 = vmatprep.subr.mxu0 0.0
    %1931 = vmatpush2.msra.mxu0 0.0
    %1932 = vmatprep.subr.mxu0 0.0
    %1933 = vmatpush2.msra.mxu0 0.0
    %1934 = vmatprep.subr.mxu0 0.0
    %1935 = vmatpush2.msra.mxu0 0.0
    %1936 = vmatprep.subr.mxu0 0.0
    %1937 = vmatpush2.msra.mxu0 0.0
    %1938 = vmatprep.subr.mxu0 0.0
    %1939 = vmatpush2.msra.mxu0 0.0
    %1940 = vmatprep.subr.mxu0 0.0
    %1941 = vmatpush2.msra.mxu0 0.0
    %1942 = vmatprep.subr.mxu0 0.0
    %1943 = vmatpush2.msra.mxu0 0.0
    %1944 = vmatprep.subr.mxu0 0.0
    %1945 = vmatpush2.msra.mxu0 0.0
    %1946 = vmatprep.mubr.f32.mxu0 0.0
    %1947 = vmatmul.mubr.f32.gmra.mxu0 %v354
    %v1948 = vpop.f32.mrf.mxu0
    %v1949 = vadd.f32 0.0, %v1948
    %v1950 = vpop.f32.mrf.mxu0
    %v1951 = vadd.f32 0.0, %v1950
    %1952 = vmatprep.mubr.f32.mxu0 0.0
    %1953 = vmatmul.mubr.f32.gmra.mxu0 %v355
    %v1954 = vpop.f32.mrf.mxu0
    %v1955 = vadd.f32 0.0, %v1954
    %v1956 = vpop.f32.mrf.mxu0
    %v1957 = vadd.f32 0.0, %v1956
    %1958 = vmatprep.mubr.f32.mxu0 0.0
    %1959 = vmatmul.mubr.f32.gmra.mxu0 %v356
    %v1960 = vpop.f32.mrf.mxu0
    %v1961 = vadd.f32 0.0, %v1960
    %v1962 = vpop.f32.mrf.mxu0
    %v1963 = vadd.f32 0.0, %v1962
    %1964 = vmatprep.mubr.f32.mxu0 0.0
    %1965 = vmatmul.mubr.f32.gmra.mxu0 %v357
    %v1966 = vpop.f32.mrf.mxu0
    %v1967 = vadd.f32 0.0, %v1966
    %v1968 = vpop.f32.mrf.mxu0
    %v1969 = vadd.f32 0.0, %v1968
    %1970 = vmatprep.mubr.f32.mxu0 0.0
    %1971 = vmatmul.mubr.f32.gmra.mxu0 %v358
    %v1972 = vpop.f32.mrf.mxu0
    %v1973 = vadd.f32 0.0, %v1972
    %v1974 = vpop.f32.mrf.mxu0
    %v1975 = vadd.f32 0.0, %v1974
    %1976 = vmatprep.mubr.f32.mxu0 0.0
    %1977 = vmatmul.mubr.f32.gmra.mxu0 %v359
    %v1978 = vpop.f32.mrf.mxu0
    %v1979 = vadd.f32 0.0, %v1978
    %v1980 = vpop.f32.mrf.mxu0
    %v1981 = vadd.f32 0.0, %v1980
    %1982 = vmatprep.mubr.f32.mxu0 0.0
    %1983 = vmatmul.mubr.f32.gmra.mxu0 %v360
    %v1984 = vpop.f32.mrf.mxu0
    %v1985 = vadd.f32 0.0, %v1984
    %v1986 = vpop.f32.mrf.mxu0
    %v1987 = vadd.f32 0.0, %v1986
    %1988 = vmatprep.mubr.f32.mxu0 0.0
    %1989 = vmatmul.mubr.f32.gmra.mxu0 %v361
    %v1990 = vpop.f32.mrf.mxu0
    %v1991 = vadd.f32 0.0, %v1990
    %v1992 = vpop.f32.mrf.mxu0
    %v1993 = vadd.f32 0.0, %v1992
    %1994 = vmatprep.mubr.f32.mxu0 0.0
    %1995 = vmatmul.mubr.f32.gmra.mxu0 %v362
    %v1996 = vpop.f32.mrf.mxu0
    %v1997 = vadd.f32 0.0, %v1996
    %v1998 = vpop.f32.mrf.mxu0
    %v1999 = vadd.f32 0.0, %v1998
    %2000 = vmatprep.mubr.f32.mxu0 0.0
    %2001 = vmatmul.mubr.f32.gmra.mxu0 %v363
    %v2002 = vpop.f32.mrf.mxu0
    %v2003 = vadd.f32 0.0, %v2002
    %v2004 = vpop.f32.mrf.mxu0
    %v2005 = vadd.f32 0.0, %v2004
    %2006 = vmatprep.mubr.f32.mxu0 0.0
    %2007 = vmatmul.mubr.f32.gmra.mxu0 %v364
    %v2008 = vpop.f32.mrf.mxu0
    %v2009 = vadd.f32 0.0, %v2008
    %v2010 = vpop.f32.mrf.mxu0
    %v2011 = vadd.f32 0.0, %v2010
    %2012 = vmatprep.mubr.f32.mxu0 0.0
    %2013 = vmatmul.mubr.f32.gmra.mxu0 %v365
    %v2014 = vpop.f32.mrf.mxu0
    %v2015 = vadd.f32 0.0, %v2014
    %v2016 = vpop.f32.mrf.mxu0
    %v2017 = vadd.f32 0.0, %v2016
    %2018 = vmatprep.mubr.f32.mxu0 0.0
    %2019 = vmatmul.mubr.f32.gmra.mxu0 %v366
    %v2020 = vpop.f32.mrf.mxu0
    %v2021 = vadd.f32 0.0, %v2020
    %v2022 = vpop.f32.mrf.mxu0
    %v2023 = vadd.f32 0.0, %v2022
    %2024 = vmatprep.mubr.f32.mxu0 0.0
    %2025 = vmatmul.mubr.f32.gmra.mxu0 %v367
    %v2026 = vpop.f32.mrf.mxu0
    %v2027 = vadd.f32 0.0, %v2026
    %v2028 = vpop.f32.mrf.mxu0
    %v2029 = vadd.f32 0.0, %v2028
    %2030 = vmatprep.mubr.f32.mxu0 0.0
    %2031 = vmatmul.mubr.f32.gmra.mxu0 %v368
    %v2032 = vpop.f32.mrf.mxu0
    %v2033 = vadd.f32 0.0, %v2032
    %v2034 = vpop.f32.mrf.mxu0
    %v2035 = vadd.f32 0.0, %v2034
    %2036 = vmatprep.mubr.f32.mxu0 0.0
    %2037 = vmatmul.mubr.f32.gmra.mxu0 %v369
    %v2038 = vpop.f32.mrf.mxu0
    %v2039 = vadd.f32 0.0, %v2038
    %v2040 = vpop.f32.mrf.mxu0
    %v2041 = vadd.f32 0.0, %v2040
    %2042 = vdwg.mxu0
    %vm2043 = vcmp.gt.f32.partialorder %v1949, 0.0
    %vm2044 = vcmp.gt.f32.partialorder %v1951, 0.0
    %vm2045 = vcmp.gt.f32.partialorder %v1955, 0.0
    %vm2046 = vcmp.gt.f32.partialorder %v1957, 0.0
    %vm2047 = vcmp.gt.f32.partialorder %v1961, 0.0
    %vm2048 = vcmp.gt.f32.partialorder %v1963, 0.0
    %vm2049 = vcmp.gt.f32.partialorder %v1967, 0.0
    %vm2050 = vcmp.gt.f32.partialorder %v1969, 0.0
    %vm2051 = vcmp.gt.f32.partialorder %v1973, 0.0
    %vm2052 = vcmp.gt.f32.partialorder %v1975, 0.0
    %vm2053 = vcmp.gt.f32.partialorder %v1979, 0.0
    %vm2054 = vcmp.gt.f32.partialorder %v1981, 0.0
    %vm2055 = vcmp.gt.f32.partialorder %v1985, 0.0
    %vm2056 = vcmp.gt.f32.partialorder %v1987, 0.0
    %vm2057 = vcmp.gt.f32.partialorder %v1991, 0.0
    %vm2058 = vcmp.gt.f32.partialorder %v1993, 0.0
    %vm2059 = vcmp.gt.f32.partialorder %v1997, 0.0
    %vm2060 = vcmp.gt.f32.partialorder %v1999, 0.0
    %vm2061 = vcmp.gt.f32.partialorder %v2003, 0.0
    %vm2062 = vcmp.gt.f32.partialorder %v2005, 0.0
    %vm2063 = vcmp.gt.f32.partialorder %v2009, 0.0
    %vm2064 = vcmp.gt.f32.partialorder %v2011, 0.0
    %vm2065 = vcmp.gt.f32.partialorder %v2015, 0.0
    %vm2066 = vcmp.gt.f32.partialorder %v2017, 0.0
    %vm2067 = vcmp.gt.f32.partialorder %v2021, 0.0
    %vm2068 = vcmp.gt.f32.partialorder %v2023, 0.0
    %vm2069 = vcmp.gt.f32.partialorder %v2027, 0.0
    %vm2070 = vcmp.gt.f32.partialorder %v2029, 0.0
    %vm2071 = vcmp.gt.f32.partialorder %v2033, 0.0
    %vm2072 = vcmp.gt.f32.partialorder %v2035, 0.0
    %vm2073 = vcmp.gt.f32.partialorder %v2039, 0.0
    %vm2074 = vcmp.gt.f32.partialorder %v2041, 0.0
    %v2075 = vmul.f32 %v1949, 0.2
    %v2076 = vmul.f32 %v1951, 0.2
    %v2077 = vmul.f32 %v1955, 0.2
    %v2078 = vmul.f32 %v1957, 0.2
    %v2079 = vmul.f32 %v1961, 0.2
    %v2080 = vmul.f32 %v1963, 0.2
    %v2081 = vmul.f32 %v1967, 0.2
    %v2082 = vmul.f32 %v1969, 0.2
    %v2083 = vmul.f32 %v1973, 0.2
    %v2084 = vmul.f32 %v1975, 0.2
    %v2085 = vmul.f32 %v1979, 0.2
    %v2086 = vmul.f32 %v1981, 0.2
    %v2087 = vmul.f32 %v1985, 0.2
    %v2088 = vmul.f32 %v1987, 0.2
    %v2089 = vmul.f32 %v1991, 0.2
    %v2090 = vmul.f32 %v1993, 0.2
    %v2091 = vmul.f32 %v1997, 0.2
    %v2092 = vmul.f32 %v1999, 0.2
    %v2093 = vmul.f32 %v2003, 0.2
    %v2094 = vmul.f32 %v2005, 0.2
    %v2095 = vmul.f32 %v2009, 0.2
    %v2096 = vmul.f32 %v2011, 0.2
    %v2097 = vmul.f32 %v2015, 0.2
    %v2098 = vmul.f32 %v2017, 0.2
    %v2099 = vmul.f32 %v2021, 0.2
    %v2100 = vmul.f32 %v2023, 0.2
    %v2101 = vmul.f32 %v2027, 0.2
    %v2102 = vmul.f32 %v2029, 0.2
    %v2103 = vmul.f32 %v2033, 0.2
    %v2104 = vmul.f32 %v2035, 0.2
    %v2105 = vmul.f32 %v2039, 0.2
    %v2106 = vmul.f32 %v2041, 0.2
    %v2107 = vsel %vm2043, %v1949, %v2075
    %v2108 = vsel %vm2044, %v1951, %v2076
    %v2109 = vsel %vm2045, %v1955, %v2077
    %v2110 = vsel %vm2046, %v1957, %v2078
    %v2111 = vsel %vm2047, %v1961, %v2079
    %v2112 = vsel %vm2048, %v1963, %v2080
    %v2113 = vsel %vm2049, %v1967, %v2081
    %v2114 = vsel %vm2050, %v1969, %v2082
    %v2115 = vsel %vm2051, %v1973, %v2083
    %v2116 = vsel %vm2052, %v1975, %v2084
    %v2117 = vsel %vm2053, %v1979, %v2085
    %v2118 = vsel %vm2054, %v1981, %v2086
    %v2119 = vsel %vm2055, %v1985, %v2087
    %v2120 = vsel %vm2056, %v1987, %v2088
    %v2121 = vsel %vm2057, %v1991, %v2089
    %v2122 = vsel %vm2058, %v1993, %v2090
    %v2123 = vsel %vm2059, %v1997, %v2091
    %v2124 = vsel %vm2060, %v1999, %v2092
    %v2125 = vsel %vm2061, %v2003, %v2093
    %v2126 = vsel %vm2062, %v2005, %v2094
    %v2127 = vsel %vm2063, %v2009, %v2095
    %v2128 = vsel %vm2064, %v2011, %v2096
    %v2129 = vsel %vm2065, %v2015, %v2097
    %v2130 = vsel %vm2066, %v2017, %v2098
    %v2131 = vsel %vm2067, %v2021, %v2099
    %v2132 = vsel %vm2068, %v2023, %v2100
    %v2133 = vsel %vm2069, %v2027, %v2101
    %v2134 = vsel %vm2070, %v2029, %v2102
    %v2135 = vsel %vm2071, %v2033, %v2103
    %v2136 = vsel %vm2072, %v2035, %v2104
    %v2137 = vsel %vm2073, %v2039, %v2105
    %v2138 = vsel %vm2074, %v2041, %v2106
    %v2139 = vld [vmem:[#allocation19] sm:$0xff]
    %v2140 = vld [vmem:[#allocation19 + $0x8] sm:$0xff]
    %v2141 = vld [vmem:[#allocation19 + $0x10] sm:$0xff]
    %v2142 = vld [vmem:[#allocation19 + $0x18] sm:$0xff]
    %v2143 = vld [vmem:[#allocation19 + $0x20] sm:$0xff]
    %v2144 = vld [vmem:[#allocation19 + $0x28] sm:$0xff]
    %v2145 = vld [vmem:[#allocation19 + $0x30] sm:$0xff]
    %v2146 = vld [vmem:[#allocation19 + $0x38] sm:$0xff]
    %v2147 = vld [vmem:[#allocation19 + $0x40] sm:$0xff]
    %v2148 = vld [vmem:[#allocation19 + $0x48] sm:$0xff]
    %v2149 = vld [vmem:[#allocation19 + $0x50] sm:$0xff]
    %v2150 = vld [vmem:[#allocation19 + $0x58] sm:$0xff]
    %v2151 = vld [vmem:[#allocation19 + $0x60] sm:$0xff]
    %v2152 = vld [vmem:[#allocation19 + $0x68] sm:$0xff]
    %v2153 = vld [vmem:[#allocation19 + $0x70] sm:$0xff]
    %v2154 = vld [vmem:[#allocation19 + $0x78] sm:$0xff]
    %v2155 = vld [vmem:[#allocation19 + $0x80] sm:$0xff]
    %v2156 = vld [vmem:[#allocation19 + $0x88] sm:$0xff]
    %v2157 = vld [vmem:[#allocation19 + $0x90] sm:$0xff]
    %v2158 = vld [vmem:[#allocation19 + $0x98] sm:$0xff]
    %v2159 = vld [vmem:[#allocation19 + $0xa0] sm:$0xff]
    %v2160 = vld [vmem:[#allocation19 + $0xa8] sm:$0xff]
    %v2161 = vld [vmem:[#allocation19 + $0xb0] sm:$0xff]
    %v2162 = vld [vmem:[#allocation19 + $0xb8] sm:$0xff]
    %v2163 = vld [vmem:[#allocation19 + $0xc0] sm:$0xff]
    %v2164 = vld [vmem:[#allocation19 + $0xc8] sm:$0xff]
    %v2165 = vld [vmem:[#allocation19 + $0xd0] sm:$0xff]
    %v2166 = vld [vmem:[#allocation19 + $0xd8] sm:$0xff]
    %v2167 = vld [vmem:[#allocation19 + $0xe0] sm:$0xff]
    %v2168 = vld [vmem:[#allocation19 + $0xe8] sm:$0xff]
    %v2169 = vld [vmem:[#allocation19 + $0xf0] sm:$0xff]
    %v2170 = vld [vmem:[#allocation19 + $0xf8] sm:$0xff]
    %v2171 = vld [vmem:[#allocation19 + $0x100] sm:$0xff]
    %v2172 = vld [vmem:[#allocation19 + $0x108] sm:$0xff]
    %v2173 = vld [vmem:[#allocation19 + $0x110] sm:$0xff]
    %v2174 = vld [vmem:[#allocation19 + $0x118] sm:$0xff]
    %v2175 = vld [vmem:[#allocation19 + $0x120] sm:$0xff]
    %v2176 = vld [vmem:[#allocation19 + $0x128] sm:$0xff]
    %v2177 = vld [vmem:[#allocation19 + $0x130] sm:$0xff]
    %v2178 = vld [vmem:[#allocation19 + $0x138] sm:$0xff]
    %v2179 = vld [vmem:[#allocation19 + $0x140] sm:$0xff]
    %v2180 = vld [vmem:[#allocation19 + $0x148] sm:$0xff]
    %v2181 = vld [vmem:[#allocation19 + $0x150] sm:$0xff]
    %v2182 = vld [vmem:[#allocation19 + $0x158] sm:$0xff]
    %v2183 = vld [vmem:[#allocation19 + $0x160] sm:$0xff]
    %v2184 = vld [vmem:[#allocation19 + $0x168] sm:$0xff]
    %v2185 = vld [vmem:[#allocation19 + $0x170] sm:$0xff]
    %v2186 = vld [vmem:[#allocation19 + $0x178] sm:$0xff]
    %v2187 = vld [vmem:[#allocation19 + $0x180] sm:$0xff]
    %v2188 = vld [vmem:[#allocation19 + $0x188] sm:$0xff]
    %v2189 = vld [vmem:[#allocation19 + $0x190] sm:$0xff]
    %v2190 = vld [vmem:[#allocation19 + $0x198] sm:$0xff]
    %v2191 = vld [vmem:[#allocation19 + $0x1a0] sm:$0xff]
    %v2192 = vld [vmem:[#allocation19 + $0x1a8] sm:$0xff]
    %v2193 = vld [vmem:[#allocation19 + $0x1b0] sm:$0xff]
    %v2194 = vld [vmem:[#allocation19 + $0x1b8] sm:$0xff]
    %v2195 = vld [vmem:[#allocation19 + $0x1c0] sm:$0xff]
    %v2196 = vld [vmem:[#allocation19 + $0x1c8] sm:$0xff]
    %v2197 = vld [vmem:[#allocation19 + $0x1d0] sm:$0xff]
    %v2198 = vld [vmem:[#allocation19 + $0x1d8] sm:$0xff]
    %v2199 = vld [vmem:[#allocation19 + $0x1e0] sm:$0xff]
    %v2200 = vld [vmem:[#allocation19 + $0x1e8] sm:$0xff]
    %v2201 = vld [vmem:[#allocation19 + $0x1f0] sm:$0xff]
    %v2202 = vld [vmem:[#allocation19 + $0x1f8] sm:$0xff]
    %v2203 = vld [vmem:[%s12] sm:$0x3]
    %v2205 = vlaneseq
    %v2206 = vshrl.u32 %v2205, 7
    %v2207 = vsub.s32 0, %v2206
    %v2208 = vrot.slane %v2203, %v2207
    %v2209 = vlaneseq
    %v2210 = vshrl.u32 %v2209, 7
    %v2211 = vsub.s32 1, %v2210
    %v2212 = vrot.slane %v2203, %v2211
    %2215 = vmatprep.subr.mxu0 %v2170
    %2216 = vmatpush1.msra.mxu0 %v2169
    %2217 = vmatprep.subr.mxu0 %v2168
    %2218 = vmatpush1.msra.mxu0 %v2167
    %2219 = vmatprep.subr.mxu0 %v2166
    %2220 = vmatpush1.msra.mxu0 %v2165
    %2221 = vmatprep.subr.mxu0 %v2164
    %2222 = vmatpush1.msra.mxu0 %v2163
    %2223 = vmatprep.subr.mxu0 %v2162
    %2224 = vmatpush1.msra.mxu0 %v2161
    %2225 = vmatprep.subr.mxu0 %v2160
    %2226 = vmatpush1.msra.mxu0 %v2159
    %2227 = vmatprep.subr.mxu0 %v2158
    %2228 = vmatpush1.msra.mxu0 %v2157
    %2229 = vmatprep.subr.mxu0 %v2156
    %2230 = vmatpush1.msra.mxu0 %v2155
    %2231 = vmatprep.subr.mxu0 %v2154
    %2232 = vmatpush1.msra.mxu0 %v2153
    %2233 = vmatprep.subr.mxu0 %v2152
    %2234 = vmatpush1.msra.mxu0 %v2151
    %2235 = vmatprep.subr.mxu0 %v2150
    %2236 = vmatpush1.msra.mxu0 %v2149
    %2237 = vmatprep.subr.mxu0 %v2148
    %2238 = vmatpush1.msra.mxu0 %v2147
    %2239 = vmatprep.subr.mxu0 %v2146
    %2240 = vmatpush1.msra.mxu0 %v2145
    %2241 = vmatprep.subr.mxu0 %v2144
    %2242 = vmatpush1.msra.mxu0 %v2143
    %2243 = vmatprep.subr.mxu0 %v2142
    %2244 = vmatpush1.msra.mxu0 %v2141
    %2245 = vmatprep.subr.mxu0 %v2140
    %2246 = vmatpush1.msra.mxu0 %v2139
    %2247 = vmatprep.subr.mxu0 %v2202
    %2248 = vmatpush2.msra.mxu0 %v2201
    %2249 = vmatprep.subr.mxu0 %v2200
    %2250 = vmatpush2.msra.mxu0 %v2199
    %2251 = vmatprep.subr.mxu0 %v2198
    %2252 = vmatpush2.msra.mxu0 %v2197
    %2253 = vmatprep.subr.mxu0 %v2196
    %2254 = vmatpush2.msra.mxu0 %v2195
    %2255 = vmatprep.subr.mxu0 %v2194
    %2256 = vmatpush2.msra.mxu0 %v2193
    %2257 = vmatprep.subr.mxu0 %v2192
    %2258 = vmatpush2.msra.mxu0 %v2191
    %2259 = vmatprep.subr.mxu0 %v2190
    %2260 = vmatpush2.msra.mxu0 %v2189
    %2261 = vmatprep.subr.mxu0 %v2188
    %2262 = vmatpush2.msra.mxu0 %v2187
    %2263 = vmatprep.subr.mxu0 %v2186
    %2264 = vmatpush2.msra.mxu0 %v2185
    %2265 = vmatprep.subr.mxu0 %v2184
    %2266 = vmatpush2.msra.mxu0 %v2183
    %2267 = vmatprep.subr.mxu0 %v2182
    %2268 = vmatpush2.msra.mxu0 %v2181
    %2269 = vmatprep.subr.mxu0 %v2180
    %2270 = vmatpush2.msra.mxu0 %v2179
    %2271 = vmatprep.subr.mxu0 %v2178
    %2272 = vmatpush2.msra.mxu0 %v2177
    %2273 = vmatprep.subr.mxu0 %v2176
    %2274 = vmatpush2.msra.mxu0 %v2175
    %2275 = vmatprep.subr.mxu0 %v2174
    %2276 = vmatpush2.msra.mxu0 %v2173
    %2277 = vmatprep.subr.mxu0 %v2172
    %2278 = vmatpush2.msra.mxu0 %v2171
    %2279 = vmatprep.mubr.f32.mxu0 %v2108
    %2280 = vmatmul.mubr.f32.gmra.mxu0 %v2107
    %v2281 = vpop.f32.mrf.mxu0
    %v2282 = vadd.f32 %v2208, %v2281
    %v2283 = vpop.f32.mrf.mxu0
    %v2284 = vadd.f32 %v2212, %v2283
    %2285 = vmatprep.mubr.f32.mxu0 %v2110
    %2286 = vmatmul.mubr.f32.gmra.mxu0 %v2109
    %v2287 = vpop.f32.mrf.mxu0
    %v2288 = vadd.f32 %v2208, %v2287
    %v2289 = vpop.f32.mrf.mxu0
    %v2290 = vadd.f32 %v2212, %v2289
    %2291 = vmatprep.mubr.f32.mxu0 %v2112
    %2292 = vmatmul.mubr.f32.gmra.mxu0 %v2111
    %v2293 = vpop.f32.mrf.mxu0
    %v2294 = vadd.f32 %v2208, %v2293
    %v2295 = vpop.f32.mrf.mxu0
    %v2296 = vadd.f32 %v2212, %v2295
    %2297 = vmatprep.mubr.f32.mxu0 %v2114
    %2298 = vmatmul.mubr.f32.gmra.mxu0 %v2113
    %v2299 = vpop.f32.mrf.mxu0
    %v2300 = vadd.f32 %v2208, %v2299
    %v2301 = vpop.f32.mrf.mxu0
    %v2302 = vadd.f32 %v2212, %v2301
    %2303 = vmatprep.mubr.f32.mxu0 %v2116
    %2304 = vmatmul.mubr.f32.gmra.mxu0 %v2115
    %v2305 = vpop.f32.mrf.mxu0
    %v2306 = vadd.f32 %v2208, %v2305
    %v2307 = vpop.f32.mrf.mxu0
    %v2308 = vadd.f32 %v2212, %v2307
    %2309 = vmatprep.mubr.f32.mxu0 %v2118
    %2310 = vmatmul.mubr.f32.gmra.mxu0 %v2117
    %v2311 = vpop.f32.mrf.mxu0
    %v2312 = vadd.f32 %v2208, %v2311
    %v2313 = vpop.f32.mrf.mxu0
    %v2314 = vadd.f32 %v2212, %v2313
    %2315 = vmatprep.mubr.f32.mxu0 %v2120
    %2316 = vmatmul.mubr.f32.gmra.mxu0 %v2119
    %v2317 = vpop.f32.mrf.mxu0
    %v2318 = vadd.f32 %v2208, %v2317
    %v2319 = vpop.f32.mrf.mxu0
    %v2320 = vadd.f32 %v2212, %v2319
    %2321 = vmatprep.mubr.f32.mxu0 %v2122
    %2322 = vmatmul.mubr.f32.gmra.mxu0 %v2121
    %v2323 = vpop.f32.mrf.mxu0
    %v2324 = vadd.f32 %v2208, %v2323
    %v2325 = vpop.f32.mrf.mxu0
    %v2326 = vadd.f32 %v2212, %v2325
    %2327 = vmatprep.mubr.f32.mxu0 %v2124
    %2328 = vmatmul.mubr.f32.gmra.mxu0 %v2123
    %v2329 = vpop.f32.mrf.mxu0
    %v2330 = vadd.f32 %v2208, %v2329
    %v2331 = vpop.f32.mrf.mxu0
    %v2332 = vadd.f32 %v2212, %v2331
    %2333 = vmatprep.mubr.f32.mxu0 %v2126
    %2334 = vmatmul.mubr.f32.gmra.mxu0 %v2125
    %v2335 = vpop.f32.mrf.mxu0
    %v2336 = vadd.f32 %v2208, %v2335
    %v2337 = vpop.f32.mrf.mxu0
    %v2338 = vadd.f32 %v2212, %v2337
    %2339 = vmatprep.mubr.f32.mxu0 %v2128
    %2340 = vmatmul.mubr.f32.gmra.mxu0 %v2127
    %v2341 = vpop.f32.mrf.mxu0
    %v2342 = vadd.f32 %v2208, %v2341
    %v2343 = vpop.f32.mrf.mxu0
    %v2344 = vadd.f32 %v2212, %v2343
    %2345 = vmatprep.mubr.f32.mxu0 %v2130
    %2346 = vmatmul.mubr.f32.gmra.mxu0 %v2129
    %v2347 = vpop.f32.mrf.mxu0
    %v2348 = vadd.f32 %v2208, %v2347
    %v2349 = vpop.f32.mrf.mxu0
    %v2350 = vadd.f32 %v2212, %v2349
    %2351 = vmatprep.mubr.f32.mxu0 %v2132
    %2352 = vmatmul.mubr.f32.gmra.mxu0 %v2131
    %v2353 = vpop.f32.mrf.mxu0
    %v2354 = vadd.f32 %v2208, %v2353
    %v2355 = vpop.f32.mrf.mxu0
    %v2356 = vadd.f32 %v2212, %v2355
    %2357 = vmatprep.mubr.f32.mxu0 %v2134
    %2358 = vmatmul.mubr.f32.gmra.mxu0 %v2133
    %v2359 = vpop.f32.mrf.mxu0
    %v2360 = vadd.f32 %v2208, %v2359
    %v2361 = vpop.f32.mrf.mxu0
    %v2362 = vadd.f32 %v2212, %v2361
    %2363 = vmatprep.mubr.f32.mxu0 %v2136
    %2364 = vmatmul.mubr.f32.gmra.mxu0 %v2135
    %v2365 = vpop.f32.mrf.mxu0
    %v2366 = vadd.f32 %v2208, %v2365
    %v2367 = vpop.f32.mrf.mxu0
    %v2368 = vadd.f32 %v2212, %v2367
    %2369 = vmatprep.mubr.f32.mxu0 %v2138
    %2370 = vmatmul.mubr.f32.gmra.mxu0 %v2137
    %v2371 = vpop.f32.mrf.mxu0
    %v2372 = vadd.f32 %v2208, %v2371
    %v2373 = vpop.f32.mrf.mxu0
    %v2374 = vadd.f32 %v2212, %v2373
    %2375 = vdwg.mxu0
    %vm2376 = vcmp.gt.f32.partialorder %v2282, 0.0
    %vm2377 = vcmp.gt.f32.partialorder %v2284, 0.0
    %vm2378 = vcmp.gt.f32.partialorder %v2288, 0.0
    %vm2379 = vcmp.gt.f32.partialorder %v2290, 0.0
    %vm2380 = vcmp.gt.f32.partialorder %v2294, 0.0
    %vm2381 = vcmp.gt.f32.partialorder %v2296, 0.0
    %vm2382 = vcmp.gt.f32.partialorder %v2300, 0.0
    %vm2383 = vcmp.gt.f32.partialorder %v2302, 0.0
    %vm2384 = vcmp.gt.f32.partialorder %v2306, 0.0
    %vm2385 = vcmp.gt.f32.partialorder %v2308, 0.0
    %vm2386 = vcmp.gt.f32.partialorder %v2312, 0.0
    %vm2387 = vcmp.gt.f32.partialorder %v2314, 0.0
    %vm2388 = vcmp.gt.f32.partialorder %v2318, 0.0
    %vm2389 = vcmp.gt.f32.partialorder %v2320, 0.0
    %vm2390 = vcmp.gt.f32.partialorder %v2324, 0.0
    %vm2391 = vcmp.gt.f32.partialorder %v2326, 0.0
    %vm2392 = vcmp.gt.f32.partialorder %v2330, 0.0
    %vm2393 = vcmp.gt.f32.partialorder %v2332, 0.0
    %vm2394 = vcmp.gt.f32.partialorder %v2336, 0.0
    %vm2395 = vcmp.gt.f32.partialorder %v2338, 0.0
    %vm2396 = vcmp.gt.f32.partialorder %v2342, 0.0
    %vm2397 = vcmp.gt.f32.partialorder %v2344, 0.0
    %vm2398 = vcmp.gt.f32.partialorder %v2348, 0.0
    %vm2399 = vcmp.gt.f32.partialorder %v2350, 0.0
    %vm2400 = vcmp.gt.f32.partialorder %v2354, 0.0
    %vm2401 = vcmp.gt.f32.partialorder %v2356, 0.0
    %vm2402 = vcmp.gt.f32.partialorder %v2360, 0.0
    %vm2403 = vcmp.gt.f32.partialorder %v2362, 0.0
    %vm2404 = vcmp.gt.f32.partialorder %v2366, 0.0
    %vm2405 = vcmp.gt.f32.partialorder %v2368, 0.0
    %vm2406 = vcmp.gt.f32.partialorder %v2372, 0.0
    %vm2407 = vcmp.gt.f32.partialorder %v2374, 0.0
    %v2408 = vmul.f32 %v2282, 0.01
    %v2409 = vmul.f32 %v2284, 0.01
    %v2410 = vmul.f32 %v2288, 0.01
    %v2411 = vmul.f32 %v2290, 0.01
    %v2412 = vmul.f32 %v2294, 0.01
    %v2413 = vmul.f32 %v2296, 0.01
    %v2414 = vmul.f32 %v2300, 0.01
    %v2415 = vmul.f32 %v2302, 0.01
    %v2416 = vmul.f32 %v2306, 0.01
    %v2417 = vmul.f32 %v2308, 0.01
    %v2418 = vmul.f32 %v2312, 0.01
    %v2419 = vmul.f32 %v2314, 0.01
    %v2420 = vmul.f32 %v2318, 0.01
    %v2421 = vmul.f32 %v2320, 0.01
    %v2422 = vmul.f32 %v2324, 0.01
    %v2423 = vmul.f32 %v2326, 0.01
    %v2424 = vmul.f32 %v2330, 0.01
    %v2425 = vmul.f32 %v2332, 0.01
    %v2426 = vmul.f32 %v2336, 0.01
    %v2427 = vmul.f32 %v2338, 0.01
    %v2428 = vmul.f32 %v2342, 0.01
    %v2429 = vmul.f32 %v2344, 0.01
    %v2430 = vmul.f32 %v2348, 0.01
    %v2431 = vmul.f32 %v2350, 0.01
    %v2432 = vmul.f32 %v2354, 0.01
    %v2433 = vmul.f32 %v2356, 0.01
    %v2434 = vmul.f32 %v2360, 0.01
    %v2435 = vmul.f32 %v2362, 0.01
    %v2436 = vmul.f32 %v2366, 0.01
    %v2437 = vmul.f32 %v2368, 0.01
    %v2438 = vmul.f32 %v2372, 0.01
    %v2439 = vmul.f32 %v2374, 0.01
    %v2440 = vsel %vm2376, %v2282, %v2408
    %v2441 = vsel %vm2377, %v2284, %v2409
    %v2442 = vsel %vm2378, %v2288, %v2410
    %v2443 = vsel %vm2379, %v2290, %v2411
    %v2444 = vsel %vm2380, %v2294, %v2412
    %v2445 = vsel %vm2381, %v2296, %v2413
    %v2446 = vsel %vm2382, %v2300, %v2414
    %v2447 = vsel %vm2383, %v2302, %v2415
    %v2448 = vsel %vm2384, %v2306, %v2416
    %v2449 = vsel %vm2385, %v2308, %v2417
    %v2450 = vsel %vm2386, %v2312, %v2418
    %v2451 = vsel %vm2387, %v2314, %v2419
    %v2452 = vsel %vm2388, %v2318, %v2420
    %v2453 = vsel %vm2389, %v2320, %v2421
    %v2454 = vsel %vm2390, %v2324, %v2422
    %v2455 = vsel %vm2391, %v2326, %v2423
    %v2456 = vsel %vm2392, %v2330, %v2424
    %v2457 = vsel %vm2393, %v2332, %v2425
    %v2458 = vsel %vm2394, %v2336, %v2426
    %v2459 = vsel %vm2395, %v2338, %v2427
    %v2460 = vsel %vm2396, %v2342, %v2428
    %v2461 = vsel %vm2397, %v2344, %v2429
    %v2462 = vsel %vm2398, %v2348, %v2430
    %v2463 = vsel %vm2399, %v2350, %v2431
    %v2464 = vsel %vm2400, %v2354, %v2432
    %v2465 = vsel %vm2401, %v2356, %v2433
    %v2466 = vsel %vm2402, %v2360, %v2434
    %v2467 = vsel %vm2403, %v2362, %v2435
    %v2468 = vsel %vm2404, %v2366, %v2436
    %v2469 = vsel %vm2405, %v2368, %v2437
    %v2470 = vsel %vm2406, %v2372, %v2438
    %v2471 = vsel %vm2407, %v2374, %v2439
    %v2472 = vadd.f32 %v1818, %v2440
    %v2473 = vadd.f32 %v1819, %v2441
    %v2474 = vadd.f32 %v1820, %v2442
    %v2475 = vadd.f32 %v1821, %v2443
    %v2476 = vadd.f32 %v1822, %v2444
    %v2477 = vadd.f32 %v1823, %v2445
    %v2478 = vadd.f32 %v1824, %v2446
    %v2479 = vadd.f32 %v1825, %v2447
    %v2480 = vadd.f32 %v1826, %v2448
    %v2481 = vadd.f32 %v1827, %v2449
    %v2482 = vadd.f32 %v1828, %v2450
    %v2483 = vadd.f32 %v1829, %v2451
    %v2484 = vadd.f32 %v1830, %v2452
    %v2485 = vadd.f32 %v1831, %v2453
    %v2486 = vadd.f32 %v1832, %v2454
    %v2487 = vadd.f32 %v1833, %v2455
    %v2488 = vadd.f32 %v1834, %v2456
    %v2489 = vadd.f32 %v1835, %v2457
    %v2490 = vadd.f32 %v1836, %v2458
    %v2491 = vadd.f32 %v1837, %v2459
    %v2492 = vadd.f32 %v1838, %v2460
    %v2493 = vadd.f32 %v1839, %v2461
    %v2494 = vadd.f32 %v1840, %v2462
    %v2495 = vadd.f32 %v1841, %v2463
    %v2496 = vadd.f32 %v1842, %v2464
    %v2497 = vadd.f32 %v1843, %v2465
    %v2498 = vadd.f32 %v1844, %v2466
    %v2499 = vadd.f32 %v1845, %v2467
    %v2500 = vadd.f32 %v1846, %v2468
    %v2501 = vadd.f32 %v1847, %v2469
    %v2502 = vadd.f32 %v1848, %v2470
    %v2503 = vadd.f32 %v1849, %v2471
    %v2504 = vmax.f32 %v2472, 0.0
    %v2505 = vmax.f32 %v2473, 0.0
    %v2506 = vmax.f32 %v2474, 0.0
    %v2507 = vmax.f32 %v2475, 0.0
    %v2508 = vmax.f32 %v2476, 0.0
    %v2509 = vmax.f32 %v2477, 0.0
    %v2510 = vmax.f32 %v2478, 0.0
    %v2511 = vmax.f32 %v2479, 0.0
    %v2512 = vmax.f32 %v2480, 0.0
    %v2513 = vmax.f32 %v2481, 0.0
    %v2514 = vmax.f32 %v2482, 0.0
    %v2515 = vmax.f32 %v2483, 0.0
    %v2516 = vmax.f32 %v2484, 0.0
    %v2517 = vmax.f32 %v2485, 0.0
    %v2518 = vmax.f32 %v2486, 0.0
    %v2519 = vmax.f32 %v2487, 0.0
    %v2520 = vmax.f32 %v2488, 0.0
    %v2521 = vmax.f32 %v2489, 0.0
    %v2522 = vmax.f32 %v2490, 0.0
    %v2523 = vmax.f32 %v2491, 0.0
    %v2524 = vmax.f32 %v2492, 0.0
    %v2525 = vmax.f32 %v2493, 0.0
    %v2526 = vmax.f32 %v2494, 0.0
    %v2527 = vmax.f32 %v2495, 0.0
    %v2528 = vmax.f32 %v2496, 0.0
    %v2529 = vmax.f32 %v2497, 0.0
    %v2530 = vmax.f32 %v2498, 0.0
    %v2531 = vmax.f32 %v2499, 0.0
    %v2532 = vmax.f32 %v2500, 0.0
    %v2533 = vmax.f32 %v2501, 0.0
    %v2534 = vmax.f32 %v2502, 0.0
    %v2535 = vmax.f32 %v2503, 0.0
    %v2536 = vpack.c.bf16 %v2506, %v2504
    %v2537 = vpack.c.bf16 %v2507, %v2505
    %v2538 = vpack.c.bf16 %v2510, %v2508
    %v2539 = vpack.c.bf16 %v2511, %v2509
    %v2540 = vpack.c.bf16 %v2514, %v2512
    %v2541 = vpack.c.bf16 %v2515, %v2513
    %v2542 = vpack.c.bf16 %v2518, %v2516
    %v2543 = vpack.c.bf16 %v2519, %v2517
    %v2544 = vpack.c.bf16 %v2522, %v2520
    %v2545 = vpack.c.bf16 %v2523, %v2521
    %v2546 = vpack.c.bf16 %v2526, %v2524
    %v2547 = vpack.c.bf16 %v2527, %v2525
    %v2548 = vpack.c.bf16 %v2530, %v2528
    %v2549 = vpack.c.bf16 %v2531, %v2529
    %v2550 = vpack.c.bf16 %v2534, %v2532
    %v2551 = vpack.c.bf16 %v2535, %v2533
    %v2552 = vld [vmem:[#allocation20] sm:$0xf]
    %v2553 = vld [vmem:[#allocation20 + $0x4] sm:$0xf]
    %v2554 = vld [vmem:[#allocation20 + $0x8] sm:$0xf]
    %v2555 = vld [vmem:[#allocation20 + $0xc] sm:$0xf]
    %v2556 = vld [vmem:[#allocation20 + $0x10] sm:$0xf]
    %v2557 = vld [vmem:[#allocation20 + $0x14] sm:$0xf]
    %v2558 = vld [vmem:[#allocation20 + $0x18] sm:$0xf]
    %v2559 = vld [vmem:[#allocation20 + $0x1c] sm:$0xf]
    %v2560 = vld [vmem:[#allocation20 + $0x20] sm:$0xf]
    %v2561 = vld [vmem:[#allocation20 + $0x24] sm:$0xf]
    %v2562 = vld [vmem:[#allocation20 + $0x28] sm:$0xf]
    %v2563 = vld [vmem:[#allocation20 + $0x2c] sm:$0xf]
    %v2564 = vld [vmem:[#allocation20 + $0x30] sm:$0xf]
    %v2565 = vld [vmem:[#allocation20 + $0x34] sm:$0xf]
    %v2566 = vld [vmem:[#allocation20 + $0x38] sm:$0xf]
    %v2567 = vld [vmem:[#allocation20 + $0x3c] sm:$0xf]
    %v2568 = vld [vmem:[#allocation20 + $0x40] sm:$0xf]
    %v2569 = vld [vmem:[#allocation20 + $0x44] sm:$0xf]
    %v2570 = vld [vmem:[#allocation20 + $0x48] sm:$0xf]
    %v2571 = vld [vmem:[#allocation20 + $0x4c] sm:$0xf]
    %v2572 = vld [vmem:[#allocation20 + $0x50] sm:$0xf]
    %v2573 = vld [vmem:[#allocation20 + $0x54] sm:$0xf]
    %v2574 = vld [vmem:[#allocation20 + $0x58] sm:$0xf]
    %v2575 = vld [vmem:[#allocation20 + $0x5c] sm:$0xf]
    %v2576 = vld [vmem:[#allocation20 + $0x60] sm:$0xf]
    %v2577 = vld [vmem:[#allocation20 + $0x64] sm:$0xf]
    %v2578 = vld [vmem:[#allocation20 + $0x68] sm:$0xf]
    %v2579 = vld [vmem:[#allocation20 + $0x6c] sm:$0xf]
    %v2580 = vld [vmem:[#allocation20 + $0x70] sm:$0xf]
    %v2581 = vld [vmem:[#allocation20 + $0x74] sm:$0xf]
    %v2582 = vld [vmem:[#allocation20 + $0x78] sm:$0xf]
    %v2583 = vld [vmem:[#allocation20 + $0x7c] sm:$0xf]
    %v2616 = vunpack.c.l.b16 %v2552
    %v2617 = vunpack.c.l.b16 %v2553
    %v2618 = vunpack.c.l.b16 %v2554
    %v2619 = vunpack.c.l.b16 %v2555
    %v2620 = vunpack.c.l.b16 %v2556
    %v2621 = vunpack.c.l.b16 %v2557
    %v2622 = vunpack.c.l.b16 %v2558
    %v2623 = vunpack.c.l.b16 %v2559
    %v2624 = vunpack.c.l.b16 %v2560
    %v2625 = vunpack.c.l.b16 %v2561
    %v2626 = vunpack.c.l.b16 %v2562
    %v2627 = vunpack.c.l.b16 %v2563
    %v2628 = vunpack.c.l.b16 %v2564
    %v2629 = vunpack.c.l.b16 %v2565
    %v2630 = vunpack.c.l.b16 %v2566
    %v2631 = vunpack.c.l.b16 %v2567
    %v2632 = vunpack.c.l.b16 %v2568
    %v2633 = vunpack.c.l.b16 %v2569
    %v2634 = vunpack.c.l.b16 %v2570
    %v2635 = vunpack.c.l.b16 %v2571
    %v2636 = vunpack.c.l.b16 %v2572
    %v2637 = vunpack.c.l.b16 %v2573
    %v2638 = vunpack.c.l.b16 %v2574
    %v2639 = vunpack.c.l.b16 %v2575
    %v2640 = vunpack.c.l.b16 %v2576
    %v2641 = vunpack.c.l.b16 %v2577
    %v2642 = vunpack.c.l.b16 %v2578
    %v2643 = vunpack.c.l.b16 %v2579
    %v2644 = vunpack.c.l.b16 %v2580
    %v2645 = vunpack.c.l.b16 %v2581
    %v2646 = vunpack.c.l.b16 %v2582
    %v2647 = vunpack.c.l.b16 %v2583
    %v2648 = vpack.c.b16 %v2617, %v2616
    %v2649 = vpack.c.b16 %v2619, %v2618
    %v2650 = vpack.c.b16 %v2621, %v2620
    %v2651 = vpack.c.b16 %v2623, %v2622
    %v2652 = vpack.c.b16 %v2625, %v2624
    %v2653 = vpack.c.b16 %v2627, %v2626
    %v2654 = vpack.c.b16 %v2629, %v2628
    %v2655 = vpack.c.b16 %v2631, %v2630
    %v2656 = vpack.c.b16 %v2633, %v2632
    %v2657 = vpack.c.b16 %v2635, %v2634
    %v2658 = vpack.c.b16 %v2637, %v2636
    %v2659 = vpack.c.b16 %v2639, %v2638
    %v2660 = vpack.c.b16 %v2641, %v2640
    %v2661 = vpack.c.b16 %v2643, %v2642
    %v2662 = vpack.c.b16 %v2645, %v2644
    %v2663 = vpack.c.b16 %v2647, %v2646
    %2680 = vmatprep.subr.bf16.mxu0 0
    %2681 = vmatpush1.bf16.msra.mxu0 %v2655
    %2682 = vmatprep.subr.bf16.mxu0 0
    %2683 = vmatpush1.bf16.msra.mxu0 %v2654
    %2684 = vmatprep.subr.bf16.mxu0 0
    %2685 = vmatpush1.bf16.msra.mxu0 %v2653
    %2686 = vmatprep.subr.bf16.mxu0 0
    %2687 = vmatpush1.bf16.msra.mxu0 %v2652
    %2688 = vmatprep.subr.bf16.mxu0 0
    %2689 = vmatpush1.bf16.msra.mxu0 %v2651
    %2690 = vmatprep.subr.bf16.mxu0 0
    %2691 = vmatpush1.bf16.msra.mxu0 %v2650
    %2692 = vmatprep.subr.bf16.mxu0 0
    %2693 = vmatpush1.bf16.msra.mxu0 %v2649
    %2694 = vmatprep.subr.bf16.mxu0 0
    %2695 = vmatpush1.bf16.msra.mxu0 %v2648
    %2696 = vmatprep.subr.bf16.mxu0 0
    %2697 = vmatpush2.bf16.msra.mxu0 %v2663
    %2698 = vmatprep.subr.bf16.mxu0 0
    %2699 = vmatpush2.bf16.msra.mxu0 %v2662
    %2700 = vmatprep.subr.bf16.mxu0 0
    %2701 = vmatpush2.bf16.msra.mxu0 %v2661
    %2702 = vmatprep.subr.bf16.mxu0 0
    %2703 = vmatpush2.bf16.msra.mxu0 %v2660
    %2704 = vmatprep.subr.bf16.mxu0 0
    %2705 = vmatpush2.bf16.msra.mxu0 %v2659
    %2706 = vmatprep.subr.bf16.mxu0 0
    %2707 = vmatpush2.bf16.msra.mxu0 %v2658
    %2708 = vmatprep.subr.bf16.mxu0 0
    %2709 = vmatpush2.bf16.msra.mxu0 %v2657
    %2710 = vmatprep.subr.bf16.mxu0 0
    %2711 = vmatpush2.bf16.msra.mxu0 %v2656
    %2712 = vmatprep.mubr.bf16.mxu0 %v2537
    %2713 = vmatmul.mubr.bf16.gmra.mxu0 %v2536
    %v2714 = vpop.f32.mrf.mxu0
    %v2715 = vadd.f32 0.0, %v2714
    %v2716 = vpop.f32.mrf.mxu0
    %v2717 = vpop.f32.mrf.mxu0
    %v2718 = vadd.f32 0.0, %v2717
    %v2719 = vpop.f32.mrf.mxu0
    %2720 = vmatprep.mubr.bf16.mxu0 %v2539
    %2721 = vmatmul.mubr.bf16.gmra.mxu0 %v2538
    %v2722 = vpop.f32.mrf.mxu0
    %v2723 = vadd.f32 0.0, %v2722
    %v2724 = vpop.f32.mrf.mxu0
    %v2725 = vpop.f32.mrf.mxu0
    %v2726 = vadd.f32 0.0, %v2725
    %v2727 = vpop.f32.mrf.mxu0
    %2728 = vmatprep.mubr.bf16.mxu0 %v2541
    %2729 = vmatmul.mubr.bf16.gmra.mxu0 %v2540
    %v2730 = vpop.f32.mrf.mxu0
    %v2731 = vadd.f32 0.0, %v2730
    %v2732 = vpop.f32.mrf.mxu0
    %v2733 = vpop.f32.mrf.mxu0
    %v2734 = vadd.f32 0.0, %v2733
    %v2735 = vpop.f32.mrf.mxu0
    %2736 = vmatprep.mubr.bf16.mxu0 %v2543
    %2737 = vmatmul.mubr.bf16.gmra.mxu0 %v2542
    %v2738 = vpop.f32.mrf.mxu0
    %v2739 = vadd.f32 0.0, %v2738
    %v2740 = vpop.f32.mrf.mxu0
    %v2741 = vpop.f32.mrf.mxu0
    %v2742 = vadd.f32 0.0, %v2741
    %v2743 = vpop.f32.mrf.mxu0
    %2744 = vmatprep.mubr.bf16.mxu0 %v2545
    %2745 = vmatmul.mubr.bf16.gmra.mxu0 %v2544
    %v2746 = vpop.f32.mrf.mxu0
    %v2747 = vadd.f32 0.0, %v2746
    %v2748 = vpop.f32.mrf.mxu0
    %v2749 = vpop.f32.mrf.mxu0
    %v2750 = vadd.f32 0.0, %v2749
    %v2751 = vpop.f32.mrf.mxu0
    %2752 = vmatprep.mubr.bf16.mxu0 %v2547
    %2753 = vmatmul.mubr.bf16.gmra.mxu0 %v2546
    %v2754 = vpop.f32.mrf.mxu0
    %v2755 = vadd.f32 0.0, %v2754
    %v2756 = vpop.f32.mrf.mxu0
    %v2757 = vpop.f32.mrf.mxu0
    %v2758 = vadd.f32 0.0, %v2757
    %v2759 = vpop.f32.mrf.mxu0
    %2760 = vmatprep.mubr.bf16.mxu0 %v2549
    %2761 = vmatmul.mubr.bf16.gmra.mxu0 %v2548
    %v2762 = vpop.f32.mrf.mxu0
    %v2763 = vadd.f32 0.0, %v2762
    %v2764 = vpop.f32.mrf.mxu0
    %v2765 = vpop.f32.mrf.mxu0
    %v2766 = vadd.f32 0.0, %v2765
    %v2767 = vpop.f32.mrf.mxu0
    %2768 = vmatprep.mubr.bf16.mxu0 %v2551
    %2769 = vmatmul.mubr.bf16.gmra.mxu0 %v2550
    %v2770 = vpop.f32.mrf.mxu0
    %v2771 = vadd.f32 0.0, %v2770
    %v2772 = vpop.f32.mrf.mxu0
    %v2773 = vpop.f32.mrf.mxu0
    %v2774 = vadd.f32 0.0, %v2773
    %v2775 = vpop.f32.mrf.mxu0
    %2776 = vdwg.mxu0
    %v2777 = vld [vmem:[#allocation22] sm:$0xff]
    %v2778 = vld [vmem:[#allocation22 + $0x8] sm:$0xff]
    %v2779 = vld [vmem:[#allocation22 + $0x10] sm:$0xff]
    %v2780 = vld [vmem:[#allocation22 + $0x18] sm:$0xff]
    %v2781 = vld [vmem:[#allocation22 + $0x20] sm:$0xff]
    %v2782 = vld [vmem:[#allocation22 + $0x28] sm:$0xff]
    %v2783 = vld [vmem:[#allocation22 + $0x30] sm:$0xff]
    %v2784 = vld [vmem:[#allocation22 + $0x38] sm:$0xff]
    %v2785 = vld [vmem:[#allocation22 + $0x40] sm:$0xff]
    %v2786 = vld [vmem:[#allocation22 + $0x48] sm:$0xff]
    %v2787 = vld [vmem:[#allocation22 + $0x50] sm:$0xff]
    %v2788 = vld [vmem:[#allocation22 + $0x58] sm:$0xff]
    %v2789 = vld [vmem:[#allocation22 + $0x60] sm:$0xff]
    %v2790 = vld [vmem:[#allocation22 + $0x68] sm:$0xff]
    %v2791 = vld [vmem:[#allocation22 + $0x70] sm:$0xff]
    %v2792 = vld [vmem:[#allocation22 + $0x78] sm:$0xff]
    %2793 = vmatprep.subr.mxu0 0.0
    %2794 = vmatpush1.msra.mxu0 %v2792
    %2795 = vmatprep.subr.mxu0 0.0
    %2796 = vmatpush1.msra.mxu0 %v2791
    %2797 = vmatprep.subr.mxu0 0.0
    %2798 = vmatpush1.msra.mxu0 %v2790
    %2799 = vmatprep.subr.mxu0 0.0
    %2800 = vmatpush1.msra.mxu0 %v2789
    %2801 = vmatprep.subr.mxu0 0.0
    %2802 = vmatpush1.msra.mxu0 %v2788
    %2803 = vmatprep.subr.mxu0 0.0
    %2804 = vmatpush1.msra.mxu0 %v2787
    %2805 = vmatprep.subr.mxu0 0.0
    %2806 = vmatpush1.msra.mxu0 %v2786
    %2807 = vmatprep.subr.mxu0 0.0
    %2808 = vmatpush1.msra.mxu0 %v2785
    %2809 = vmatprep.subr.mxu0 0.0
    %2810 = vmatpush1.msra.mxu0 %v2784
    %2811 = vmatprep.subr.mxu0 0.0
    %2812 = vmatpush1.msra.mxu0 %v2783
    %2813 = vmatprep.subr.mxu0 0.0
    %2814 = vmatpush1.msra.mxu0 %v2782
    %2815 = vmatprep.subr.mxu0 0.0
    %2816 = vmatpush1.msra.mxu0 %v2781
    %2817 = vmatprep.subr.mxu0 0.0
    %2818 = vmatpush1.msra.mxu0 %v2780
    %2819 = vmatprep.subr.mxu0 0.0
    %2820 = vmatpush1.msra.mxu0 %v2779
    %2821 = vmatprep.subr.mxu0 0.0
    %2822 = vmatpush1.msra.mxu0 %v2778
    %2823 = vmatprep.subr.mxu0 0.0
    %2824 = vmatpush1.msra.mxu0 %v2777
    %2825 = vmatprep.subr.mxu0 0.0
    %2826 = vmatpush2.msra.mxu0 0.0
    %2827 = vmatprep.subr.mxu0 0.0
    %2828 = vmatpush2.msra.mxu0 0.0
    %2829 = vmatprep.subr.mxu0 0.0
    %2830 = vmatpush2.msra.mxu0 0.0
    %2831 = vmatprep.subr.mxu0 0.0
    %2832 = vmatpush2.msra.mxu0 0.0
    %2833 = vmatprep.subr.mxu0 0.0
    %2834 = vmatpush2.msra.mxu0 0.0
    %2835 = vmatprep.subr.mxu0 0.0
    %2836 = vmatpush2.msra.mxu0 0.0
    %2837 = vmatprep.subr.mxu0 0.0
    %2838 = vmatpush2.msra.mxu0 0.0
    %2839 = vmatprep.subr.mxu0 0.0
    %2840 = vmatpush2.msra.mxu0 0.0
    %2841 = vmatprep.subr.mxu0 0.0
    %2842 = vmatpush2.msra.mxu0 0.0
    %2843 = vmatprep.subr.mxu0 0.0
    %2844 = vmatpush2.msra.mxu0 0.0
    %2845 = vmatprep.subr.mxu0 0.0
    %2846 = vmatpush2.msra.mxu0 0.0
    %2847 = vmatprep.subr.mxu0 0.0
    %2848 = vmatpush2.msra.mxu0 0.0
    %2849 = vmatprep.subr.mxu0 0.0
    %2850 = vmatpush2.msra.mxu0 0.0
    %2851 = vmatprep.subr.mxu0 0.0
    %2852 = vmatpush2.msra.mxu0 0.0
    %2853 = vmatprep.subr.mxu0 0.0
    %2854 = vmatpush2.msra.mxu0 0.0
    %2855 = vmatprep.subr.mxu0 0.0
    %2856 = vmatpush2.msra.mxu0 0.0
    %2857 = vmatprep.mubr.f32.mxu0 0.0
    %2858 = vmatmul.mubr.f32.gmra.mxu0 %v338
    %v2859 = vpop.f32.mrf.mxu0
    %v2860 = vadd.f32 0.0, %v2859
    %v2861 = vpop.f32.mrf.mxu0
    %2862 = vmatprep.mubr.f32.mxu0 0.0
    %2863 = vmatmul.mubr.f32.gmra.mxu0 %v339
    %v2864 = vpop.f32.mrf.mxu0
    %v2865 = vadd.f32 0.0, %v2864
    %v2866 = vpop.f32.mrf.mxu0
    %2867 = vmatprep.mubr.f32.mxu0 0.0
    %2868 = vmatmul.mubr.f32.gmra.mxu0 %v340
    %v2869 = vpop.f32.mrf.mxu0
    %v2870 = vadd.f32 0.0, %v2869
    %v2871 = vpop.f32.mrf.mxu0
    %2872 = vmatprep.mubr.f32.mxu0 0.0
    %2873 = vmatmul.mubr.f32.gmra.mxu0 %v341
    %v2874 = vpop.f32.mrf.mxu0
    %v2875 = vadd.f32 0.0, %v2874
    %v2876 = vpop.f32.mrf.mxu0
    %2877 = vmatprep.mubr.f32.mxu0 0.0
    %2878 = vmatmul.mubr.f32.gmra.mxu0 %v342
    %v2879 = vpop.f32.mrf.mxu0
    %v2880 = vadd.f32 0.0, %v2879
    %v2881 = vpop.f32.mrf.mxu0
    %2882 = vmatprep.mubr.f32.mxu0 0.0
    %2883 = vmatmul.mubr.f32.gmra.mxu0 %v343
    %v2884 = vpop.f32.mrf.mxu0
    %v2885 = vadd.f32 0.0, %v2884
    %v2886 = vpop.f32.mrf.mxu0
    %2887 = vmatprep.mubr.f32.mxu0 0.0
    %2888 = vmatmul.mubr.f32.gmra.mxu0 %v344
    %v2889 = vpop.f32.mrf.mxu0
    %v2890 = vadd.f32 0.0, %v2889
    %v2891 = vpop.f32.mrf.mxu0
    %2892 = vmatprep.mubr.f32.mxu0 0.0
    %2893 = vmatmul.mubr.f32.gmra.mxu0 %v345
    %v2894 = vpop.f32.mrf.mxu0
    %v2895 = vadd.f32 0.0, %v2894
    %v2896 = vpop.f32.mrf.mxu0
    %2897 = vmatprep.mubr.f32.mxu0 0.0
    %2898 = vmatmul.mubr.f32.gmra.mxu0 %v346
    %v2899 = vpop.f32.mrf.mxu0
    %v2900 = vadd.f32 0.0, %v2899
    %v2901 = vpop.f32.mrf.mxu0
    %2902 = vmatprep.mubr.f32.mxu0 0.0
    %2903 = vmatmul.mubr.f32.gmra.mxu0 %v347
    %v2904 = vpop.f32.mrf.mxu0
    %v2905 = vadd.f32 0.0, %v2904
    %v2906 = vpop.f32.mrf.mxu0
    %2907 = vmatprep.mubr.f32.mxu0 0.0
    %2908 = vmatmul.mubr.f32.gmra.mxu0 %v348
    %v2909 = vpop.f32.mrf.mxu0
    %v2910 = vadd.f32 0.0, %v2909
    %v2911 = vpop.f32.mrf.mxu0
    %2912 = vmatprep.mubr.f32.mxu0 0.0
    %2913 = vmatmul.mubr.f32.gmra.mxu0 %v349
    %v2914 = vpop.f32.mrf.mxu0
    %v2915 = vadd.f32 0.0, %v2914
    %v2916 = vpop.f32.mrf.mxu0
    %2917 = vmatprep.mubr.f32.mxu0 0.0
    %2918 = vmatmul.mubr.f32.gmra.mxu0 %v350
    %v2919 = vpop.f32.mrf.mxu0
    %v2920 = vadd.f32 0.0, %v2919
    %v2921 = vpop.f32.mrf.mxu0
    %2922 = vmatprep.mubr.f32.mxu0 0.0
    %2923 = vmatmul.mubr.f32.gmra.mxu0 %v351
    %v2924 = vpop.f32.mrf.mxu0
    %v2925 = vadd.f32 0.0, %v2924
    %v2926 = vpop.f32.mrf.mxu0
    %2927 = vmatprep.mubr.f32.mxu0 0.0
    %2928 = vmatmul.mubr.f32.gmra.mxu0 %v352
    %v2929 = vpop.f32.mrf.mxu0
    %v2930 = vadd.f32 0.0, %v2929
    %v2931 = vpop.f32.mrf.mxu0
    %2932 = vmatprep.mubr.f32.mxu0 0.0
    %2933 = vmatmul.mubr.f32.gmra.mxu0 %v353
    %v2934 = vpop.f32.mrf.mxu0
    %v2935 = vadd.f32 0.0, %v2934
    %v2936 = vpop.f32.mrf.mxu0
    %2937 = vdwg.mxu0
    %vm2938 = vcmp.gt.f32.partialorder %v2860, 0.0
    %vm2939 = vcmp.gt.f32.partialorder %v2865, 0.0
    %vm2940 = vcmp.gt.f32.partialorder %v2870, 0.0
    %vm2941 = vcmp.gt.f32.partialorder %v2875, 0.0
    %vm2942 = vcmp.gt.f32.partialorder %v2880, 0.0
    %vm2943 = vcmp.gt.f32.partialorder %v2885, 0.0
    %vm2944 = vcmp.gt.f32.partialorder %v2890, 0.0
    %vm2945 = vcmp.gt.f32.partialorder %v2895, 0.0
    %vm2946 = vcmp.gt.f32.partialorder %v2900, 0.0
    %vm2947 = vcmp.gt.f32.partialorder %v2905, 0.0
    %vm2948 = vcmp.gt.f32.partialorder %v2910, 0.0
    %vm2949 = vcmp.gt.f32.partialorder %v2915, 0.0
    %vm2950 = vcmp.gt.f32.partialorder %v2920, 0.0
    %vm2951 = vcmp.gt.f32.partialorder %v2925, 0.0
    %vm2952 = vcmp.gt.f32.partialorder %v2930, 0.0
    %vm2953 = vcmp.gt.f32.partialorder %v2935, 0.0
    %v2954 = vmul.f32 %v2860, 0.2
    %v2955 = vmul.f32 %v2865, 0.2
    %v2956 = vmul.f32 %v2870, 0.2
    %v2957 = vmul.f32 %v2875, 0.2
    %v2958 = vmul.f32 %v2880, 0.2
    %v2959 = vmul.f32 %v2885, 0.2
    %v2960 = vmul.f32 %v2890, 0.2
    %v2961 = vmul.f32 %v2895, 0.2
    %v2962 = vmul.f32 %v2900, 0.2
    %v2963 = vmul.f32 %v2905, 0.2
    %v2964 = vmul.f32 %v2910, 0.2
    %v2965 = vmul.f32 %v2915, 0.2
    %v2966 = vmul.f32 %v2920, 0.2
    %v2967 = vmul.f32 %v2925, 0.2
    %v2968 = vmul.f32 %v2930, 0.2
    %v2969 = vmul.f32 %v2935, 0.2
    %v2970 = vsel %vm2938, %v2860, %v2954
    %v2971 = vsel %vm2939, %v2865, %v2955
    %v2972 = vsel %vm2940, %v2870, %v2956
    %v2973 = vsel %vm2941, %v2875, %v2957
    %v2974 = vsel %vm2942, %v2880, %v2958
    %v2975 = vsel %vm2943, %v2885, %v2959
    %v2976 = vsel %vm2944, %v2890, %v2960
    %v2977 = vsel %vm2945, %v2895, %v2961
    %v2978 = vsel %vm2946, %v2900, %v2962
    %v2979 = vsel %vm2947, %v2905, %v2963
    %v2980 = vsel %vm2948, %v2910, %v2964
    %v2981 = vsel %vm2949, %v2915, %v2965
    %v2982 = vsel %vm2950, %v2920, %v2966
    %v2983 = vsel %vm2951, %v2925, %v2967
    %v2984 = vsel %vm2952, %v2930, %v2968
    %v2985 = vsel %vm2953, %v2935, %v2969
    %v2986 = vld [vmem:[#allocation23] sm:$0xff]
    %v2987 = vld [vmem:[#allocation23 + $0x8] sm:$0xff]
    %v2988 = vld [vmem:[#allocation23 + $0x10] sm:$0xff]
    %v2989 = vld [vmem:[#allocation23 + $0x18] sm:$0xff]
    %v2990 = vld [vmem:[#allocation23 + $0x20] sm:$0xff]
    %v2991 = vld [vmem:[#allocation23 + $0x28] sm:$0xff]
    %v2992 = vld [vmem:[#allocation23 + $0x30] sm:$0xff]
    %v2993 = vld [vmem:[#allocation23 + $0x38] sm:$0xff]
    %v2994 = vld [vmem:[#allocation23 + $0x40] sm:$0xff]
    %v2995 = vld [vmem:[#allocation23 + $0x48] sm:$0xff]
    %v2996 = vld [vmem:[#allocation23 + $0x50] sm:$0xff]
    %v2997 = vld [vmem:[#allocation23 + $0x58] sm:$0xff]
    %v2998 = vld [vmem:[#allocation23 + $0x60] sm:$0xff]
    %v2999 = vld [vmem:[#allocation23 + $0x68] sm:$0xff]
    %v3000 = vld [vmem:[#allocation23 + $0x70] sm:$0xff]
    %v3001 = vld [vmem:[#allocation23 + $0x78] sm:$0xff]
    %v3002 = vld [vmem:[%s17] sm:$0x1]
    %v3004 = vlaneseq
    %v3005 = vshrl.u32 %v3004, 7
    %v3006 = vsub.s32 0, %v3005
    %v3007 = vrot.slane %v3002, %v3006
    %3009 = vmatprep.subr.mxu0 0.0
    %3010 = vmatpush1.msra.mxu0 %v3001
    %3011 = vmatprep.subr.mxu0 0.0
    %3012 = vmatpush1.msra.mxu0 %v3000
    %3013 = vmatprep.subr.mxu0 0.0
    %3014 = vmatpush1.msra.mxu0 %v2999
    %3015 = vmatprep.subr.mxu0 0.0
    %3016 = vmatpush1.msra.mxu0 %v2998
    %3017 = vmatprep.subr.mxu0 0.0
    %3018 = vmatpush1.msra.mxu0 %v2997
    %3019 = vmatprep.subr.mxu0 0.0
    %3020 = vmatpush1.msra.mxu0 %v2996
    %3021 = vmatprep.subr.mxu0 0.0
    %3022 = vmatpush1.msra.mxu0 %v2995
    %3023 = vmatprep.subr.mxu0 0.0
    %3024 = vmatpush1.msra.mxu0 %v2994
    %3025 = vmatprep.subr.mxu0 0.0
    %3026 = vmatpush1.msra.mxu0 %v2993
    %3027 = vmatprep.subr.mxu0 0.0
    %3028 = vmatpush1.msra.mxu0 %v2992
    %3029 = vmatprep.subr.mxu0 0.0
    %3030 = vmatpush1.msra.mxu0 %v2991
    %3031 = vmatprep.subr.mxu0 0.0
    %3032 = vmatpush1.msra.mxu0 %v2990
    %3033 = vmatprep.subr.mxu0 0.0
    %3034 = vmatpush1.msra.mxu0 %v2989
    %3035 = vmatprep.subr.mxu0 0.0
    %3036 = vmatpush1.msra.mxu0 %v2988
    %3037 = vmatprep.subr.mxu0 0.0
    %3038 = vmatpush1.msra.mxu0 %v2987
    %3039 = vmatprep.subr.mxu0 0.0
    %3040 = vmatpush1.msra.mxu0 %v2986
    %3041 = vmatprep.subr.mxu0 0.0
    %3042 = vmatpush2.msra.mxu0 0.0
    %3043 = vmatprep.subr.mxu0 0.0
    %3044 = vmatpush2.msra.mxu0 0.0
    %3045 = vmatprep.subr.mxu0 0.0
    %3046 = vmatpush2.msra.mxu0 0.0
    %3047 = vmatprep.subr.mxu0 0.0
    %3048 = vmatpush2.msra.mxu0 0.0
    %3049 = vmatprep.subr.mxu0 0.0
    %3050 = vmatpush2.msra.mxu0 0.0
    %3051 = vmatprep.subr.mxu0 0.0
    %3052 = vmatpush2.msra.mxu0 0.0
    %3053 = vmatprep.subr.mxu0 0.0
    %3054 = vmatpush2.msra.mxu0 0.0
    %3055 = vmatprep.subr.mxu0 0.0
    %3056 = vmatpush2.msra.mxu0 0.0
    %3057 = vmatprep.subr.mxu0 0.0
    %3058 = vmatpush2.msra.mxu0 0.0
    %3059 = vmatprep.subr.mxu0 0.0
    %3060 = vmatpush2.msra.mxu0 0.0
    %3061 = vmatprep.subr.mxu0 0.0
    %3062 = vmatpush2.msra.mxu0 0.0
    %3063 = vmatprep.subr.mxu0 0.0
    %3064 = vmatpush2.msra.mxu0 0.0
    %3065 = vmatprep.subr.mxu0 0.0
    %3066 = vmatpush2.msra.mxu0 0.0
    %3067 = vmatprep.subr.mxu0 0.0
    %3068 = vmatpush2.msra.mxu0 0.0
    %3069 = vmatprep.subr.mxu0 0.0
    %3070 = vmatpush2.msra.mxu0 0.0
    %3071 = vmatprep.subr.mxu0 0.0
    %3072 = vmatpush2.msra.mxu0 0.0
    %3073 = vmatprep.mubr.f32.mxu0 0.0
    %3074 = vmatmul.mubr.f32.gmra.mxu0 %v2970
    %v3075 = vpop.f32.mrf.mxu0
    %v3076 = vadd.f32 %v3007, %v3075
    %v3077 = vpop.f32.mrf.mxu0
    %3078 = vmatprep.mubr.f32.mxu0 0.0
    %3079 = vmatmul.mubr.f32.gmra.mxu0 %v2971
    %v3080 = vpop.f32.mrf.mxu0
    %v3081 = vadd.f32 %v3007, %v3080
    %v3082 = vpop.f32.mrf.mxu0
    %3083 = vmatprep.mubr.f32.mxu0 0.0
    %3084 = vmatmul.mubr.f32.gmra.mxu0 %v2972
    %v3085 = vpop.f32.mrf.mxu0
    %v3086 = vadd.f32 %v3007, %v3085
    %v3087 = vpop.f32.mrf.mxu0
    %3088 = vmatprep.mubr.f32.mxu0 0.0
    %3089 = vmatmul.mubr.f32.gmra.mxu0 %v2973
    %v3090 = vpop.f32.mrf.mxu0
    %v3091 = vadd.f32 %v3007, %v3090
    %v3092 = vpop.f32.mrf.mxu0
    %3093 = vmatprep.mubr.f32.mxu0 0.0
    %3094 = vmatmul.mubr.f32.gmra.mxu0 %v2974
    %v3095 = vpop.f32.mrf.mxu0
    %v3096 = vadd.f32 %v3007, %v3095
    %v3097 = vpop.f32.mrf.mxu0
    %3098 = vmatprep.mubr.f32.mxu0 0.0
    %3099 = vmatmul.mubr.f32.gmra.mxu0 %v2975
    %v3100 = vpop.f32.mrf.mxu0
    %v3101 = vadd.f32 %v3007, %v3100
    %v3102 = vpop.f32.mrf.mxu0
    %3103 = vmatprep.mubr.f32.mxu0 0.0
    %3104 = vmatmul.mubr.f32.gmra.mxu0 %v2976
    %v3105 = vpop.f32.mrf.mxu0
    %v3106 = vadd.f32 %v3007, %v3105
    %v3107 = vpop.f32.mrf.mxu0
    %3108 = vmatprep.mubr.f32.mxu0 0.0
    %3109 = vmatmul.mubr.f32.gmra.mxu0 %v2977
    %v3110 = vpop.f32.mrf.mxu0
    %v3111 = vadd.f32 %v3007, %v3110
    %v3112 = vpop.f32.mrf.mxu0
    %3113 = vmatprep.mubr.f32.mxu0 0.0
    %3114 = vmatmul.mubr.f32.gmra.mxu0 %v2978
    %v3115 = vpop.f32.mrf.mxu0
    %v3116 = vadd.f32 %v3007, %v3115
    %v3117 = vpop.f32.mrf.mxu0
    %3118 = vmatprep.mubr.f32.mxu0 0.0
    %3119 = vmatmul.mubr.f32.gmra.mxu0 %v2979
    %v3120 = vpop.f32.mrf.mxu0
    %v3121 = vadd.f32 %v3007, %v3120
    %v3122 = vpop.f32.mrf.mxu0
    %3123 = vmatprep.mubr.f32.mxu0 0.0
    %3124 = vmatmul.mubr.f32.gmra.mxu0 %v2980
    %v3125 = vpop.f32.mrf.mxu0
    %v3126 = vadd.f32 %v3007, %v3125
    %v3127 = vpop.f32.mrf.mxu0
    %3128 = vmatprep.mubr.f32.mxu0 0.0
    %3129 = vmatmul.mubr.f32.gmra.mxu0 %v2981
    %v3130 = vpop.f32.mrf.mxu0
    %v3131 = vadd.f32 %v3007, %v3130
    %v3132 = vpop.f32.mrf.mxu0
    %3133 = vmatprep.mubr.f32.mxu0 0.0
    %3134 = vmatmul.mubr.f32.gmra.mxu0 %v2982
    %v3135 = vpop.f32.mrf.mxu0
    %v3136 = vadd.f32 %v3007, %v3135
    %v3137 = vpop.f32.mrf.mxu0
    %3138 = vmatprep.mubr.f32.mxu0 0.0
    %3139 = vmatmul.mubr.f32.gmra.mxu0 %v2983
    %v3140 = vpop.f32.mrf.mxu0
    %v3141 = vadd.f32 %v3007, %v3140
    %v3142 = vpop.f32.mrf.mxu0
    %3143 = vmatprep.mubr.f32.mxu0 0.0
    %3144 = vmatmul.mubr.f32.gmra.mxu0 %v2984
    %v3145 = vpop.f32.mrf.mxu0
    %v3146 = vadd.f32 %v3007, %v3145
    %v3147 = vpop.f32.mrf.mxu0
    %3148 = vmatprep.mubr.f32.mxu0 0.0
    %3149 = vmatmul.mubr.f32.gmra.mxu0 %v2985
    %v3150 = vpop.f32.mrf.mxu0
    %v3151 = vadd.f32 %v3007, %v3150
    %v3152 = vpop.f32.mrf.mxu0
    %3153 = vdwg.mxu0
    %v3154 = vmax.f32 %v3076, %v3096
    %v3155 = vmax.f32 %v3081, %v3101
    %v3156 = vmax.f32 %v3086, %v3106
    %v3157 = vmax.f32 %v3091, %v3111
    %v3158 = vmax.f32 %v3154, %v3116
    %v3159 = vmax.f32 %v3155, %v3121
    %v3160 = vmax.f32 %v3156, %v3126
    %v3161 = vmax.f32 %v3157, %v3131
    %v3162 = vmax.f32 %v3158, %v3136
    %v3163 = vmax.f32 %v3159, %v3141
    %v3164 = vmax.f32 %v3160, %v3146
    %v3165 = vmax.f32 %v3161, %v3151
    %v3166 = vmax.f32 %v3162, %v3163
    %v3167 = vmax.f32 %v3164, %v3165
    %v3168 = vmax.f32 %v3166, %v3167
    %v3169 = vrot.slane %v3168, 4
    %v3170 = vmax.f32 %v3168, %v3169
    %v3171 = vrot.slane %v3170, 2
    %v3172 = vmax.f32 %v3170, %v3171
    %v3173 = vrot.slane %v3172, 1
    %v3174 = vmax.f32 %v3172, %v3173
    %v3175 = vsub.f32 %v3076, %v3174
    %v3176 = vsub.f32 %v3081, %v3174
    %v3177 = vsub.f32 %v3086, %v3174
    %v3178 = vsub.f32 %v3091, %v3174
    %v3179 = vsub.f32 %v3096, %v3174
    %v3180 = vsub.f32 %v3101, %v3174
    %v3181 = vsub.f32 %v3106, %v3174
    %v3182 = vsub.f32 %v3111, %v3174
    %v3183 = vsub.f32 %v3116, %v3174
    %v3184 = vsub.f32 %v3121, %v3174
    %v3185 = vsub.f32 %v3126, %v3174
    %v3186 = vsub.f32 %v3131, %v3174
    %v3187 = vsub.f32 %v3136, %v3174
    %v3188 = vsub.f32 %v3141, %v3174
    %v3189 = vsub.f32 %v3146, %v3174
    %v3190 = vsub.f32 %v3151, %v3174
    %v3191 = vmul.f32 %v3175, 1.442695
    %v3192 = vpow.pop %v3191
    %v3193 = vmul.f32 %v3176, 1.442695
    %v3194 = vpow.pop %v3193
    %v3195 = vmul.f32 %v3177, 1.442695
    %v3196 = vpow.pop %v3195
    %v3197 = vmul.f32 %v3178, 1.442695
    %v3198 = vpow.pop %v3197
    %v3199 = vmul.f32 %v3179, 1.442695
    %v3200 = vpow.pop %v3199
    %v3201 = vmul.f32 %v3180, 1.442695
    %v3202 = vpow.pop %v3201
    %v3203 = vmul.f32 %v3181, 1.442695
    %v3204 = vpow.pop %v3203
    %v3205 = vmul.f32 %v3182, 1.442695
    %v3206 = vpow.pop %v3205
    %v3207 = vmul.f32 %v3183, 1.442695
    %v3208 = vpow.pop %v3207
    %v3209 = vmul.f32 %v3184, 1.442695
    %v3210 = vpow.pop %v3209
    %v3211 = vmul.f32 %v3185, 1.442695
    %v3212 = vpow.pop %v3211
    %v3213 = vmul.f32 %v3186, 1.442695
    %v3214 = vpow.pop %v3213
    %v3215 = vmul.f32 %v3187, 1.442695
    %v3216 = vpow.pop %v3215
    %v3217 = vmul.f32 %v3188, 1.442695
    %v3218 = vpow.pop %v3217
    %v3219 = vmul.f32 %v3189, 1.442695
    %v3220 = vpow.pop %v3219
    %v3221 = vmul.f32 %v3190, 1.442695
    %v3222 = vpow.pop %v3221
    %v3223 = vpack.c.bf16 %v3194, %v3192
    %v3224 = vpack.c.bf16 %v3198, %v3196
    %v3225 = vpack.c.bf16 %v3202, %v3200
    %v3226 = vpack.c.bf16 %v3206, %v3204
    %v3227 = vpack.c.bf16 %v3210, %v3208
    %v3228 = vpack.c.bf16 %v3214, %v3212
    %v3229 = vpack.c.bf16 %v3218, %v3216
    %v3230 = vpack.c.bf16 %v3222, %v3220
    %3231 = vmatprep.subr.bf16.mxu0 0
    %3232 = vmatpush1.bf16.msra.mxu0 %v3230
    %3233 = vmatprep.subr.bf16.mxu0 0
    %3234 = vmatpush1.bf16.msra.mxu0 %v3229
    %3235 = vmatprep.subr.bf16.mxu0 0
    %3236 = vmatpush1.bf16.msra.mxu0 %v3228
    %3237 = vmatprep.subr.bf16.mxu0 0
    %3238 = vmatpush1.bf16.msra.mxu0 %v3227
    %3239 = vmatprep.subr.bf16.mxu0 0
    %3240 = vmatpush1.bf16.msra.mxu0 %v3226
    %3241 = vmatprep.subr.bf16.mxu0 0
    %3242 = vmatpush1.bf16.msra.mxu0 %v3225
    %3243 = vmatprep.subr.bf16.mxu0 0
    %3244 = vmatpush1.bf16.msra.mxu0 %v3224
    %3245 = vmatprep.subr.bf16.mxu0 0
    %3246 = vmatpush1.bf16.msra.mxu0 %v3223
    %3247 = vmatprep.subr.bf16.mxu0 0
    %3248 = vmatpush2.bf16.msra.mxu0 0
    %3249 = vmatprep.subr.bf16.mxu0 0
    %3250 = vmatpush2.bf16.msra.mxu0 0
    %3251 = vmatprep.subr.bf16.mxu0 0
    %3252 = vmatpush2.bf16.msra.mxu0 0
    %3253 = vmatprep.subr.bf16.mxu0 0
    %3254 = vmatpush2.bf16.msra.mxu0 0
    %3255 = vmatprep.subr.bf16.mxu0 0
    %3256 = vmatpush2.bf16.msra.mxu0 0
    %3257 = vmatprep.subr.bf16.mxu0 0
    %3258 = vmatpush2.bf16.msra.mxu0 0
    %3259 = vmatprep.subr.bf16.mxu0 0
    %3260 = vmatpush2.bf16.msra.mxu0 0
    %3261 = vmatprep.subr.bf16.mxu0 0
    %3262 = vmatpush2.bf16.msra.mxu0 0
    %3263 = vmatprep.mubr.bf16.mxu0 0
    %3264 = vmatmul.mubr.bf16.gmra.mxu0 %v1089
    %v3265 = vpop.f32.mrf.mxu0
    %v3266 = vadd.f32 1e-16, %v3265
    %v3267 = vpop.f32.mrf.mxu0
    %v3268 = vpop.f32.mrf.mxu0
    %v3269 = vadd.f32 1e-16, %v3268
    %v3270 = vpop.f32.mrf.mxu0
    %3271 = vmatprep.mubr.bf16.mxu0 0
    %3272 = vmatmul.mubr.bf16.gmra.mxu0 %v1090
    %v3273 = vpop.f32.mrf.mxu0
    %v3274 = vadd.f32 1e-16, %v3273
    %v3275 = vpop.f32.mrf.mxu0
    %v3276 = vpop.f32.mrf.mxu0
    %v3277 = vadd.f32 1e-16, %v3276
    %v3278 = vpop.f32.mrf.mxu0
    %3279 = vmatprep.mubr.bf16.mxu0 0
    %3280 = vmatmul.mubr.bf16.gmra.mxu0 %v1091
    %v3281 = vpop.f32.mrf.mxu0
    %v3282 = vadd.f32 1e-16, %v3281
    %v3283 = vpop.f32.mrf.mxu0
    %v3284 = vpop.f32.mrf.mxu0
    %v3285 = vadd.f32 1e-16, %v3284
    %v3286 = vpop.f32.mrf.mxu0
    %3287 = vmatprep.mubr.bf16.mxu0 0
    %3288 = vmatmul.mubr.bf16.gmra.mxu0 %v1092
    %v3289 = vpop.f32.mrf.mxu0
    %v3290 = vadd.f32 1e-16, %v3289
    %v3291 = vpop.f32.mrf.mxu0
    %v3292 = vpop.f32.mrf.mxu0
    %v3293 = vadd.f32 1e-16, %v3292
    %v3294 = vpop.f32.mrf.mxu0
    %3295 = vmatprep.mubr.bf16.mxu0 0
    %3296 = vmatmul.mubr.bf16.gmra.mxu0 %v1093
    %v3297 = vpop.f32.mrf.mxu0
    %v3298 = vadd.f32 1e-16, %v3297
    %v3299 = vpop.f32.mrf.mxu0
    %v3300 = vpop.f32.mrf.mxu0
    %v3301 = vadd.f32 1e-16, %v3300
    %v3302 = vpop.f32.mrf.mxu0
    %3303 = vmatprep.mubr.bf16.mxu0 0
    %3304 = vmatmul.mubr.bf16.gmra.mxu0 %v1094
    %v3305 = vpop.f32.mrf.mxu0
    %v3306 = vadd.f32 1e-16, %v3305
    %v3307 = vpop.f32.mrf.mxu0
    %v3308 = vpop.f32.mrf.mxu0
    %v3309 = vadd.f32 1e-16, %v3308
    %v3310 = vpop.f32.mrf.mxu0
    %3311 = vmatprep.mubr.bf16.mxu0 0
    %3312 = vmatmul.mubr.bf16.gmra.mxu0 %v1095
    %v3313 = vpop.f32.mrf.mxu0
    %v3314 = vadd.f32 1e-16, %v3313
    %v3315 = vpop.f32.mrf.mxu0
    %v3316 = vpop.f32.mrf.mxu0
    %v3317 = vadd.f32 1e-16, %v3316
    %v3318 = vpop.f32.mrf.mxu0
    %3319 = vmatprep.mubr.bf16.mxu0 0
    %3320 = vmatmul.mubr.bf16.gmra.mxu0 %v1096
    %v3321 = vpop.f32.mrf.mxu0
    %v3322 = vadd.f32 1e-16, %v3321
    %v3323 = vpop.f32.mrf.mxu0
    %v3324 = vpop.f32.mrf.mxu0
    %v3325 = vadd.f32 1e-16, %v3324
    %v3326 = vpop.f32.mrf.mxu0
    %3327 = vdwg.mxu0
    %v3328 = vrcp.pop %v3266
    %v3329 = vrcp.pop %v3269
    %v3330 = vrcp.pop %v3274
    %v3331 = vrcp.pop %v3277
    %v3332 = vrcp.pop %v3282
    %v3333 = vrcp.pop %v3285
    %v3334 = vrcp.pop %v3290
    %v3335 = vrcp.pop %v3293
    %v3336 = vrcp.pop %v3298
    %v3337 = vrcp.pop %v3301
    %v3338 = vrcp.pop %v3306
    %v3339 = vrcp.pop %v3309
    %v3340 = vrcp.pop %v3314
    %v3341 = vrcp.pop %v3317
    %v3342 = vrcp.pop %v3322
    %v3343 = vrcp.pop %v3325
    %v3344 = vpack.c.bf16 %v3329, %v3328
    %v3345 = vpack.c.bf16 %v3331, %v3330
    %v3346 = vpack.c.bf16 %v3333, %v3332
    %v3347 = vpack.c.bf16 %v3335, %v3334
    %v3348 = vpack.c.bf16 %v3337, %v3336
    %v3349 = vpack.c.bf16 %v3339, %v3338
    %v3350 = vpack.c.bf16 %v3341, %v3340
    %v3351 = vpack.c.bf16 %v3343, %v3342
    %3352 = vmatprep.subr.bf16.mxu0 0
    %3353 = vmatpush1.bf16.msra.mxu0 %v3351
    %3354 = vmatprep.subr.bf16.mxu0 0
    %3355 = vmatpush1.bf16.msra.mxu0 %v3350
    %3356 = vmatprep.subr.bf16.mxu0 0
    %3357 = vmatpush1.bf16.msra.mxu0 %v3349
    %3358 = vmatprep.subr.bf16.mxu0 0
    %3359 = vmatpush1.bf16.msra.mxu0 %v3348
    %3360 = vmatprep.subr.bf16.mxu0 0
    %3361 = vmatpush1.bf16.msra.mxu0 %v3347
    %3362 = vmatprep.subr.bf16.mxu0 0
    %3363 = vmatpush1.bf16.msra.mxu0 %v3346
    %3364 = vmatprep.subr.bf16.mxu0 0
    %3365 = vmatpush1.bf16.msra.mxu0 %v3345
    %3366 = vmatprep.subr.bf16.mxu0 0
    %3367 = vmatpush1.bf16.msra.mxu0 %v3344
    %3368 = vmatprep.subr.bf16.mxu0 0
    %3369 = vmatpush2.bf16.msra.mxu0 0
    %3370 = vmatprep.subr.bf16.mxu0 0
    %3371 = vmatpush2.bf16.msra.mxu0 0
    %3372 = vmatprep.subr.bf16.mxu0 0
    %3373 = vmatpush2.bf16.msra.mxu0 0
    %3374 = vmatprep.subr.bf16.mxu0 0
    %3375 = vmatpush2.bf16.msra.mxu0 0
    %3376 = vmatprep.subr.bf16.mxu0 0
    %3377 = vmatpush2.bf16.msra.mxu0 0
    %3378 = vmatprep.subr.bf16.mxu0 0
    %3379 = vmatpush2.bf16.msra.mxu0 0
    %3380 = vmatprep.subr.bf16.mxu0 0
    %3381 = vmatpush2.bf16.msra.mxu0 0
    %3382 = vmatprep.subr.bf16.mxu0 0
    %3383 = vmatpush2.bf16.msra.mxu0 0
    %3384 = vmatprep.mubr.bf16.mxu0 0
    %3385 = vmatmul.mubr.bf16.gmra.mxu0 %v1258
    %v3386 = vpop.f32.mrf.mxu0
    %v3387 = vadd.f32 0.0, %v3386
    %v3388 = vpop.f32.mrf.mxu0
    %v3389 = vpop.f32.mrf.mxu0
    %v3390 = vadd.f32 0.0, %v3389
    %v3391 = vpop.f32.mrf.mxu0
    %3392 = vmatprep.mubr.bf16.mxu0 0
    %3393 = vmatmul.mubr.bf16.gmra.mxu0 %v1259
    %v3394 = vpop.f32.mrf.mxu0
    %v3395 = vadd.f32 0.0, %v3394
    %v3396 = vpop.f32.mrf.mxu0
    %v3397 = vpop.f32.mrf.mxu0
    %v3398 = vadd.f32 0.0, %v3397
    %v3399 = vpop.f32.mrf.mxu0
    %3400 = vmatprep.mubr.bf16.mxu0 0
    %3401 = vmatmul.mubr.bf16.gmra.mxu0 %v1260
    %v3402 = vpop.f32.mrf.mxu0
    %v3403 = vadd.f32 0.0, %v3402
    %v3404 = vpop.f32.mrf.mxu0
    %v3405 = vpop.f32.mrf.mxu0
    %v3406 = vadd.f32 0.0, %v3405
    %v3407 = vpop.f32.mrf.mxu0
    %3408 = vmatprep.mubr.bf16.mxu0 0
    %3409 = vmatmul.mubr.bf16.gmra.mxu0 %v1261
    %v3410 = vpop.f32.mrf.mxu0
    %v3411 = vadd.f32 0.0, %v3410
    %v3412 = vpop.f32.mrf.mxu0
    %v3413 = vpop.f32.mrf.mxu0
    %v3414 = vadd.f32 0.0, %v3413
    %v3415 = vpop.f32.mrf.mxu0
    %3416 = vmatprep.mubr.bf16.mxu0 0
    %3417 = vmatmul.mubr.bf16.gmra.mxu0 %v1262
    %v3418 = vpop.f32.mrf.mxu0
    %v3419 = vadd.f32 0.0, %v3418
    %v3420 = vpop.f32.mrf.mxu0
    %v3421 = vpop.f32.mrf.mxu0
    %v3422 = vadd.f32 0.0, %v3421
    %v3423 = vpop.f32.mrf.mxu0
    %3424 = vmatprep.mubr.bf16.mxu0 0
    %3425 = vmatmul.mubr.bf16.gmra.mxu0 %v1263
    %v3426 = vpop.f32.mrf.mxu0
    %v3427 = vadd.f32 0.0, %v3426
    %v3428 = vpop.f32.mrf.mxu0
    %v3429 = vpop.f32.mrf.mxu0
    %v3430 = vadd.f32 0.0, %v3429
    %v3431 = vpop.f32.mrf.mxu0
    %3432 = vmatprep.mubr.bf16.mxu0 0
    %3433 = vmatmul.mubr.bf16.gmra.mxu0 %v1264
    %v3434 = vpop.f32.mrf.mxu0
    %v3435 = vadd.f32 0.0, %v3434
    %v3436 = vpop.f32.mrf.mxu0
    %v3437 = vpop.f32.mrf.mxu0
    %v3438 = vadd.f32 0.0, %v3437
    %v3439 = vpop.f32.mrf.mxu0
    %3440 = vmatprep.mubr.bf16.mxu0 0
    %3441 = vmatmul.mubr.bf16.gmra.mxu0 %v1265
    %v3442 = vpop.f32.mrf.mxu0
    %v3443 = vadd.f32 0.0, %v3442
    %v3444 = vpop.f32.mrf.mxu0
    %v3445 = vpop.f32.mrf.mxu0
    %v3446 = vadd.f32 0.0, %v3445
    %v3447 = vpop.f32.mrf.mxu0
    %3448 = vdwg.mxu0
    %v3449 = vmul.f32 %v3192, %v3387
    %v3450 = vmul.f32 %v3194, %v3390
    %v3451 = vmul.f32 %v3196, %v3395
    %v3452 = vmul.f32 %v3198, %v3398
    %v3453 = vmul.f32 %v3200, %v3403
    %v3454 = vmul.f32 %v3202, %v3406
    %v3455 = vmul.f32 %v3204, %v3411
    %v3456 = vmul.f32 %v3206, %v3414
    %v3457 = vmul.f32 %v3208, %v3419
    %v3458 = vmul.f32 %v3210, %v3422
    %v3459 = vmul.f32 %v3212, %v3427
    %v3460 = vmul.f32 %v3214, %v3430
    %v3461 = vmul.f32 %v3216, %v3435
    %v3462 = vmul.f32 %v3218, %v3438
    %v3463 = vmul.f32 %v3220, %v3443
    %v3464 = vmul.f32 %v3222, %v3446
    %v3465 = vpack.c.bf16 %v2718, %v2715
    %v3466 = vpack.c.bf16 %v2726, %v2723
    %v3467 = vpack.c.bf16 %v2734, %v2731
    %v3468 = vpack.c.bf16 %v2742, %v2739
    %v3469 = vpack.c.bf16 %v2750, %v2747
    %v3470 = vpack.c.bf16 %v2758, %v2755
    %v3471 = vpack.c.bf16 %v2766, %v2763
    %v3472 = vpack.c.bf16 %v2774, %v2771
    %3473 = vmatprep.subr.bf16.mxu0 0
    %3474 = vmatpush1.bf16.msra.mxu0 %v3472
    %3475 = vmatprep.subr.bf16.mxu0 0
    %3476 = vmatpush1.bf16.msra.mxu0 %v3471
    %3477 = vmatprep.subr.bf16.mxu0 0
    %3478 = vmatpush1.bf16.msra.mxu0 %v3470
    %3479 = vmatprep.subr.bf16.mxu0 0
    %3480 = vmatpush1.bf16.msra.mxu0 %v3469
    %3481 = vmatprep.subr.bf16.mxu0 0
    %3482 = vmatpush1.bf16.msra.mxu0 %v3468
    %3483 = vmatprep.subr.bf16.mxu0 0
    %3484 = vmatpush1.bf16.msra.mxu0 %v3467
    %3485 = vmatprep.subr.bf16.mxu0 0
    %3486 = vmatpush1.bf16.msra.mxu0 %v3466
    %3487 = vmatprep.subr.bf16.mxu0 0
    %3488 = vmatpush1.bf16.msra.mxu0 %v3465
    %3489 = vmatprep.subr.bf16.mxu0 0
    %3490 = vmatpush2.bf16.msra.mxu0 0
    %3491 = vmatprep.subr.bf16.mxu0 0
    %3492 = vmatpush2.bf16.msra.mxu0 0
    %3493 = vmatprep.subr.bf16.mxu0 0
    %3494 = vmatpush2.bf16.msra.mxu0 0
    %3495 = vmatprep.subr.bf16.mxu0 0
    %3496 = vmatpush2.bf16.msra.mxu0 0
    %3497 = vmatprep.subr.bf16.mxu0 0
    %3498 = vmatpush2.bf16.msra.mxu0 0
    %3499 = vmatprep.subr.bf16.mxu0 0
    %3500 = vmatpush2.bf16.msra.mxu0 0
    %3501 = vmatprep.subr.bf16.mxu0 0
    %3502 = vmatpush2.bf16.msra.mxu0 0
    %3503 = vmatprep.subr.bf16.mxu0 0
    %3504 = vmatpush2.bf16.msra.mxu0 0
    %3505 = vmatprep.mubr.bf16.mxu0 0
    %3506 = vmatmul.mubr.bf16.gmra.mxu0 %v1258
    %v3507 = vpop.f32.mrf.mxu0
    %v3508 = vadd.f32 0.0, %v3507
    %v3509 = vpop.f32.mrf.mxu0
    %v3510 = vpop.f32.mrf.mxu0
    %v3511 = vadd.f32 0.0, %v3510
    %v3512 = vpop.f32.mrf.mxu0
    %3513 = vmatprep.mubr.bf16.mxu0 0
    %3514 = vmatmul.mubr.bf16.gmra.mxu0 %v1259
    %v3515 = vpop.f32.mrf.mxu0
    %v3516 = vadd.f32 0.0, %v3515
    %v3517 = vpop.f32.mrf.mxu0
    %v3518 = vpop.f32.mrf.mxu0
    %v3519 = vadd.f32 0.0, %v3518
    %v3520 = vpop.f32.mrf.mxu0
    %3521 = vmatprep.mubr.bf16.mxu0 0
    %3522 = vmatmul.mubr.bf16.gmra.mxu0 %v1260
    %v3523 = vpop.f32.mrf.mxu0
    %v3524 = vadd.f32 0.0, %v3523
    %v3525 = vpop.f32.mrf.mxu0
    %v3526 = vpop.f32.mrf.mxu0
    %v3527 = vadd.f32 0.0, %v3526
    %v3528 = vpop.f32.mrf.mxu0
    %3529 = vmatprep.mubr.bf16.mxu0 0
    %3530 = vmatmul.mubr.bf16.gmra.mxu0 %v1261
    %v3531 = vpop.f32.mrf.mxu0
    %v3532 = vadd.f32 0.0, %v3531
    %v3533 = vpop.f32.mrf.mxu0
    %v3534 = vpop.f32.mrf.mxu0
    %v3535 = vadd.f32 0.0, %v3534
    %v3536 = vpop.f32.mrf.mxu0
    %3537 = vmatprep.mubr.bf16.mxu0 0
    %3538 = vmatmul.mubr.bf16.gmra.mxu0 %v1262
    %v3539 = vpop.f32.mrf.mxu0
    %v3540 = vadd.f32 0.0, %v3539
    %v3541 = vpop.f32.mrf.mxu0
    %v3542 = vpop.f32.mrf.mxu0
    %v3543 = vadd.f32 0.0, %v3542
    %v3544 = vpop.f32.mrf.mxu0
    %3545 = vmatprep.mubr.bf16.mxu0 0
    %3546 = vmatmul.mubr.bf16.gmra.mxu0 %v1263
    %v3547 = vpop.f32.mrf.mxu0
    %v3548 = vadd.f32 0.0, %v3547
    %v3549 = vpop.f32.mrf.mxu0
    %v3550 = vpop.f32.mrf.mxu0
    %v3551 = vadd.f32 0.0, %v3550
    %v3552 = vpop.f32.mrf.mxu0
    %3553 = vmatprep.mubr.bf16.mxu0 0
    %3554 = vmatmul.mubr.bf16.gmra.mxu0 %v1264
    %v3555 = vpop.f32.mrf.mxu0
    %v3556 = vadd.f32 0.0, %v3555
    %v3557 = vpop.f32.mrf.mxu0
    %v3558 = vpop.f32.mrf.mxu0
    %v3559 = vadd.f32 0.0, %v3558
    %v3560 = vpop.f32.mrf.mxu0
    %3561 = vmatprep.mubr.bf16.mxu0 0
    %3562 = vmatmul.mubr.bf16.gmra.mxu0 %v1265
    %v3563 = vpop.f32.mrf.mxu0
    %v3564 = vadd.f32 0.0, %v3563
    %v3565 = vpop.f32.mrf.mxu0
    %v3566 = vpop.f32.mrf.mxu0
    %v3567 = vadd.f32 0.0, %v3566
    %v3568 = vpop.f32.mrf.mxu0
    %3569 = vdwg.mxu0
    %v3570 = vmul.f32 %v3449, %v3508
    %v3571 = vmul.f32 %v3450, %v3511
    %v3572 = vmul.f32 %v3451, %v3516
    %v3573 = vmul.f32 %v3452, %v3519
    %v3574 = vmul.f32 %v3453, %v3524
    %v3575 = vmul.f32 %v3454, %v3527
    %v3576 = vmul.f32 %v3455, %v3532
    %v3577 = vmul.f32 %v3456, %v3535
    %v3578 = vmul.f32 %v3457, %v3540
    %v3579 = vmul.f32 %v3458, %v3543
    %v3580 = vmul.f32 %v3459, %v3548
    %v3581 = vmul.f32 %v3460, %v3551
    %v3582 = vmul.f32 %v3461, %v3556
    %v3583 = vmul.f32 %v3462, %v3559
    %v3584 = vmul.f32 %v3463, %v3564
    %v3585 = vmul.f32 %v3464, %v3567
    %v3586 = vpack.c.bf16 %v3571, %v3570
    %v3587 = vpack.c.bf16 %v3573, %v3572
    %v3588 = vpack.c.bf16 %v3575, %v3574
    %v3589 = vpack.c.bf16 %v3577, %v3576
    %v3590 = vpack.c.bf16 %v3579, %v3578
    %v3591 = vpack.c.bf16 %v3581, %v3580
    %v3592 = vpack.c.bf16 %v3583, %v3582
    %v3593 = vpack.c.bf16 %v3585, %v3584
    %v3594 = vld [vmem:[%s21] sm:$0x1]
    %v3596 = vlaneseq
    %v3597 = vshrl.u32 %v3596, 7
    %v3598 = vsub.s32 0, %v3597
    %v3599 = vrot.slane %v3594, %v3598
    %3601 = vmatprep.subr.bf16.mxu0 0
    %3602 = vmatpush1.bf16.msra.mxu0 %v3593
    %3603 = vmatprep.subr.bf16.mxu0 0
    %3604 = vmatpush1.bf16.msra.mxu0 %v3592
    %3605 = vmatprep.subr.bf16.mxu0 0
    %3606 = vmatpush1.bf16.msra.mxu0 %v3591
    %3607 = vmatprep.subr.bf16.mxu0 0
    %3608 = vmatpush1.bf16.msra.mxu0 %v3590
    %3609 = vmatprep.subr.bf16.mxu0 0
    %3610 = vmatpush1.bf16.msra.mxu0 %v3589
    %3611 = vmatprep.subr.bf16.mxu0 0
    %3612 = vmatpush1.bf16.msra.mxu0 %v3588
    %3613 = vmatprep.subr.bf16.mxu0 0
    %3614 = vmatpush1.bf16.msra.mxu0 %v3587
    %3615 = vmatprep.subr.bf16.mxu0 0
    %3616 = vmatpush1.bf16.msra.mxu0 %v3586
    %3617 = vmatprep.subr.bf16.mxu0 0
    %3618 = vmatpush2.bf16.msra.mxu0 0
    %3619 = vmatprep.subr.bf16.mxu0 0
    %3620 = vmatpush2.bf16.msra.mxu0 0
    %3621 = vmatprep.subr.bf16.mxu0 0
    %3622 = vmatpush2.bf16.msra.mxu0 0
    %3623 = vmatprep.subr.bf16.mxu0 0
    %3624 = vmatpush2.bf16.msra.mxu0 0
    %3625 = vmatprep.subr.bf16.mxu0 0
    %3626 = vmatpush2.bf16.msra.mxu0 0
    %3627 = vmatprep.subr.bf16.mxu0 0
    %3628 = vmatpush2.bf16.msra.mxu0 0
    %3629 = vmatprep.subr.bf16.mxu0 0
    %3630 = vmatpush2.bf16.msra.mxu0 0
    %3631 = vmatprep.subr.bf16.mxu0 0
    %3632 = vmatpush2.bf16.msra.mxu0 0
    %3633 = vmatprep.mubr.bf16.mxu0 0
    %3634 = vmatmul.mubr.bf16.gmra.mxu0 %v1572
    %v3635 = vpop.f32.mrf.mxu0
    %v3636 = vadd.f32 %v3599, %v3635
    %v3637 = vpop.f32.mrf.mxu0
    %v3638 = vpop.f32.mrf.mxu0
    %v3639 = vadd.f32 %v3599, %v3638
    %v3640 = vpop.f32.mrf.mxu0
    %3641 = vmatprep.mubr.bf16.mxu0 0
    %3642 = vmatmul.mubr.bf16.gmra.mxu0 %v1573
    %v3643 = vpop.f32.mrf.mxu0
    %v3644 = vadd.f32 %v3599, %v3643
    %v3645 = vpop.f32.mrf.mxu0
    %v3646 = vpop.f32.mrf.mxu0
    %v3647 = vadd.f32 %v3599, %v3646
    %v3648 = vpop.f32.mrf.mxu0
    %3649 = vmatprep.mubr.bf16.mxu0 0
    %3650 = vmatmul.mubr.bf16.gmra.mxu0 %v1574
    %v3651 = vpop.f32.mrf.mxu0
    %v3652 = vadd.f32 %v3599, %v3651
    %v3653 = vpop.f32.mrf.mxu0
    %v3654 = vpop.f32.mrf.mxu0
    %v3655 = vadd.f32 %v3599, %v3654
    %v3656 = vpop.f32.mrf.mxu0
    %3657 = vmatprep.mubr.bf16.mxu0 0
    %3658 = vmatmul.mubr.bf16.gmra.mxu0 %v1575
    %v3659 = vpop.f32.mrf.mxu0
    %v3660 = vadd.f32 %v3599, %v3659
    %v3661 = vpop.f32.mrf.mxu0
    %v3662 = vpop.f32.mrf.mxu0
    %v3663 = vadd.f32 %v3599, %v3662
    %v3664 = vpop.f32.mrf.mxu0
    %3665 = vmatprep.mubr.bf16.mxu0 0
    %3666 = vmatmul.mubr.bf16.gmra.mxu0 %v1576
    %v3667 = vpop.f32.mrf.mxu0
    %v3668 = vadd.f32 %v3599, %v3667
    %v3669 = vpop.f32.mrf.mxu0
    %v3670 = vpop.f32.mrf.mxu0
    %v3671 = vadd.f32 %v3599, %v3670
    %v3672 = vpop.f32.mrf.mxu0
    %3673 = vmatprep.mubr.bf16.mxu0 0
    %3674 = vmatmul.mubr.bf16.gmra.mxu0 %v1577
    %v3675 = vpop.f32.mrf.mxu0
    %v3676 = vadd.f32 %v3599, %v3675
    %v3677 = vpop.f32.mrf.mxu0
    %v3678 = vpop.f32.mrf.mxu0
    %v3679 = vadd.f32 %v3599, %v3678
    %v3680 = vpop.f32.mrf.mxu0
    %3681 = vmatprep.mubr.bf16.mxu0 0
    %3682 = vmatmul.mubr.bf16.gmra.mxu0 %v1578
    %v3683 = vpop.f32.mrf.mxu0
    %v3684 = vadd.f32 %v3599, %v3683
    %v3685 = vpop.f32.mrf.mxu0
    %v3686 = vpop.f32.mrf.mxu0
    %v3687 = vadd.f32 %v3599, %v3686
    %v3688 = vpop.f32.mrf.mxu0
    %3689 = vmatprep.mubr.bf16.mxu0 0
    %3690 = vmatmul.mubr.bf16.gmra.mxu0 %v1579
    %v3691 = vpop.f32.mrf.mxu0
    %v3692 = vadd.f32 %v3599, %v3691
    %v3693 = vpop.f32.mrf.mxu0
    %v3694 = vpop.f32.mrf.mxu0
    %v3695 = vadd.f32 %v3599, %v3694
    %v3696 = vpop.f32.mrf.mxu0
    %3697 = vdwg.mxu0
    %v3698 = vld [vmem:[#allocation25] sm:$0xff]
    %v3699 = vld [vmem:[#allocation25 + $0x8] sm:$0xff]
    %v3700 = vld [vmem:[#allocation25 + $0x10] sm:$0xff]
    %v3701 = vld [vmem:[#allocation25 + $0x18] sm:$0xff]
    %v3702 = vld [vmem:[#allocation25 + $0x20] sm:$0xff]
    %v3703 = vld [vmem:[#allocation25 + $0x28] sm:$0xff]
    %v3704 = vld [vmem:[#allocation25 + $0x30] sm:$0xff]
    %v3705 = vld [vmem:[#allocation25 + $0x38] sm:$0xff]
    %v3706 = vld [vmem:[#allocation25 + $0x40] sm:$0xff]
    %v3707 = vld [vmem:[#allocation25 + $0x48] sm:$0xff]
    %v3708 = vld [vmem:[#allocation25 + $0x50] sm:$0xff]
    %v3709 = vld [vmem:[#allocation25 + $0x58] sm:$0xff]
    %v3710 = vld [vmem:[#allocation25 + $0x60] sm:$0xff]
    %v3711 = vld [vmem:[#allocation25 + $0x68] sm:$0xff]
    %v3712 = vld [vmem:[#allocation25 + $0x70] sm:$0xff]
    %v3713 = vld [vmem:[#allocation25 + $0x78] sm:$0xff]
    %3714 = vmatprep.subr.mxu0 0.0
    %3715 = vmatpush1.msra.mxu0 %v3713
    %3716 = vmatprep.subr.mxu0 0.0
    %3717 = vmatpush1.msra.mxu0 %v3712
    %3718 = vmatprep.subr.mxu0 0.0
    %3719 = vmatpush1.msra.mxu0 %v3711
    %3720 = vmatprep.subr.mxu0 0.0
    %3721 = vmatpush1.msra.mxu0 %v3710
    %3722 = vmatprep.subr.mxu0 0.0
    %3723 = vmatpush1.msra.mxu0 %v3709
    %3724 = vmatprep.subr.mxu0 0.0
    %3725 = vmatpush1.msra.mxu0 %v3708
    %3726 = vmatprep.subr.mxu0 0.0
    %3727 = vmatpush1.msra.mxu0 %v3707
    %3728 = vmatprep.subr.mxu0 0.0
    %3729 = vmatpush1.msra.mxu0 %v3706
    %3730 = vmatprep.subr.mxu0 0.0
    %3731 = vmatpush1.msra.mxu0 %v3705
    %3732 = vmatprep.subr.mxu0 0.0
    %3733 = vmatpush1.msra.mxu0 %v3704
    %3734 = vmatprep.subr.mxu0 0.0
    %3735 = vmatpush1.msra.mxu0 %v3703
    %3736 = vmatprep.subr.mxu0 0.0
    %3737 = vmatpush1.msra.mxu0 %v3702
    %3738 = vmatprep.subr.mxu0 0.0
    %3739 = vmatpush1.msra.mxu0 %v3701
    %3740 = vmatprep.subr.mxu0 0.0
    %3741 = vmatpush1.msra.mxu0 %v3700
    %3742 = vmatprep.subr.mxu0 0.0
    %3743 = vmatpush1.msra.mxu0 %v3699
    %3744 = vmatprep.subr.mxu0 0.0
    %3745 = vmatpush1.msra.mxu0 %v3698
    %3746 = vmatprep.subr.mxu0 0.0
    %3747 = vmatpush2.msra.mxu0 0.0
    %3748 = vmatprep.subr.mxu0 0.0
    %3749 = vmatpush2.msra.mxu0 0.0
    %3750 = vmatprep.subr.mxu0 0.0
    %3751 = vmatpush2.msra.mxu0 0.0
    %3752 = vmatprep.subr.mxu0 0.0
    %3753 = vmatpush2.msra.mxu0 0.0
    %3754 = vmatprep.subr.mxu0 0.0
    %3755 = vmatpush2.msra.mxu0 0.0
    %3756 = vmatprep.subr.mxu0 0.0
    %3757 = vmatpush2.msra.mxu0 0.0
    %3758 = vmatprep.subr.mxu0 0.0
    %3759 = vmatpush2.msra.mxu0 0.0
    %3760 = vmatprep.subr.mxu0 0.0
    %3761 = vmatpush2.msra.mxu0 0.0
    %3762 = vmatprep.subr.mxu0 0.0
    %3763 = vmatpush2.msra.mxu0 0.0
    %3764 = vmatprep.subr.mxu0 0.0
    %3765 = vmatpush2.msra.mxu0 0.0
    %3766 = vmatprep.subr.mxu0 0.0
    %3767 = vmatpush2.msra.mxu0 0.0
    %3768 = vmatprep.subr.mxu0 0.0
    %3769 = vmatpush2.msra.mxu0 0.0
    %3770 = vmatprep.subr.mxu0 0.0
    %3771 = vmatpush2.msra.mxu0 0.0
    %3772 = vmatprep.subr.mxu0 0.0
    %3773 = vmatpush2.msra.mxu0 0.0
    %3774 = vmatprep.subr.mxu0 0.0
    %3775 = vmatpush2.msra.mxu0 0.0
    %3776 = vmatprep.subr.mxu0 0.0
    %3777 = vmatpush2.msra.mxu0 0.0
    %3778 = vmatprep.mubr.f32.mxu0 0.0
    %3779 = vmatmul.mubr.f32.gmra.mxu0 %v354
    %v3780 = vpop.f32.mrf.mxu0
    %v3781 = vadd.f32 0.0, %v3780
    %v3782 = vpop.f32.mrf.mxu0
    %3783 = vmatprep.mubr.f32.mxu0 0.0
    %3784 = vmatmul.mubr.f32.gmra.mxu0 %v355
    %v3785 = vpop.f32.mrf.mxu0
    %v3786 = vadd.f32 0.0, %v3785
    %v3787 = vpop.f32.mrf.mxu0
    %3788 = vmatprep.mubr.f32.mxu0 0.0
    %3789 = vmatmul.mubr.f32.gmra.mxu0 %v356
    %v3790 = vpop.f32.mrf.mxu0
    %v3791 = vadd.f32 0.0, %v3790
    %v3792 = vpop.f32.mrf.mxu0
    %3793 = vmatprep.mubr.f32.mxu0 0.0
    %3794 = vmatmul.mubr.f32.gmra.mxu0 %v357
    %v3795 = vpop.f32.mrf.mxu0
    %v3796 = vadd.f32 0.0, %v3795
    %v3797 = vpop.f32.mrf.mxu0
    %3798 = vmatprep.mubr.f32.mxu0 0.0
    %3799 = vmatmul.mubr.f32.gmra.mxu0 %v358
    %v3800 = vpop.f32.mrf.mxu0
    %v3801 = vadd.f32 0.0, %v3800
    %v3802 = vpop.f32.mrf.mxu0
    %3803 = vmatprep.mubr.f32.mxu0 0.0
    %3804 = vmatmul.mubr.f32.gmra.mxu0 %v359
    %v3805 = vpop.f32.mrf.mxu0
    %v3806 = vadd.f32 0.0, %v3805
    %v3807 = vpop.f32.mrf.mxu0
    %3808 = vmatprep.mubr.f32.mxu0 0.0
    %3809 = vmatmul.mubr.f32.gmra.mxu0 %v360
    %v3810 = vpop.f32.mrf.mxu0
    %v3811 = vadd.f32 0.0, %v3810
    %v3812 = vpop.f32.mrf.mxu0
    %3813 = vmatprep.mubr.f32.mxu0 0.0
    %3814 = vmatmul.mubr.f32.gmra.mxu0 %v361
    %v3815 = vpop.f32.mrf.mxu0
    %v3816 = vadd.f32 0.0, %v3815
    %v3817 = vpop.f32.mrf.mxu0
    %3818 = vmatprep.mubr.f32.mxu0 0.0
    %3819 = vmatmul.mubr.f32.gmra.mxu0 %v362
    %v3820 = vpop.f32.mrf.mxu0
    %v3821 = vadd.f32 0.0, %v3820
    %v3822 = vpop.f32.mrf.mxu0
    %3823 = vmatprep.mubr.f32.mxu0 0.0
    %3824 = vmatmul.mubr.f32.gmra.mxu0 %v363
    %v3825 = vpop.f32.mrf.mxu0
    %v3826 = vadd.f32 0.0, %v3825
    %v3827 = vpop.f32.mrf.mxu0
    %3828 = vmatprep.mubr.f32.mxu0 0.0
    %3829 = vmatmul.mubr.f32.gmra.mxu0 %v364
    %v3830 = vpop.f32.mrf.mxu0
    %v3831 = vadd.f32 0.0, %v3830
    %v3832 = vpop.f32.mrf.mxu0
    %3833 = vmatprep.mubr.f32.mxu0 0.0
    %3834 = vmatmul.mubr.f32.gmra.mxu0 %v365
    %v3835 = vpop.f32.mrf.mxu0
    %v3836 = vadd.f32 0.0, %v3835
    %v3837 = vpop.f32.mrf.mxu0
    %3838 = vmatprep.mubr.f32.mxu0 0.0
    %3839 = vmatmul.mubr.f32.gmra.mxu0 %v366
    %v3840 = vpop.f32.mrf.mxu0
    %v3841 = vadd.f32 0.0, %v3840
    %v3842 = vpop.f32.mrf.mxu0
    %3843 = vmatprep.mubr.f32.mxu0 0.0
    %3844 = vmatmul.mubr.f32.gmra.mxu0 %v367
    %v3845 = vpop.f32.mrf.mxu0
    %v3846 = vadd.f32 0.0, %v3845
    %v3847 = vpop.f32.mrf.mxu0
    %3848 = vmatprep.mubr.f32.mxu0 0.0
    %3849 = vmatmul.mubr.f32.gmra.mxu0 %v368
    %v3850 = vpop.f32.mrf.mxu0
    %v3851 = vadd.f32 0.0, %v3850
    %v3852 = vpop.f32.mrf.mxu0
    %3853 = vmatprep.mubr.f32.mxu0 0.0
    %3854 = vmatmul.mubr.f32.gmra.mxu0 %v369
    %v3855 = vpop.f32.mrf.mxu0
    %v3856 = vadd.f32 0.0, %v3855
    %v3857 = vpop.f32.mrf.mxu0
    %3858 = vdwg.mxu0
    %vm3859 = vcmp.gt.f32.partialorder %v3781, 0.0
    %vm3860 = vcmp.gt.f32.partialorder %v3786, 0.0
    %vm3861 = vcmp.gt.f32.partialorder %v3791, 0.0
    %vm3862 = vcmp.gt.f32.partialorder %v3796, 0.0
    %vm3863 = vcmp.gt.f32.partialorder %v3801, 0.0
    %vm3864 = vcmp.gt.f32.partialorder %v3806, 0.0
    %vm3865 = vcmp.gt.f32.partialorder %v3811, 0.0
    %vm3866 = vcmp.gt.f32.partialorder %v3816, 0.0
    %vm3867 = vcmp.gt.f32.partialorder %v3821, 0.0
    %vm3868 = vcmp.gt.f32.partialorder %v3826, 0.0
    %vm3869 = vcmp.gt.f32.partialorder %v3831, 0.0
    %vm3870 = vcmp.gt.f32.partialorder %v3836, 0.0
    %vm3871 = vcmp.gt.f32.partialorder %v3841, 0.0
    %vm3872 = vcmp.gt.f32.partialorder %v3846, 0.0
    %vm3873 = vcmp.gt.f32.partialorder %v3851, 0.0
    %vm3874 = vcmp.gt.f32.partialorder %v3856, 0.0
    %v3875 = vmul.f32 %v3781, 0.2
    %v3876 = vmul.f32 %v3786, 0.2
    %v3877 = vmul.f32 %v3791, 0.2
    %v3878 = vmul.f32 %v3796, 0.2
    %v3879 = vmul.f32 %v3801, 0.2
    %v3880 = vmul.f32 %v3806, 0.2
    %v3881 = vmul.f32 %v3811, 0.2
    %v3882 = vmul.f32 %v3816, 0.2
    %v3883 = vmul.f32 %v3821, 0.2
    %v3884 = vmul.f32 %v3826, 0.2
    %v3885 = vmul.f32 %v3831, 0.2
    %v3886 = vmul.f32 %v3836, 0.2
    %v3887 = vmul.f32 %v3841, 0.2
    %v3888 = vmul.f32 %v3846, 0.2
    %v3889 = vmul.f32 %v3851, 0.2
    %v3890 = vmul.f32 %v3856, 0.2
    %v3891 = vsel %vm3859, %v3781, %v3875
    %v3892 = vsel %vm3860, %v3786, %v3876
    %v3893 = vsel %vm3861, %v3791, %v3877
    %v3894 = vsel %vm3862, %v3796, %v3878
    %v3895 = vsel %vm3863, %v3801, %v3879
    %v3896 = vsel %vm3864, %v3806, %v3880
    %v3897 = vsel %vm3865, %v3811, %v3881
    %v3898 = vsel %vm3866, %v3816, %v3882
    %v3899 = vsel %vm3867, %v3821, %v3883
    %v3900 = vsel %vm3868, %v3826, %v3884
    %v3901 = vsel %vm3869, %v3831, %v3885
    %v3902 = vsel %vm3870, %v3836, %v3886
    %v3903 = vsel %vm3871, %v3841, %v3887
    %v3904 = vsel %vm3872, %v3846, %v3888
    %v3905 = vsel %vm3873, %v3851, %v3889
    %v3906 = vsel %vm3874, %v3856, %v3890
    %v3907 = vld [vmem:[#allocation26] sm:$0xff]
    %v3908 = vld [vmem:[#allocation26 + $0x8] sm:$0xff]
    %v3909 = vld [vmem:[#allocation26 + $0x10] sm:$0xff]
    %v3910 = vld [vmem:[#allocation26 + $0x18] sm:$0xff]
    %v3911 = vld [vmem:[#allocation26 + $0x20] sm:$0xff]
    %v3912 = vld [vmem:[#allocation26 + $0x28] sm:$0xff]
    %v3913 = vld [vmem:[#allocation26 + $0x30] sm:$0xff]
    %v3914 = vld [vmem:[#allocation26 + $0x38] sm:$0xff]
    %v3915 = vld [vmem:[#allocation26 + $0x40] sm:$0xff]
    %v3916 = vld [vmem:[#allocation26 + $0x48] sm:$0xff]
    %v3917 = vld [vmem:[#allocation26 + $0x50] sm:$0xff]
    %v3918 = vld [vmem:[#allocation26 + $0x58] sm:$0xff]
    %v3919 = vld [vmem:[#allocation26 + $0x60] sm:$0xff]
    %v3920 = vld [vmem:[#allocation26 + $0x68] sm:$0xff]
    %v3921 = vld [vmem:[#allocation26 + $0x70] sm:$0xff]
    %v3922 = vld [vmem:[#allocation26 + $0x78] sm:$0xff]
    %v3923 = vld [vmem:[%s20] sm:$0x1]
    %v3925 = vlaneseq
    %v3926 = vshrl.u32 %v3925, 7
    %v3927 = vsub.s32 0, %v3926
    %v3928 = vrot.slane %v3923, %v3927
    %3930 = vmatprep.subr.mxu0 0.0
    %3931 = vmatpush1.msra.mxu0 %v3922
    %3932 = vmatprep.subr.mxu0 0.0
    %3933 = vmatpush1.msra.mxu0 %v3921
    %3934 = vmatprep.subr.mxu0 0.0
    %3935 = vmatpush1.msra.mxu0 %v3920
    %3936 = vmatprep.subr.mxu0 0.0
    %3937 = vmatpush1.msra.mxu0 %v3919
    %3938 = vmatprep.subr.mxu0 0.0
    %3939 = vmatpush1.msra.mxu0 %v3918
    %3940 = vmatprep.subr.mxu0 0.0
    %3941 = vmatpush1.msra.mxu0 %v3917
    %3942 = vmatprep.subr.mxu0 0.0
    %3943 = vmatpush1.msra.mxu0 %v3916
    %3944 = vmatprep.subr.mxu0 0.0
    %3945 = vmatpush1.msra.mxu0 %v3915
    %3946 = vmatprep.subr.mxu0 0.0
    %3947 = vmatpush1.msra.mxu0 %v3914
    %3948 = vmatprep.subr.mxu0 0.0
    %3949 = vmatpush1.msra.mxu0 %v3913
    %3950 = vmatprep.subr.mxu0 0.0
    %3951 = vmatpush1.msra.mxu0 %v3912
    %3952 = vmatprep.subr.mxu0 0.0
    %3953 = vmatpush1.msra.mxu0 %v3911
    %3954 = vmatprep.subr.mxu0 0.0
    %3955 = vmatpush1.msra.mxu0 %v3910
    %3956 = vmatprep.subr.mxu0 0.0
    %3957 = vmatpush1.msra.mxu0 %v3909
    %3958 = vmatprep.subr.mxu0 0.0
    %3959 = vmatpush1.msra.mxu0 %v3908
    %3960 = vmatprep.subr.mxu0 0.0
    %3961 = vmatpush1.msra.mxu0 %v3907
    %3962 = vmatprep.subr.mxu0 0.0
    %3963 = vmatpush2.msra.mxu0 0.0
    %3964 = vmatprep.subr.mxu0 0.0
    %3965 = vmatpush2.msra.mxu0 0.0
    %3966 = vmatprep.subr.mxu0 0.0
    %3967 = vmatpush2.msra.mxu0 0.0
    %3968 = vmatprep.subr.mxu0 0.0
    %3969 = vmatpush2.msra.mxu0 0.0
    %3970 = vmatprep.subr.mxu0 0.0
    %3971 = vmatpush2.msra.mxu0 0.0
    %3972 = vmatprep.subr.mxu0 0.0
    %3973 = vmatpush2.msra.mxu0 0.0
    %3974 = vmatprep.subr.mxu0 0.0
    %3975 = vmatpush2.msra.mxu0 0.0
    %3976 = vmatprep.subr.mxu0 0.0
    %3977 = vmatpush2.msra.mxu0 0.0
    %3978 = vmatprep.subr.mxu0 0.0
    %3979 = vmatpush2.msra.mxu0 0.0
    %3980 = vmatprep.subr.mxu0 0.0
    %3981 = vmatpush2.msra.mxu0 0.0
    %3982 = vmatprep.subr.mxu0 0.0
    %3983 = vmatpush2.msra.mxu0 0.0
    %3984 = vmatprep.subr.mxu0 0.0
    %3985 = vmatpush2.msra.mxu0 0.0
    %3986 = vmatprep.subr.mxu0 0.0
    %3987 = vmatpush2.msra.mxu0 0.0
    %3988 = vmatprep.subr.mxu0 0.0
    %3989 = vmatpush2.msra.mxu0 0.0
    %3990 = vmatprep.subr.mxu0 0.0
    %3991 = vmatpush2.msra.mxu0 0.0
    %3992 = vmatprep.subr.mxu0 0.0
    %3993 = vmatpush2.msra.mxu0 0.0
    %3994 = vmatprep.mubr.f32.mxu0 0.0
    %3995 = vmatmul.mubr.f32.gmra.mxu0 %v3891
    %v3996 = vpop.f32.mrf.mxu0
    %v3997 = vadd.f32 %v3928, %v3996
    %v3998 = vpop.f32.mrf.mxu0
    %3999 = vmatprep.mubr.f32.mxu0 0.0
    %4000 = vmatmul.mubr.f32.gmra.mxu0 %v3892
    %v4001 = vpop.f32.mrf.mxu0
    %v4002 = vadd.f32 %v3928, %v4001
    %v4003 = vpop.f32.mrf.mxu0
    %4004 = vmatprep.mubr.f32.mxu0 0.0
    %4005 = vmatmul.mubr.f32.gmra.mxu0 %v3893
    %v4006 = vpop.f32.mrf.mxu0
    %v4007 = vadd.f32 %v3928, %v4006
    %v4008 = vpop.f32.mrf.mxu0
    %4009 = vmatprep.mubr.f32.mxu0 0.0
    %4010 = vmatmul.mubr.f32.gmra.mxu0 %v3894
    %v4011 = vpop.f32.mrf.mxu0
    %v4012 = vadd.f32 %v3928, %v4011
    %v4013 = vpop.f32.mrf.mxu0
    %4014 = vmatprep.mubr.f32.mxu0 0.0
    %4015 = vmatmul.mubr.f32.gmra.mxu0 %v3895
    %v4016 = vpop.f32.mrf.mxu0
    %v4017 = vadd.f32 %v3928, %v4016
    %v4018 = vpop.f32.mrf.mxu0
    %4019 = vmatprep.mubr.f32.mxu0 0.0
    %4020 = vmatmul.mubr.f32.gmra.mxu0 %v3896
    %v4021 = vpop.f32.mrf.mxu0
    %v4022 = vadd.f32 %v3928, %v4021
    %v4023 = vpop.f32.mrf.mxu0
    %4024 = vmatprep.mubr.f32.mxu0 0.0
    %4025 = vmatmul.mubr.f32.gmra.mxu0 %v3897
    %v4026 = vpop.f32.mrf.mxu0
    %v4027 = vadd.f32 %v3928, %v4026
    %v4028 = vpop.f32.mrf.mxu0
    %4029 = vmatprep.mubr.f32.mxu0 0.0
    %4030 = vmatmul.mubr.f32.gmra.mxu0 %v3898
    %v4031 = vpop.f32.mrf.mxu0
    %v4032 = vadd.f32 %v3928, %v4031
    %v4033 = vpop.f32.mrf.mxu0
    %4034 = vmatprep.mubr.f32.mxu0 0.0
    %4035 = vmatmul.mubr.f32.gmra.mxu0 %v3899
    %v4036 = vpop.f32.mrf.mxu0
    %v4037 = vadd.f32 %v3928, %v4036
    %v4038 = vpop.f32.mrf.mxu0
    %4039 = vmatprep.mubr.f32.mxu0 0.0
    %4040 = vmatmul.mubr.f32.gmra.mxu0 %v3900
    %v4041 = vpop.f32.mrf.mxu0
    %v4042 = vadd.f32 %v3928, %v4041
    %v4043 = vpop.f32.mrf.mxu0
    %4044 = vmatprep.mubr.f32.mxu0 0.0
    %4045 = vmatmul.mubr.f32.gmra.mxu0 %v3901
    %v4046 = vpop.f32.mrf.mxu0
    %v4047 = vadd.f32 %v3928, %v4046
    %v4048 = vpop.f32.mrf.mxu0
    %4049 = vmatprep.mubr.f32.mxu0 0.0
    %4050 = vmatmul.mubr.f32.gmra.mxu0 %v3902
    %v4051 = vpop.f32.mrf.mxu0
    %v4052 = vadd.f32 %v3928, %v4051
    %v4053 = vpop.f32.mrf.mxu0
    %4054 = vmatprep.mubr.f32.mxu0 0.0
    %4055 = vmatmul.mubr.f32.gmra.mxu0 %v3903
    %v4056 = vpop.f32.mrf.mxu0
    %v4057 = vadd.f32 %v3928, %v4056
    %v4058 = vpop.f32.mrf.mxu0
    %4059 = vmatprep.mubr.f32.mxu0 0.0
    %4060 = vmatmul.mubr.f32.gmra.mxu0 %v3904
    %v4061 = vpop.f32.mrf.mxu0
    %v4062 = vadd.f32 %v3928, %v4061
    %v4063 = vpop.f32.mrf.mxu0
    %4064 = vmatprep.mubr.f32.mxu0 0.0
    %4065 = vmatmul.mubr.f32.gmra.mxu0 %v3905
    %v4066 = vpop.f32.mrf.mxu0
    %v4067 = vadd.f32 %v3928, %v4066
    %v4068 = vpop.f32.mrf.mxu0
    %4069 = vmatprep.mubr.f32.mxu0 0.0
    %4070 = vmatmul.mubr.f32.gmra.mxu0 %v3906
    %v4071 = vpop.f32.mrf.mxu0
    %v4072 = vadd.f32 %v3928, %v4071
    %v4073 = vpop.f32.mrf.mxu0
    %4074 = vdwg.mxu0
    %vm4075 = vcmp.gt.f32.partialorder %v3997, 0.0
    %vm4076 = vcmp.gt.f32.partialorder %v4002, 0.0
    %vm4077 = vcmp.gt.f32.partialorder %v4007, 0.0
    %vm4078 = vcmp.gt.f32.partialorder %v4012, 0.0
    %vm4079 = vcmp.gt.f32.partialorder %v4017, 0.0
    %vm4080 = vcmp.gt.f32.partialorder %v4022, 0.0
    %vm4081 = vcmp.gt.f32.partialorder %v4027, 0.0
    %vm4082 = vcmp.gt.f32.partialorder %v4032, 0.0
    %vm4083 = vcmp.gt.f32.partialorder %v4037, 0.0
    %vm4084 = vcmp.gt.f32.partialorder %v4042, 0.0
    %vm4085 = vcmp.gt.f32.partialorder %v4047, 0.0
    %vm4086 = vcmp.gt.f32.partialorder %v4052, 0.0
    %vm4087 = vcmp.gt.f32.partialorder %v4057, 0.0
    %vm4088 = vcmp.gt.f32.partialorder %v4062, 0.0
    %vm4089 = vcmp.gt.f32.partialorder %v4067, 0.0
    %vm4090 = vcmp.gt.f32.partialorder %v4072, 0.0
    %v4091 = vmul.f32 %v3997, 0.01
    %v4092 = vmul.f32 %v4002, 0.01
    %v4093 = vmul.f32 %v4007, 0.01
    %v4094 = vmul.f32 %v4012, 0.01
    %v4095 = vmul.f32 %v4017, 0.01
    %v4096 = vmul.f32 %v4022, 0.01
    %v4097 = vmul.f32 %v4027, 0.01
    %v4098 = vmul.f32 %v4032, 0.01
    %v4099 = vmul.f32 %v4037, 0.01
    %v4100 = vmul.f32 %v4042, 0.01
    %v4101 = vmul.f32 %v4047, 0.01
    %v4102 = vmul.f32 %v4052, 0.01
    %v4103 = vmul.f32 %v4057, 0.01
    %v4104 = vmul.f32 %v4062, 0.01
    %v4105 = vmul.f32 %v4067, 0.01
    %v4106 = vmul.f32 %v4072, 0.01
    %v4107 = vsel %vm4075, %v3997, %v4091
    %v4108 = vsel %vm4076, %v4002, %v4092
    %v4109 = vsel %vm4077, %v4007, %v4093
    %v4110 = vsel %vm4078, %v4012, %v4094
    %v4111 = vsel %vm4079, %v4017, %v4095
    %v4112 = vsel %vm4080, %v4022, %v4096
    %v4113 = vsel %vm4081, %v4027, %v4097
    %v4114 = vsel %vm4082, %v4032, %v4098
    %v4115 = vsel %vm4083, %v4037, %v4099
    %v4116 = vsel %vm4084, %v4042, %v4100
    %v4117 = vsel %vm4085, %v4047, %v4101
    %v4118 = vsel %vm4086, %v4052, %v4102
    %v4119 = vsel %vm4087, %v4057, %v4103
    %v4120 = vsel %vm4088, %v4062, %v4104
    %v4121 = vsel %vm4089, %v4067, %v4105
    %v4122 = vsel %vm4090, %v4072, %v4106
    %v4123 = vadd.f32 %v3636, %v4107
    %v4124 = vadd.f32 %v3639, %v4108
    %v4125 = vadd.f32 %v3644, %v4109
    %v4126 = vadd.f32 %v3647, %v4110
    %v4127 = vadd.f32 %v3652, %v4111
    %v4128 = vadd.f32 %v3655, %v4112
    %v4129 = vadd.f32 %v3660, %v4113
    %v4130 = vadd.f32 %v3663, %v4114
    %v4131 = vadd.f32 %v3668, %v4115
    %v4132 = vadd.f32 %v3671, %v4116
    %v4133 = vadd.f32 %v3676, %v4117
    %v4134 = vadd.f32 %v3679, %v4118
    %v4135 = vadd.f32 %v3684, %v4119
    %v4136 = vadd.f32 %v3687, %v4120
    %v4137 = vadd.f32 %v3692, %v4121
    %v4138 = vadd.f32 %v3695, %v4122
    %v4139 = vlaneseq
    %v4140 = vand.u32 %v4139, 127
    %vm4141 = vcmp.lt.s32.totalorder %v4140, 4
    %v4142 = vsel %vm4141, 1, 0
    %vm4143 = vcmp.eq.s32.totalorder %v4142, 1
    %v4144 = vsel %vm4143, %v4123, -1e+30
    %v4145 = vsel %vm4143, %v4124, -1e+30
    %v4146 = vsel %vm4143, %v4125, -1e+30
    %v4147 = vsel %vm4143, %v4126, -1e+30
    %v4148 = vsel %vm4143, %v4127, -1e+30
    %v4149 = vsel %vm4143, %v4128, -1e+30
    %v4150 = vsel %vm4143, %v4129, -1e+30
    %v4151 = vsel %vm4143, %v4130, -1e+30
    %v4152 = vsel %vm4143, %v4131, -1e+30
    %v4153 = vsel %vm4143, %v4132, -1e+30
    %v4154 = vsel %vm4143, %v4133, -1e+30
    %v4155 = vsel %vm4143, %v4134, -1e+30
    %v4156 = vsel %vm4143, %v4135, -1e+30
    %v4157 = vsel %vm4143, %v4136, -1e+30
    %v4158 = vsel %vm4143, %v4137, -1e+30
    %v4159 = vsel %vm4143, %v4138, -1e+30
    %4160 = vmax.xlane.f32.xlu0 %v4144
    %v4161 = vpop.xlane.xlu0 %4160
    %4162 = vmax.xlane.f32.xlu0 %v4145
    %v4163 = vpop.xlane.xlu0 %4162
    %4164 = vmax.xlane.f32.xlu0 %v4146
    %v4165 = vpop.xlane.xlu0 %4164
    %4166 = vmax.xlane.f32.xlu0 %v4147
    %v4167 = vpop.xlane.xlu0 %4166
    %4168 = vmax.xlane.f32.xlu0 %v4148
    %v4169 = vpop.xlane.xlu0 %4168
    %4170 = vmax.xlane.f32.xlu0 %v4149
    %v4171 = vpop.xlane.xlu0 %4170
    %4172 = vmax.xlane.f32.xlu0 %v4150
    %v4173 = vpop.xlane.xlu0 %4172
    %4174 = vmax.xlane.f32.xlu0 %v4151
    %v4175 = vpop.xlane.xlu0 %4174
    %4176 = vmax.xlane.f32.xlu0 %v4152
    %v4177 = vpop.xlane.xlu0 %4176
    %4178 = vmax.xlane.f32.xlu0 %v4153
    %v4179 = vpop.xlane.xlu0 %4178
    %4180 = vmax.xlane.f32.xlu0 %v4154
    %v4181 = vpop.xlane.xlu0 %4180
    %4182 = vmax.xlane.f32.xlu0 %v4155
    %v4183 = vpop.xlane.xlu0 %4182
    %4184 = vmax.xlane.f32.xlu0 %v4156
    %v4185 = vpop.xlane.xlu0 %4184
    %4186 = vmax.xlane.f32.xlu0 %v4157
    %v4187 = vpop.xlane.xlu0 %4186
    %4188 = vmax.xlane.f32.xlu0 %v4158
    %v4189 = vpop.xlane.xlu0 %4188
    %4190 = vmax.xlane.f32.xlu0 %v4159
    %v4191 = vpop.xlane.xlu0 %4190
    %v4192 = vsub.f32 %v4144, %v4161
    %v4193 = vsub.f32 %v4145, %v4163
    %v4194 = vsub.f32 %v4146, %v4165
    %v4195 = vsub.f32 %v4147, %v4167
    %v4196 = vsub.f32 %v4148, %v4169
    %v4197 = vsub.f32 %v4149, %v4171
    %v4198 = vsub.f32 %v4150, %v4173
    %v4199 = vsub.f32 %v4151, %v4175
    %v4200 = vsub.f32 %v4152, %v4177
    %v4201 = vsub.f32 %v4153, %v4179
    %v4202 = vsub.f32 %v4154, %v4181
    %v4203 = vsub.f32 %v4155, %v4183
    %v4204 = vsub.f32 %v4156, %v4185
    %v4205 = vsub.f32 %v4157, %v4187
    %v4206 = vsub.f32 %v4158, %v4189
    %v4207 = vsub.f32 %v4159, %v4191
    %v4208 = vmul.f32 %v4192, 1.442695
    %v4209 = vpow.pop %v4208
    %v4210 = vmul.f32 %v4193, 1.442695
    %v4211 = vpow.pop %v4210
    %v4212 = vmul.f32 %v4194, 1.442695
    %v4213 = vpow.pop %v4212
    %v4214 = vmul.f32 %v4195, 1.442695
    %v4215 = vpow.pop %v4214
    %v4216 = vmul.f32 %v4196, 1.442695
    %v4217 = vpow.pop %v4216
    %v4218 = vmul.f32 %v4197, 1.442695
    %v4219 = vpow.pop %v4218
    %v4220 = vmul.f32 %v4198, 1.442695
    %v4221 = vpow.pop %v4220
    %v4222 = vmul.f32 %v4199, 1.442695
    %v4223 = vpow.pop %v4222
    %v4224 = vmul.f32 %v4200, 1.442695
    %v4225 = vpow.pop %v4224
    %v4226 = vmul.f32 %v4201, 1.442695
    %v4227 = vpow.pop %v4226
    %v4228 = vmul.f32 %v4202, 1.442695
    %v4229 = vpow.pop %v4228
    %v4230 = vmul.f32 %v4203, 1.442695
    %v4231 = vpow.pop %v4230
    %v4232 = vmul.f32 %v4204, 1.442695
    %v4233 = vpow.pop %v4232
    %v4234 = vmul.f32 %v4205, 1.442695
    %v4235 = vpow.pop %v4234
    %v4236 = vmul.f32 %v4206, 1.442695
    %v4237 = vpow.pop %v4236
    %v4238 = vmul.f32 %v4207, 1.442695
    %v4239 = vpow.pop %v4238
    %4240 = vadd.xlane.f32.xlu0 %v4209
    %v4241 = vpop.xlane.xlu0 %4240
    %4242 = vadd.xlane.f32.xlu0 %v4211
    %v4243 = vpop.xlane.xlu0 %4242
    %4244 = vadd.xlane.f32.xlu0 %v4213
    %v4245 = vpop.xlane.xlu0 %4244
    %4246 = vadd.xlane.f32.xlu0 %v4215
    %v4247 = vpop.xlane.xlu0 %4246
    %4248 = vadd.xlane.f32.xlu0 %v4217
    %v4249 = vpop.xlane.xlu0 %4248
    %4250 = vadd.xlane.f32.xlu0 %v4219
    %v4251 = vpop.xlane.xlu0 %4250
    %4252 = vadd.xlane.f32.xlu0 %v4221
    %v4253 = vpop.xlane.xlu0 %4252
    %4254 = vadd.xlane.f32.xlu0 %v4223
    %v4255 = vpop.xlane.xlu0 %4254
    %4256 = vadd.xlane.f32.xlu0 %v4225
    %v4257 = vpop.xlane.xlu0 %4256
    %4258 = vadd.xlane.f32.xlu0 %v4227
    %v4259 = vpop.xlane.xlu0 %4258
    %4260 = vadd.xlane.f32.xlu0 %v4229
    %v4261 = vpop.xlane.xlu0 %4260
    %4262 = vadd.xlane.f32.xlu0 %v4231
    %v4263 = vpop.xlane.xlu0 %4262
    %4264 = vadd.xlane.f32.xlu0 %v4233
    %v4265 = vpop.xlane.xlu0 %4264
    %4266 = vadd.xlane.f32.xlu0 %v4235
    %v4267 = vpop.xlane.xlu0 %4266
    %4268 = vadd.xlane.f32.xlu0 %v4237
    %v4269 = vpop.xlane.xlu0 %4268
    %4270 = vadd.xlane.f32.xlu0 %v4239
    %v4271 = vpop.xlane.xlu0 %4270
    %v4272 = vlog2.pop %v4241
    %v4273 = vmul.f32 %v4272, 0.6931472
    %v4274 = vlog2.pop %v4243
    %v4275 = vmul.f32 %v4274, 0.6931472
    %v4276 = vlog2.pop %v4245
    %v4277 = vmul.f32 %v4276, 0.6931472
    %v4278 = vlog2.pop %v4247
    %v4279 = vmul.f32 %v4278, 0.6931472
    %v4280 = vlog2.pop %v4249
    %v4281 = vmul.f32 %v4280, 0.6931472
    %v4282 = vlog2.pop %v4251
    %v4283 = vmul.f32 %v4282, 0.6931472
    %v4284 = vlog2.pop %v4253
    %v4285 = vmul.f32 %v4284, 0.6931472
    %v4286 = vlog2.pop %v4255
    %v4287 = vmul.f32 %v4286, 0.6931472
    %v4288 = vlog2.pop %v4257
    %v4289 = vmul.f32 %v4288, 0.6931472
    %v4290 = vlog2.pop %v4259
    %v4291 = vmul.f32 %v4290, 0.6931472
    %v4292 = vlog2.pop %v4261
    %v4293 = vmul.f32 %v4292, 0.6931472
    %v4294 = vlog2.pop %v4263
    %v4295 = vmul.f32 %v4294, 0.6931472
    %v4296 = vlog2.pop %v4265
    %v4297 = vmul.f32 %v4296, 0.6931472
    %v4298 = vlog2.pop %v4267
    %v4299 = vmul.f32 %v4298, 0.6931472
    %v4300 = vlog2.pop %v4269
    %v4301 = vmul.f32 %v4300, 0.6931472
    %v4302 = vlog2.pop %v4271
    %v4303 = vmul.f32 %v4302, 0.6931472
    %v4304 = vsub.f32 %v4192, %v4273
    %v4305 = vsub.f32 %v4193, %v4275
    %v4306 = vsub.f32 %v4194, %v4277
    %v4307 = vsub.f32 %v4195, %v4279
    %v4308 = vsub.f32 %v4196, %v4281
    %v4309 = vsub.f32 %v4197, %v4283
    %v4310 = vsub.f32 %v4198, %v4285
    %v4311 = vsub.f32 %v4199, %v4287
    %v4312 = vsub.f32 %v4200, %v4289
    %v4313 = vsub.f32 %v4201, %v4291
    %v4314 = vsub.f32 %v4202, %v4293
    %v4315 = vsub.f32 %v4203, %v4295
    %v4316 = vsub.f32 %v4204, %v4297
    %v4317 = vsub.f32 %v4205, %v4299
    %v4318 = vsub.f32 %v4206, %v4301
    %v4319 = vsub.f32 %v4207, %v4303
    %4320 = vst [vmem:[#allocation28] sm:$0xff] %v4304
    %4321 = vst [vmem:[#allocation28 + $0x8] sm:$0xff] %v4305
    %4322 = vst [vmem:[#allocation28 + $0x10] sm:$0xff] %v4306
    %4323 = vst [vmem:[#allocation28 + $0x18] sm:$0xff] %v4307
    %4324 = vst [vmem:[#allocation28 + $0x20] sm:$0xff] %v4308
    %4325 = vst [vmem:[#allocation28 + $0x28] sm:$0xff] %v4309
    %4326 = vst [vmem:[#allocation28 + $0x30] sm:$0xff] %v4310
    %4327 = vst [vmem:[#allocation28 + $0x38] sm:$0xff] %v4311
    %4328 = vst [vmem:[#allocation28 + $0x40] sm:$0xff] %v4312
    %4329 = vst [vmem:[#allocation28 + $0x48] sm:$0xff] %v4313
    %4330 = vst [vmem:[#allocation28 + $0x50] sm:$0xff] %v4314
    %4331 = vst [vmem:[#allocation28 + $0x58] sm:$0xff] %v4315
    %4332 = vst [vmem:[#allocation28 + $0x60] sm:$0xff] %v4316
    %4333 = vst [vmem:[#allocation28 + $0x68] sm:$0xff] %v4317
    %4334 = vst [vmem:[#allocation28 + $0x70] sm:$0xff] %v4318
    %4335 = vst [vmem:[#allocation28 + $0x78] sm:$0xff] %v4319
    // Predicated region
    $region154: #{tpu_custom_call.1} parent=1 // pred_check
      _
    $region155: #{tpu_custom_call.1} parent=1 // pred_check_branch
      %4337 = sbr.rel (0) target = $region157
    $region156: #{tpu_custom_call.1} parent=1 // pred_region
      %s4339 = ssub.s32 2048, 2048
      %4340 = vsyncadd [#allocation4], %s4339
      %s4341 = sshll.u32 [#allocation28], 4
      %s4342 = int_to_ptr.vmem [resolvable:$true] %s4341
      %4347 = dma.vmem_to_hbm [thread:$0]  %s4342, 2048, %s22, [#allocation4], 128, 128, 8
    $region157: #{tpu_custom_call.1} parent=1 // pred_fallthru
      _
    // Predicated region
    $region158: #{tpu_custom_call.1} parent=1 // pred_check
      _
    $region159: #{tpu_custom_call.1} parent=1 // pred_check_branch
      %4349 = sbr.rel (0) target = $region161
    $region160: #{tpu_custom_call.1} parent=1 // pred_region
      %4350 = dma.done [#allocation4], 2048
    $region161: #{tpu_custom_call.1} parent=1 // pred_fallthru
      _
    %4351 = vsyncpa [#allocation3], 1
    %4352 = vsyncpa [#allocation6], 1
    %4353 = vsyncpa [#allocation9], 1
    %4354 = vsyncpa [#allocation12], 1
    %4355 = vsyncpa [#allocation15], 1
    %4356 = vsyncpa [#allocation18], 1
    %4357 = vsyncpa [#allocation21], 1
    %4358 = vsyncpa [#allocation24], 1
    %4359 = vsyncpa [#allocation27], 1
    %4360 = vsyncpa [#allocation4], 1

</llo_original>
